<compile_context>
chip_gen: v7x
topology: tpu7x:2x2x1
jax: 0.10.0
libtpu: 0.0.40
codegen_flags: <defaults>
</compile_context>

<pallas_src>
import functools

import jax
import jax.numpy as jnp
from jax.experimental import pallas as pl
from jax.experimental.pallas import tpu as pltpu

LANE = 128
SUBLANE = 8
NEG_BIG = -1e30


def _round_up(x, m):
    return (x + m - 1) // m * m


def _vmem_limit_bytes(ti, tj, fp, cp):
    """Rough VMEM footprint estimate for one (i, j) step (with 2x double-buffer slack)."""
    f32, bf16 = 4, 2
    pairwise = 3 * ti * tj * cp * f32                       # z, e, e*att temporaries
    blocks = 2 * (ti * fp * bf16 + tj * fp * bf16           # x_i / x_j blocks
                  + ti * tj * f32 + ti * f32                # mask bias, has_edge
                  + ti * cp * f32)                          # output block
    params = fp * 3 * cp * bf16 + (3 * cp + cp) * f32       # fused W, b, att
    scratch = (3 * ti * cp + 2 * ti) * f32
    est = pairwise + blocks + 2 * params + scratch
    return int(min(48 * 1024 * 1024, max(4 * 1024 * 1024, 2 * est)))


def gat_layer_kernel(xi_ref, xj_ref, mb_ref, he_ref, w_ref, b_ref, att_ref,
                     out_ref, xr_s, lin_s, m_s, l_s, acc_s, *, cp, apply_relu):
    """One (i, j) tile of GATv2Conv(heads=1) + Linear skip.

    xi_ref : [TI, FP] bf16  target-row block of node features
    xj_ref : [TJ, FP] bf16  source-col block of node features
    mb_ref : [TI, TJ] f32   additive adjacency bias (0 if edge j->i else -1e30)
    he_ref : [TI, 1]  f32   1.0 if target row has any incoming edge else 0.0
    w_ref  : [FP, 3*cp] bf16 fused weights [Wl | Wr | Wlin]
    b_ref  : [1, 3*cp]  f32  fused biases  [bl | br | blin + bconv]
    att_ref: [1, cp]    f32  attention vector (heads=1)
    """
    j = pl.program_id(1)
    nj = pl.num_programs(1)

    @pl.when(j == 0)
    def _():
        # Project the target row-block once per i: x_i @ [Wl | Wr | Wlin] + b.
        pc = jnp.dot(xi_ref[...], w_ref[...],
                     preferred_element_type=jnp.float32) + b_ref[...]
        xr_s[...] = pc[:, cp:2 * cp]
        lin_s[...] = pc[:, 2 * cp:3 * cp]
        m_s[...] = jnp.full_like(m_s, -jnp.inf)
        l_s[...] = jnp.zeros_like(l_s)
        acc_s[...] = jnp.zeros_like(acc_s)

    # Source-block projection xl_j (recomputed per row-block; MXU has slack here).
    xl_j = jnp.dot(xj_ref[...], w_ref[:, 0:cp],
                   preferred_element_type=jnp.float32) + b_ref[:, 0:cp]

    # GATv2 pairwise logits; intermediate bounded to [TI, TJ, cp].
    # TODO(synk): bf16 pairwise path + MXU-side att contraction on v6e/v7x if XLU-bound.
    z = xl_j[None, :, :] + xr_s[...][:, None, :]
    e = jnp.where(z > 0, z, jnp.float32(0.2) * z)            # leaky_relu(., 0.2)
    raw = jnp.sum(e * att_ref[...], axis=-1)                 # [TI, TJ]
    logits = raw + mb_ref[...]                               # additive mask

    # Online softmax across source blocks.
    m_prev = m_s[...]
    m_new = jnp.maximum(m_prev, jnp.max(logits, axis=-1, keepdims=True))
    corr = jnp.exp(m_prev - m_new)                           # 0 at j == 0 (m_prev = -inf)
    p = jnp.exp(logits - m_new)                              # non-edges underflow to 0
    l_s[...] = corr * l_s[...] + jnp.sum(p, axis=-1, keepdims=True)
    acc_s[...] = corr * acc_s[...] + jnp.dot(
        p.astype(jnp.bfloat16), xl_j.astype(jnp.bfloat16),
        preferred_element_type=jnp.float32)
    m_s[...] = m_new

    @pl.when(j == nj - 1)
    def _():
        inv = pl.reciprocal(jnp.maximum(l_s[...], jnp.float32(1e-20)), approx=True)
        conv = acc_s[...] * inv * he_ref[...]   # rows without in-edges aggregate to 0
        out = conv + lin_s[...]                 # conv bias folded into lin bias
        if apply_relu:
            out = jnp.maximum(out, 0.0)
        out_ref[...] = out.astype(out_ref.dtype)


def gat_layer(x, mask_bias, has_edge, w, b, att, *, ti, tj, apply_relu, out_dtype):
    np_nodes, fp = x.shape
    cp = att.shape[1]
    assert fp % LANE == 0 and cp % LANE == 0, "feature widths must be 128-lane padded"
    assert np_nodes % ti == 0 and np_nodes % tj == 0

    kernel = functools.partial(gat_layer_kernel, cp=cp, apply_relu=apply_relu)
    grid = (np_nodes // ti, np_nodes // tj)
    return pl.pallas_call(
        kernel,
        out_shape=jax.ShapeDtypeStruct((np_nodes, cp), out_dtype),
        grid_spec=pltpu.PrefetchScalarGridSpec(
            num_scalar_prefetch=0,
            grid=grid,
            in_specs=[
                pl.BlockSpec((ti, fp), lambda i, j: (i, 0)),       # x_i (bf16)
                pl.BlockSpec((tj, fp), lambda i, j: (j, 0)),       # x_j (bf16)
                pl.BlockSpec((ti, tj), lambda i, j: (i, j)),       # additive adjacency bias
                pl.BlockSpec((ti, 1), lambda i, j: (i, 0)),        # has_edge
                pl.BlockSpec((fp, 3 * cp), lambda i, j: (0, 0)),   # fused weights (bf16)
                pl.BlockSpec((1, 3 * cp), lambda i, j: (0, 0)),    # fused biases (f32)
                pl.BlockSpec((1, cp), lambda i, j: (0, 0)),        # attention vector (f32)
            ],
            out_specs=pl.BlockSpec((ti, cp), lambda i, j: (i, 0)),
            scratch_shapes=[
                pltpu.VMEM((ti, cp), jnp.float32),   # xr_i
                pltpu.VMEM((ti, cp), jnp.float32),   # lin_i (+ folded biases)
                pltpu.VMEM((ti, 1), jnp.float32),    # online-softmax max
                pltpu.VMEM((ti, 1), jnp.float32),    # online-softmax denom
                pltpu.VMEM((ti, cp), jnp.float32),   # aggregation accumulator
            ]),
        compiler_params=pltpu.CompilerParams(
            dimension_semantics=("parallel", "arbitrary"),
            vmem_limit_bytes=_vmem_limit_bytes(ti, tj, fp, cp)),
    )(x, x, mask_bias, has_edge, w, b, att)


def gat_forward(x_bf16, mask_bias, has_edge, layer1, layer2, *, ti, tj):
    w1, b1, att1 = layer1
    w2, b2, att2 = layer2
    h = gat_layer(x_bf16, mask_bias, has_edge, w1, b1, att1,
                  ti=ti, tj=tj, apply_relu=True, out_dtype=jnp.bfloat16)
    return gat_layer(h, mask_bias, has_edge, w2, b2, att2,
                     ti=ti, tj=tj, apply_relu=False, out_dtype=jnp.float32)


# ------------------------- parameter / graph preparation -------------------------

def glorot(key, shape):
    fan_in, fan_out = shape[0], shape[1]
    limit = jnp.sqrt(6.0 / (fan_in + fan_out))
    return jax.random.uniform(key, shape, jnp.float32, -limit, limit)


def init_gatv2_layer_params(key, in_dim, out_dim):
    ks = jax.random.split(key, 4)
    return {
        "wl":    glorot(ks[0], (in_dim, out_dim)),
        "bl":    jnp.zeros((out_dim,), jnp.float32),
        "wr":    glorot(ks[1], (in_dim, out_dim)),
        "br":    jnp.zeros((out_dim,), jnp.float32),
        "att":   glorot(ks[2], (1, out_dim))[0],          # heads=1
        "bconv": jnp.zeros((out_dim,), jnp.float32),
        "wlin":  glorot(ks[3], (in_dim, out_dim)),
        "blin":  jnp.zeros((out_dim,), jnp.float32),
    }


def pack_layer_params(p, in_pad, out_pad):
    """Fuse [Wl | Wr | Wlin] into one lane-padded bf16 matrix; fold bconv into blin."""
    assert in_pad % LANE == 0 and out_pad % LANE == 0
    f, c = p["wl"].shape
    w = jnp.zeros((in_pad, 3 * out_pad), jnp.float32)
    w = w.at[:f, 0:c].set(p["wl"])
    w = w.at[:f, out_pad:out_pad + c].set(p["wr"])
    w = w.at[:f, 2 * out_pad:2 * out_pad + c].set(p["wlin"])
    b = jnp.zeros((1, 3 * out_pad), jnp.float32)
    b = b.at[0, 0:c].set(p["bl"])
    b = b.at[0, out_pad:out_pad + c].set(p["br"])
    b = b.at[0, 2 * out_pad:2 * out_pad + c].set(p["blin"] + p["bconv"])
    att = jnp.zeros((1, out_pad), jnp.float32).at[0, :c].set(p["att"])
    return w.astype(jnp.bfloat16), b, att


def edge_index_to_adj(edge_index, num_nodes):
    # adj[dst, src] = 1.0 for each edge (src -> dst); pure-JAX glue.
    src, dst = edge_index[0], edge_index[1]
    adj = jnp.zeros((num_nodes, num_nodes), jnp.float32)
    return adj.at[dst, src].set(1.0)


# ------------------------------- pure-JAX reference -------------------------------

def gatv2_layer_ref(x, adj, p):
    xl = x @ p["wl"] + p["bl"]
    xr = x @ p["wr"] + p["br"]
    z = xl[None, :, :] + xr[:, None, :]
    e = jnp.where(z > 0, z, 0.2 * z)
    logits = jnp.einsum("ijc,c->ij", e, p["att"])
    logits = jnp.where(adj > 0, logits, -jnp.inf)
    m = jnp.max(logits, axis=1, keepdims=True)
    m = jnp.where(jnp.isfinite(m), m, 0.0)
    pexp = jnp.where(adj > 0, jnp.exp(logits - m), 0.0)
    denom = jnp.maximum(jnp.sum(pexp, axis=1, keepdims=True), 1e-20)
    alpha = pexp / denom
    conv = alpha @ xl + p["bconv"]
    lin = x @ p["wlin"] + p["blin"]
    return conv + lin


def gat_forward_ref(x, adj, p1, p2):
    h = jax.nn.relu(gatv2_layer_ref(x, adj, p1))
    return gatv2_layer_ref(h, adj, p2)


if __name__ == "__main__":
    N = 24           # nodes
    F_IN = 16        # input node feature dim
    HIDDEN = 32      # hidden_channels
    OUT = 8          # out_channels
    EDGE_DIM = 4     # edge feature dim (unused by the reference forward, kept for parity)

    # Padding / tiling (generation-aware tiles would pick TI=TJ=128 for big graphs).
    NP = _round_up(N, SUBLANE)
    if NP >= LANE:
        NP = _round_up(NP, LANE)
        TI, TJ = LANE, LANE
    else:
        TI, TJ = SUBLANE, NP          # small graph: 8-row target blocks, full source axis
    FP = _round_up(F_IN, LANE)
    CPH = _round_up(HIDDEN, LANE)
    CPO = _round_up(OUT, LANE)

    key = jax.random.PRNGKey(0)
    kx, ke, k1, k2 = jax.random.split(key, 4)

    x = jax.random.normal(kx, (N, F_IN), jnp.float32)

    # Deterministic small directed graph: ring + skip-5 edges; node 3 has no in-edges.
    src_list, dst_list = [], []
    for i in range(N):
        if (i + 1) % N != 3:
            src_list.append(i); dst_list.append((i + 1) % N)
        if (i + 5) % N != 3:
            src_list.append(i); dst_list.append((i + 5) % N)
    edge_index = jnp.array([src_list, dst_list], dtype=jnp.int32)        # [2, E]
    edge_attr = jax.random.normal(ke, (edge_index.shape[1], EDGE_DIM), jnp.float32)  # unused

    adj = edge_index_to_adj(edge_index, N)

    params1 = init_gatv2_layer_params(k1, F_IN, HIDDEN)
    params2 = init_gatv2_layer_params(k2, HIDDEN, OUT)

    # Host-side padding / packing (one-time prep, plain JAX glue).
    xp = jnp.zeros((NP, FP), jnp.float32).at[:N, :F_IN].set(x).astype(jnp.bfloat16)
    adjp = jnp.zeros((NP, NP), jnp.float32).at[:N, :N].set(adj)
    mask_bias = jnp.where(adjp > 0, 0.0, NEG_BIG).astype(jnp.float32)    # additive mask
    has_edge = (jnp.max(adjp, axis=1, keepdims=True) > 0).astype(jnp.float32)
    layer1 = pack_layer_params(params1, FP, CPH)
    layer2 = pack_layer_params(params2, CPH, CPO)

    fwd = jax.jit(functools.partial(gat_forward, ti=TI, tj=TJ))
    out_padded = fwd(xp, mask_bias, has_edge, layer1, layer2)
    out = out_padded[:N, :OUT]
    jax.block_until_ready(out)

    # Sanity check vs. f32 pure-JAX reference (bf16 casts + approx reciprocal -> loose tol).
    ref = gat_forward_ref(x, adj, params1, params2)
    err = float(jnp.max(jnp.abs(out - ref)))
    assert out.shape == (N, OUT)
    assert err < 0.25, f"max abs error vs reference too large: {err}"
    print("KERNEL_OK")
</pallas_src>

<mosaic_0001>
module attributes {stable_mosaic.version = 11 : i64} {
  func.func @gat_layer_kernel(%arg0: i32, %arg1: i32, %arg2: memref<8x128xbf16, #tpu.memory_space<vmem>>, %arg3: memref<24x128xbf16, #tpu.memory_space<vmem>>, %arg4: memref<8x24xf32, #tpu.memory_space<vmem>>, %arg5: memref<8x1xf32, #tpu.memory_space<vmem>>, %arg6: memref<128x384xbf16, #tpu.memory_space<vmem>>, %arg7: memref<1x384xf32, #tpu.memory_space<vmem>>, %arg8: memref<1x128xf32, #tpu.memory_space<vmem>>, %arg9: memref<8x128xf32, #tpu.memory_space<vmem>>, %arg10: memref<8x128xf32, #tpu.memory_space<vmem>>, %arg11: memref<8x128xf32, #tpu.memory_space<vmem>>, %arg12: memref<8x1xf32, #tpu.memory_space<vmem>>, %arg13: memref<8x1xf32, #tpu.memory_space<vmem>>, %arg14: memref<8x128xf32, #tpu.memory_space<vmem>>) attributes {dimension_semantics = [#tpu.dimension_semantics<parallel>, #tpu.dimension_semantics<arbitrary>], iteration_bounds = array<i64: 3, 1>, scalar_prefetch = 0 : i64, scratch_operands = 5 : i64, tpu.core_type = #tpu.core_type<tc>, window_params = [{transform_indices = @transform_0, window_bounds = array<i64: 8, 128>}, {transform_indices = @transform_1, window_bounds = array<i64: 24, 128>}, {transform_indices = @transform_2, window_bounds = array<i64: 8, 24>}, {transform_indices = @transform_3, window_bounds = array<i64: 8, 1>}, {pipeline_mode = #tpu.pipeline_mode<synchronous>, transform_indices = @transform_4, window_bounds = array<i64: 128, 384>}, {pipeline_mode = #tpu.pipeline_mode<synchronous>, transform_indices = @transform_5, window_bounds = array<i64: 1, 384>}, {pipeline_mode = #tpu.pipeline_mode<synchronous>, transform_indices = @transform_6, window_bounds = array<i64: 1, 128>}, {transform_indices = @transform_7, window_bounds = array<i64: 8, 128>}]} {
    %c0_i32 = arith.constant 0 : i32
    %0 = arith.cmpi eq, %arg1, %c0_i32 : i32
    %1 = arith.extui %0 : i1 to i32
    %c0_i32_0 = arith.constant 0 : i32
    %2 = arith.cmpi ne, %1, %c0_i32_0 : i32
    scf.if %2 {
      %c0_32 = arith.constant 0 : index
      %c0_33 = arith.constant 0 : index
      %54 = vector.load %arg2[%c0_32, %c0_33] : memref<8x128xbf16, #tpu.memory_space<vmem>>, vector<8x128xbf16>
      %c0_34 = arith.constant 0 : index
      %c0_35 = arith.constant 0 : index
      %55 = vector.load %arg6[%c0_34, %c0_35] : memref<128x384xbf16, #tpu.memory_space<vmem>>, vector<128x384xbf16>
      %cst_36 = arith.constant dense<0.000000e+00> : vector<8x384xf32>
      %56 = tpu.matmul %54, %55, %cst_36 {dimension_numbers = #tpu.dot_dimension_numbers<[1], [0], [0], [1], [0, 0, 1, 1], [], []>} : vector<8x128xbf16>, vector<128x384xbf16>, vector<8x384xf32> -> vector<8x384xf32>
      %c0_37 = arith.constant 0 : index
      %c0_38 = arith.constant 0 : index
      %57 = vector.load %arg7[%c0_37, %c0_38] : memref<1x384xf32, #tpu.memory_space<vmem>>, vector<1x384xf32>
      %58 = vector.broadcast %57 : vector<1x384xf32> to vector<8x384xf32>
      %59 = arith.addf %56, %58 : vector<8x384xf32>
      %60 = vector.extract_strided_slice %59 {offsets = [0, 128], sizes = [8, 128], strides = [1, 1]} : vector<8x384xf32> to vector<8x128xf32>
      %c0_39 = arith.constant 0 : index
      %c0_40 = arith.constant 0 : index
      %61 = vector.load %arg10[%c0_39, %c0_40] : memref<8x128xf32, #tpu.memory_space<vmem>>, vector<8x128xf32>
      tpu.vector_store %arg10[%c0_39, %c0_40], %60 {strides = array<i32>} : memref<8x128xf32, #tpu.memory_space<vmem>>, vector<8x128xf32>,
      %62 = vector.extract_strided_slice %59 {offsets = [0, 256], sizes = [8, 128], strides = [1, 1]} : vector<8x384xf32> to vector<8x128xf32>
      %c0_41 = arith.constant 0 : index
      %c0_42 = arith.constant 0 : index
      %63 = vector.load %arg11[%c0_41, %c0_42] : memref<8x128xf32, #tpu.memory_space<vmem>>, vector<8x128xf32>
      tpu.vector_store %arg11[%c0_41, %c0_42], %62 {strides = array<i32>} : memref<8x128xf32, #tpu.memory_space<vmem>>, vector<8x128xf32>,
      %cst_43 = arith.constant 0xFF800000 : f32
      %64 = vector.broadcast %cst_43 : f32 to vector<8x1xf32>
      %c0_44 = arith.constant 0 : index
      %c0_45 = arith.constant 0 : index
      %65 = vector.load %arg12[%c0_44, %c0_45] : memref<8x1xf32, #tpu.memory_space<vmem>>, vector<8x1xf32>
      tpu.vector_store %arg12[%c0_44, %c0_45], %64 {strides = array<i32>} : memref<8x1xf32, #tpu.memory_space<vmem>>, vector<8x1xf32>,
      %cst_46 = arith.constant 0.000000e+00 : f32
      %66 = vector.broadcast %cst_46 : f32 to vector<8x1xf32>
      %c0_47 = arith.constant 0 : index
      %c0_48 = arith.constant 0 : index
      %67 = vector.load %arg13[%c0_47, %c0_48] : memref<8x1xf32, #tpu.memory_space<vmem>>, vector<8x1xf32>
      tpu.vector_store %arg13[%c0_47, %c0_48], %66 {strides = array<i32>} : memref<8x1xf32, #tpu.memory_space<vmem>>, vector<8x1xf32>,
      %cst_49 = arith.constant 0.000000e+00 : f32
      %68 = vector.broadcast %cst_49 : f32 to vector<8x128xf32>
      %c0_50 = arith.constant 0 : index
      %c0_51 = arith.constant 0 : index
      %69 = vector.load %arg14[%c0_50, %c0_51] : memref<8x128xf32, #tpu.memory_space<vmem>>, vector<8x128xf32>
      tpu.vector_store %arg14[%c0_50, %c0_51], %68 {strides = array<i32>} : memref<8x128xf32, #tpu.memory_space<vmem>>, vector<8x128xf32>,
    } else {
    }
    %c0 = arith.constant 0 : index
    %c0_1 = arith.constant 0 : index
    %3 = vector.load %arg3[%c0, %c0_1] : memref<24x128xbf16, #tpu.memory_space<vmem>>, vector<24x128xbf16>
    %c0_2 = arith.constant 0 : index
    %c0_3 = arith.constant 0 : index
    %4 = vector.load %arg6[%c0_2, %c0_3] : memref<128x384xbf16, #tpu.memory_space<vmem>>, vector<128x128xbf16>
    %cst = arith.constant dense<0.000000e+00> : vector<24x128xf32>
    %5 = tpu.matmul %3, %4, %cst {dimension_numbers = #tpu.dot_dimension_numbers<[1], [0], [0], [1], [0, 0, 1, 1], [], []>} : vector<24x128xbf16>, vector<128x128xbf16>, vector<24x128xf32> -> vector<24x128xf32>
    %c0_4 = arith.constant 0 : index
    %c0_5 = arith.constant 0 : index
    %6 = vector.load %arg7[%c0_4, %c0_5] : memref<1x384xf32, #tpu.memory_space<vmem>>, vector<1x128xf32>
    %7 = vector.broadcast %6 : vector<1x128xf32> to vector<24x128xf32>
    %8 = arith.addf %5, %7 : vector<24x128xf32>
    %9 = vector.shape_cast %8 : vector<24x128xf32> to vector<1x24x128xf32>
    %c0_6 = arith.constant 0 : index
    %c0_7 = arith.constant 0 : index
    %10 = vector.load %arg10[%c0_6, %c0_7] : memref<8x128xf32, #tpu.memory_space<vmem>>, vector<8x128xf32>
    %11 = vector.shape_cast %10 : vector<8x128xf32> to vector<8x1x128xf32>
    %12 = vector.broadcast %9 : vector<1x24x128xf32> to vector<8x24x128xf32>
    %13 = vector.broadcast %11 : vector<8x1x128xf32> to vector<8x24x128xf32>
    %14 = arith.addf %12, %13 : vector<8x24x128xf32>
    %cst_8 = arith.constant 0.000000e+00 : f32
    %15 = vector.broadcast %cst_8 : f32 to vector<8x24x128xf32>
    %16 = arith.cmpf ogt, %14, %15 : vector<8x24x128xf32>
    %cst_9 = arith.constant 2.000000e-01 : f32
    %17 = vector.broadcast %cst_9 : f32 to vector<8x24x128xf32>
    %18 = arith.mulf %17, %14 : vector<8x24x128xf32>
    %19 = arith.select %16, %14, %18 : vector<8x24x128xi1>, vector<8x24x128xf32>
    %c0_10 = arith.constant 0 : index
    %c0_11 = arith.constant 0 : index
    %20 = vector.load %arg8[%c0_10, %c0_11] : memref<1x128xf32, #tpu.memory_space<vmem>>, vector<1x128xf32>
    %21 = vector.shape_cast %20 : vector<1x128xf32> to vector<1x1x128xf32>
    %22 = vector.broadcast %21 : vector<1x1x128xf32> to vector<8x24x128xf32>
    %23 = arith.mulf %19, %22 : vector<8x24x128xf32>
    %cst_12 = arith.constant dense<0.000000e+00> : vector<8x24xf32>
    %24 = vector.multi_reduction <add>, %23, %cst_12 [2] : vector<8x24x128xf32> to vector<8x24xf32>
    %c0_13 = arith.constant 0 : index
    %c0_14 = arith.constant 0 : index
    %25 = vector.load %arg4[%c0_13, %c0_14] : memref<8x24xf32, #tpu.memory_space<vmem>>, vector<8x24xf32>
    %26 = arith.addf %24, %25 : vector<8x24xf32>
    %c0_15 = arith.constant 0 : index
    %c0_16 = arith.constant 0 : index
    %27 = vector.load %arg12[%c0_15, %c0_16] : memref<8x1xf32, #tpu.memory_space<vmem>>, vector<8x1xf32>
    %cst_17 = arith.constant dense<0xFF800000> : vector<8xf32>
    %28 = vector.multi_reduction <maximumf>, %26, %cst_17 [1] : vector<8x24xf32> to vector<8xf32>
    %29 = vector.shape_cast %28 : vector<8xf32> to vector<8x1xf32>
    %30 = arith.maximumf %27, %29 : vector<8x1xf32>
    %31 = arith.subf %27, %30 : vector<8x1xf32>
    %32 = math.exp %31 : vector<8x1xf32>
    %33 = vector.broadcast %30 : vector<8x1xf32> to vector<8x24xf32>
    %34 = arith.subf %26, %33 : vector<8x24xf32>
    %35 = math.exp %34 : vector<8x24xf32>
    %c0_18 = arith.constant 0 : index
    %c0_19 = arith.constant 0 : index
    %36 = vector.load %arg13[%c0_18, %c0_19] : memref<8x1xf32, #tpu.memory_space<vmem>>, vector<8x1xf32>
    %37 = arith.mulf %32, %36 : vector<8x1xf32>
    %cst_20 = arith.constant dense<0.000000e+00> : vector<8xf32>
    %38 = vector.multi_reduction <add>, %35, %cst_20 [1] : vector<8x24xf32> to vector<8xf32>
    %39 = vector.shape_cast %38 : vector<8xf32> to vector<8x1xf32>
    %40 = arith.addf %37, %39 : vector<8x1xf32>
    %c0_21 = arith.constant 0 : index
    %c0_22 = arith.constant 0 : index
    %41 = vector.load %arg13[%c0_21, %c0_22] : memref<8x1xf32, #tpu.memory_space<vmem>>, vector<8x1xf32>
    tpu.vector_store %arg13[%c0_21, %c0_22], %40 {strides = array<i32>} : memref<8x1xf32, #tpu.memory_space<vmem>>, vector<8x1xf32>,
    %c0_23 = arith.constant 0 : index
    %c0_24 = arith.constant 0 : index
    %42 = vector.load %arg14[%c0_23, %c0_24] : memref<8x128xf32, #tpu.memory_space<vmem>>, vector<8x128xf32>
    %43 = vector.broadcast %32 : vector<8x1xf32> to vector<8x128xf32>
    %44 = arith.mulf %43, %42 : vector<8x128xf32>
    %45 = arith.truncf %35 : vector<8x24xf32> to vector<8x24xbf16>
    %46 = arith.truncf %8 : vector<24x128xf32> to vector<24x128xbf16>
    %cst_25 = arith.constant dense<0.000000e+00> : vector<8x128xf32>
    %47 = tpu.matmul %45, %46, %cst_25 {dimension_numbers = #tpu.dot_dimension_numbers<[1], [0], [0], [1], [0, 0, 1, 1], [], []>} : vector<8x24xbf16>, vector<24x128xbf16>, vector<8x128xf32> -> vector<8x128xf32>
    %48 = arith.addf %44, %47 : vector<8x128xf32>
    %c0_26 = arith.constant 0 : index
    %c0_27 = arith.constant 0 : index
    %49 = vector.load %arg14[%c0_26, %c0_27] : memref<8x128xf32, #tpu.memory_space<vmem>>, vector<8x128xf32>
    tpu.vector_store %arg14[%c0_26, %c0_27], %48 {strides = array<i32>} : memref<8x128xf32, #tpu.memory_space<vmem>>, vector<8x128xf32>,
    %c0_28 = arith.constant 0 : index
    %c0_29 = arith.constant 0 : index
    %50 = vector.load %arg12[%c0_28, %c0_29] : memref<8x1xf32, #tpu.memory_space<vmem>>, vector<8x1xf32>
    tpu.vector_store %arg12[%c0_28, %c0_29], %30 {strides = array<i32>} : memref<8x1xf32, #tpu.memory_space<vmem>>, vector<8x1xf32>,
    %c0_i32_30 = arith.constant 0 : i32
    %51 = arith.cmpi eq, %arg1, %c0_i32_30 : i32
    %52 = arith.extui %51 : i1 to i32
    %c0_i32_31 = arith.constant 0 : i32
    %53 = arith.cmpi ne, %52, %c0_i32_31 : i32
    scf.if %53 {
      %c0_32 = arith.constant 0 : index
      %c0_33 = arith.constant 0 : index
      %54 = vector.load %arg13[%c0_32, %c0_33] : memref<8x1xf32, #tpu.memory_space<vmem>>, vector<8x1xf32>
      %cst_34 = arith.constant 9.99999968E-21 : f32
      %55 = vector.broadcast %cst_34 : f32 to vector<8x1xf32>
      %56 = arith.maximumf %54, %55 : vector<8x1xf32>
      %57 = tpu.reciprocal %56 {approx = true} : vector<8x1xf32> -> vector<8x1xf32>
      %c0_35 = arith.constant 0 : index
      %c0_36 = arith.constant 0 : index
      %58 = vector.load %arg14[%c0_35, %c0_36] : memref<8x128xf32, #tpu.memory_space<vmem>>, vector<8x128xf32>
      %59 = vector.broadcast %57 : vector<8x1xf32> to vector<8x128xf32>
      %60 = arith.mulf %58, %59 : vector<8x128xf32>
      %c0_37 = arith.constant 0 : index
      %c0_38 = arith.constant 0 : index
      %61 = vector.load %arg5[%c0_37, %c0_38] : memref<8x1xf32, #tpu.memory_space<vmem>>, vector<8x1xf32>
      %62 = vector.broadcast %61 : vector<8x1xf32> to vector<8x128xf32>
      %63 = arith.mulf %60, %62 : vector<8x128xf32>
      %c0_39 = arith.constant 0 : index
      %c0_40 = arith.constant 0 : index
      %64 = vector.load %arg11[%c0_39, %c0_40] : memref<8x128xf32, #tpu.memory_space<vmem>>, vector<8x128xf32>
      %65 = arith.addf %63, %64 : vector<8x128xf32>
      %c0_41 = arith.constant 0 : index
      %c0_42 = arith.constant 0 : index
      %66 = vector.load %arg9[%c0_41, %c0_42] : memref<8x128xf32, #tpu.memory_space<vmem>>, vector<8x128xf32>
      tpu.vector_store %arg9[%c0_41, %c0_42], %65 {strides = array<i32>} : memref<8x128xf32, #tpu.memory_space<vmem>>, vector<8x128xf32>,
    } else {
    }
    return
  }
  func.func @transform_0(%arg0: i32, %arg1: i32) -> (i32, i32) {
    %c0_i32 = arith.constant 0 : i32
    %c0_i32_0 = arith.constant 0 : i32
    return %arg0, %c0_i32 : i32, i32
  }
  func.func @transform_1(%arg0: i32, %arg1: i32) -> (i32, i32) {
    %c0_i32 = arith.constant 0 : i32
    %c0_i32_0 = arith.constant 0 : i32
    return %arg1, %c0_i32 : i32, i32
  }
  func.func @transform_2(%arg0: i32, %arg1: i32) -> (i32, i32) {
    %c0_i32 = arith.constant 0 : i32
    return %arg0, %arg1 : i32, i32
  }
  func.func @transform_3(%arg0: i32, %arg1: i32) -> (i32, i32) {
    %c0_i32 = arith.constant 0 : i32
    %c0_i32_0 = arith.constant 0 : i32
    return %arg0, %c0_i32 : i32, i32
  }
  func.func @transform_4(%arg0: i32, %arg1: i32) -> (i32, i32) {
    %c0_i32 = arith.constant 0 : i32
    %c0_i32_0 = arith.constant 0 : i32
    %c0_i32_1 = arith.constant 0 : i32
    return %c0_i32, %c0_i32_0 : i32, i32
  }
  func.func @transform_5(%arg0: i32, %arg1: i32) -> (i32, i32) {
    %c0_i32 = arith.constant 0 : i32
    %c0_i32_0 = arith.constant 0 : i32
    %c0_i32_1 = arith.constant 0 : i32
    return %c0_i32, %c0_i32_0 : i32, i32
  }
  func.func @transform_6(%arg0: i32, %arg1: i32) -> (i32, i32) {
    %c0_i32 = arith.constant 0 : i32
    %c0_i32_0 = arith.constant 0 : i32
    %c0_i32_1 = arith.constant 0 : i32
    return %c0_i32, %c0_i32_0 : i32, i32
  }
  func.func @transform_7(%arg0: i32, %arg1: i32) -> (i32, i32) {
    %c0_i32 = arith.constant 0 : i32
    %c0_i32_0 = arith.constant 0 : i32
    return %arg0, %c0_i32 : i32, i32
  }
}

module attributes {stable_mosaic.version = 11 : i64} {
  func.func @gat_layer_kernel(%arg0: i32, %arg1: i32, %arg2: memref<8x128xbf16, #tpu.memory_space<vmem>>, %arg3: memref<24x128xbf16, #tpu.memory_space<vmem>>, %arg4: memref<8x24xf32, #tpu.memory_space<vmem>>, %arg5: memref<8x1xf32, #tpu.memory_space<vmem>>, %arg6: memref<128x384xbf16, #tpu.memory_space<vmem>>, %arg7: memref<1x384xf32, #tpu.memory_space<vmem>>, %arg8: memref<1x128xf32, #tpu.memory_space<vmem>>, %arg9: memref<8x128xbf16, #tpu.memory_space<vmem>>, %arg10: memref<8x128xf32, #tpu.memory_space<vmem>>, %arg11: memref<8x128xf32, #tpu.memory_space<vmem>>, %arg12: memref<8x1xf32, #tpu.memory_space<vmem>>, %arg13: memref<8x1xf32, #tpu.memory_space<vmem>>, %arg14: memref<8x128xf32, #tpu.memory_space<vmem>>) attributes {dimension_semantics = [#tpu.dimension_semantics<parallel>, #tpu.dimension_semantics<arbitrary>], iteration_bounds = array<i64: 3, 1>, scalar_prefetch = 0 : i64, scratch_operands = 5 : i64, tpu.core_type = #tpu.core_type<tc>, window_params = [{transform_indices = @transform_0, window_bounds = array<i64: 8, 128>}, {transform_indices = @transform_1, window_bounds = array<i64: 24, 128>}, {transform_indices = @transform_2, window_bounds = array<i64: 8, 24>}, {transform_indices = @transform_3, window_bounds = array<i64: 8, 1>}, {pipeline_mode = #tpu.pipeline_mode<synchronous>, transform_indices = @transform_4, window_bounds = array<i64: 128, 384>}, {pipeline_mode = #tpu.pipeline_mode<synchronous>, transform_indices = @transform_5, window_bounds = array<i64: 1, 384>}, {pipeline_mode = #tpu.pipeline_mode<synchronous>, transform_indices = @transform_6, window_bounds = array<i64: 1, 128>}, {transform_indices = @transform_7, window_bounds = array<i64: 8, 128>}]} {
    %c0_i32 = arith.constant 0 : i32
    %0 = arith.cmpi eq, %arg1, %c0_i32 : i32
    %1 = arith.extui %0 : i1 to i32
    %c0_i32_0 = arith.constant 0 : i32
    %2 = arith.cmpi ne, %1, %c0_i32_0 : i32
    scf.if %2 {
      %c0_32 = arith.constant 0 : index
      %c0_33 = arith.constant 0 : index
      %54 = vector.load %arg2[%c0_32, %c0_33] : memref<8x128xbf16, #tpu.memory_space<vmem>>, vector<8x128xbf16>
      %c0_34 = arith.constant 0 : index
      %c0_35 = arith.constant 0 : index
      %55 = vector.load %arg6[%c0_34, %c0_35] : memref<128x384xbf16, #tpu.memory_space<vmem>>, vector<128x384xbf16>
      %cst_36 = arith.constant dense<0.000000e+00> : vector<8x384xf32>
      %56 = tpu.matmul %54, %55, %cst_36 {dimension_numbers = #tpu.dot_dimension_numbers<[1], [0], [0], [1], [0, 0, 1, 1], [], []>} : vector<8x128xbf16>, vector<128x384xbf16>, vector<8x384xf32> -> vector<8x384xf32>
      %c0_37 = arith.constant 0 : index
      %c0_38 = arith.constant 0 : index
      %57 = vector.load %arg7[%c0_37, %c0_38] : memref<1x384xf32, #tpu.memory_space<vmem>>, vector<1x384xf32>
      %58 = vector.broadcast %57 : vector<1x384xf32> to vector<8x384xf32>
      %59 = arith.addf %56, %58 : vector<8x384xf32>
      %60 = vector.extract_strided_slice %59 {offsets = [0, 128], sizes = [8, 128], strides = [1, 1]} : vector<8x384xf32> to vector<8x128xf32>
      %c0_39 = arith.constant 0 : index
      %c0_40 = arith.constant 0 : index
      %61 = vector.load %arg10[%c0_39, %c0_40] : memref<8x128xf32, #tpu.memory_space<vmem>>, vector<8x128xf32>
      tpu.vector_store %arg10[%c0_39, %c0_40], %60 {strides = array<i32>} : memref<8x128xf32, #tpu.memory_space<vmem>>, vector<8x128xf32>,
      %62 = vector.extract_strided_slice %59 {offsets = [0, 256], sizes = [8, 128], strides = [1, 1]} : vector<8x384xf32> to vector<8x128xf32>
      %c0_41 = arith.constant 0 : index
      %c0_42 = arith.constant 0 : index
      %63 = vector.load %arg11[%c0_41, %c0_42] : memref<8x128xf32, #tpu.memory_space<vmem>>, vector<8x128xf32>
      tpu.vector_store %arg11[%c0_41, %c0_42], %62 {strides = array<i32>} : memref<8x128xf32, #tpu.memory_space<vmem>>, vector<8x128xf32>,
      %cst_43 = arith.constant 0xFF800000 : f32
      %64 = vector.broadcast %cst_43 : f32 to vector<8x1xf32>
      %c0_44 = arith.constant 0 : index
      %c0_45 = arith.constant 0 : index
      %65 = vector.load %arg12[%c0_44, %c0_45] : memref<8x1xf32, #tpu.memory_space<vmem>>, vector<8x1xf32>
      tpu.vector_store %arg12[%c0_44, %c0_45], %64 {strides = array<i32>} : memref<8x1xf32, #tpu.memory_space<vmem>>, vector<8x1xf32>,
      %cst_46 = arith.constant 0.000000e+00 : f32
      %66 = vector.broadcast %cst_46 : f32 to vector<8x1xf32>
      %c0_47 = arith.constant 0 : index
      %c0_48 = arith.constant 0 : index
      %67 = vector.load %arg13[%c0_47, %c0_48] : memref<8x1xf32, #tpu.memory_space<vmem>>, vector<8x1xf32>
      tpu.vector_store %arg13[%c0_47, %c0_48], %66 {strides = array<i32>} : memref<8x1xf32, #tpu.memory_space<vmem>>, vector<8x1xf32>,
      %cst_49 = arith.constant 0.000000e+00 : f32
      %68 = vector.broadcast %cst_49 : f32 to vector<8x128xf32>
      %c0_50 = arith.constant 0 : index
      %c0_51 = arith.constant 0 : index
      %69 = vector.load %arg14[%c0_50, %c0_51] : memref<8x128xf32, #tpu.memory_space<vmem>>, vector<8x128xf32>
      tpu.vector_store %arg14[%c0_50, %c0_51], %68 {strides = array<i32>} : memref<8x128xf32, #tpu.memory_space<vmem>>, vector<8x128xf32>,
    } else {
    }
    %c0 = arith.constant 0 : index
    %c0_1 = arith.constant 0 : index
    %3 = vector.load %arg3[%c0, %c0_1] : memref<24x128xbf16, #tpu.memory_space<vmem>>, vector<24x128xbf16>
    %c0_2 = arith.constant 0 : index
    %c0_3 = arith.constant 0 : index
    %4 = vector.load %arg6[%c0_2, %c0_3] : memref<128x384xbf16, #tpu.memory_space<vmem>>, vector<128x128xbf16>
    %cst = arith.constant dense<0.000000e+00> : vector<24x128xf32>
    %5 = tpu.matmul %3, %4, %cst {dimension_numbers = #tpu.dot_dimension_numbers<[1], [0], [0], [1], [0, 0, 1, 1], [], []>} : vector<24x128xbf16>, vector<128x128xbf16>, vector<24x128xf32> -> vector<24x128xf32>
    %c0_4 = arith.constant 0 : index
    %c0_5 = arith.constant 0 : index
    %6 = vector.load %arg7[%c0_4, %c0_5] : memref<1x384xf32, #tpu.memory_space<vmem>>, vector<1x128xf32>
    %7 = vector.broadcast %6 : vector<1x128xf32> to vector<24x128xf32>
    %8 = arith.addf %5, %7 : vector<24x128xf32>
    %9 = vector.shape_cast %8 : vector<24x128xf32> to vector<1x24x128xf32>
    %c0_6 = arith.constant 0 : index
    %c0_7 = arith.constant 0 : index
    %10 = vector.load %arg10[%c0_6, %c0_7] : memref<8x128xf32, #tpu.memory_space<vmem>>, vector<8x128xf32>
    %11 = vector.shape_cast %10 : vector<8x128xf32> to vector<8x1x128xf32>
    %12 = vector.broadcast %9 : vector<1x24x128xf32> to vector<8x24x128xf32>
    %13 = vector.broadcast %11 : vector<8x1x128xf32> to vector<8x24x128xf32>
    %14 = arith.addf %12, %13 : vector<8x24x128xf32>
    %cst_8 = arith.constant 0.000000e+00 : f32
    %15 = vector.broadcast %cst_8 : f32 to vector<8x24x128xf32>
    %16 = arith.cmpf ogt, %14, %15 : vector<8x24x128xf32>
    %cst_9 = arith.constant 2.000000e-01 : f32
    %17 = vector.broadcast %cst_9 : f32 to vector<8x24x128xf32>
    %18 = arith.mulf %17, %14 : vector<8x24x128xf32>
    %19 = arith.select %16, %14, %18 : vector<8x24x128xi1>, vector<8x24x128xf32>
    %c0_10 = arith.constant 0 : index
    %c0_11 = arith.constant 0 : index
    %20 = vector.load %arg8[%c0_10, %c0_11] : memref<1x128xf32, #tpu.memory_space<vmem>>, vector<1x128xf32>
    %21 = vector.shape_cast %20 : vector<1x128xf32> to vector<1x1x128xf32>
    %22 = vector.broadcast %21 : vector<1x1x128xf32> to vector<8x24x128xf32>
    %23 = arith.mulf %19, %22 : vector<8x24x128xf32>
    %cst_12 = arith.constant dense<0.000000e+00> : vector<8x24xf32>
    %24 = vector.multi_reduction <add>, %23, %cst_12 [2] : vector<8x24x128xf32> to vector<8x24xf32>
    %c0_13 = arith.constant 0 : index
    %c0_14 = arith.constant 0 : index
    %25 = vector.load %arg4[%c0_13, %c0_14] : memref<8x24xf32, #tpu.memory_space<vmem>>, vector<8x24xf32>
    %26 = arith.addf %24, %25 : vector<8x24xf32>
    %c0_15 = arith.constant 0 : index
    %c0_16 = arith.constant 0 : index
    %27 = vector.load %arg12[%c0_15, %c0_16] : memref<8x1xf32, #tpu.memory_space<vmem>>, vector<8x1xf32>
    %cst_17 = arith.constant dense<0xFF800000> : vector<8xf32>
    %28 = vector.multi_reduction <maximumf>, %26, %cst_17 [1] : vector<8x24xf32> to vector<8xf32>
    %29 = vector.shape_cast %28 : vector<8xf32> to vector<8x1xf32>
    %30 = arith.maximumf %27, %29 : vector<8x1xf32>
    %31 = arith.subf %27, %30 : vector<8x1xf32>
    %32 = math.exp %31 : vector<8x1xf32>
    %33 = vector.broadcast %30 : vector<8x1xf32> to vector<8x24xf32>
    %34 = arith.subf %26, %33 : vector<8x24xf32>
    %35 = math.exp %34 : vector<8x24xf32>
    %c0_18 = arith.constant 0 : index
    %c0_19 = arith.constant 0 : index
    %36 = vector.load %arg13[%c0_18, %c0_19] : memref<8x1xf32, #tpu.memory_space<vmem>>, vector<8x1xf32>
    %37 = arith.mulf %32, %36 : vector<8x1xf32>
    %cst_20 = arith.constant dense<0.000000e+00> : vector<8xf32>
    %38 = vector.multi_reduction <add>, %35, %cst_20 [1] : vector<8x24xf32> to vector<8xf32>
    %39 = vector.shape_cast %38 : vector<8xf32> to vector<8x1xf32>
    %40 = arith.addf %37, %39 : vector<8x1xf32>
    %c0_21 = arith.constant 0 : index
    %c0_22 = arith.constant 0 : index
    %41 = vector.load %arg13[%c0_21, %c0_22] : memref<8x1xf32, #tpu.memory_space<vmem>>, vector<8x1xf32>
    tpu.vector_store %arg13[%c0_21, %c0_22], %40 {strides = array<i32>} : memref<8x1xf32, #tpu.memory_space<vmem>>, vector<8x1xf32>,
    %c0_23 = arith.constant 0 : index
    %c0_24 = arith.constant 0 : index
    %42 = vector.load %arg14[%c0_23, %c0_24] : memref<8x128xf32, #tpu.memory_space<vmem>>, vector<8x128xf32>
    %43 = vector.broadcast %32 : vector<8x1xf32> to vector<8x128xf32>
    %44 = arith.mulf %43, %42 : vector<8x128xf32>
    %45 = arith.truncf %35 : vector<8x24xf32> to vector<8x24xbf16>
    %46 = arith.truncf %8 : vector<24x128xf32> to vector<24x128xbf16>
    %cst_25 = arith.constant dense<0.000000e+00> : vector<8x128xf32>
    %47 = tpu.matmul %45, %46, %cst_25 {dimension_numbers = #tpu.dot_dimension_numbers<[1], [0], [0], [1], [0, 0, 1, 1], [], []>} : vector<8x24xbf16>, vector<24x128xbf16>, vector<8x128xf32> -> vector<8x128xf32>
    %48 = arith.addf %44, %47 : vector<8x128xf32>
    %c0_26 = arith.constant 0 : index
    %c0_27 = arith.constant 0 : index
    %49 = vector.load %arg14[%c0_26, %c0_27] : memref<8x128xf32, #tpu.memory_space<vmem>>, vector<8x128xf32>
    tpu.vector_store %arg14[%c0_26, %c0_27], %48 {strides = array<i32>} : memref<8x128xf32, #tpu.memory_space<vmem>>, vector<8x128xf32>,
    %c0_28 = arith.constant 0 : index
    %c0_29 = arith.constant 0 : index
    %50 = vector.load %arg12[%c0_28, %c0_29] : memref<8x1xf32, #tpu.memory_space<vmem>>, vector<8x1xf32>
    tpu.vector_store %arg12[%c0_28, %c0_29], %30 {strides = array<i32>} : memref<8x1xf32, #tpu.memory_space<vmem>>, vector<8x1xf32>,
    %c0_i32_30 = arith.constant 0 : i32
    %51 = arith.cmpi eq, %arg1, %c0_i32_30 : i32
    %52 = arith.extui %51 : i1 to i32
    %c0_i32_31 = arith.constant 0 : i32
    %53 = arith.cmpi ne, %52, %c0_i32_31 : i32
    scf.if %53 {
      %c0_32 = arith.constant 0 : index
      %c0_33 = arith.constant 0 : index
      %54 = vector.load %arg13[%c0_32, %c0_33] : memref<8x1xf32, #tpu.memory_space<vmem>>, vector<8x1xf32>
      %cst_34 = arith.constant 9.99999968E-21 : f32
      %55 = vector.broadcast %cst_34 : f32 to vector<8x1xf32>
      %56 = arith.maximumf %54, %55 : vector<8x1xf32>
      %57 = tpu.reciprocal %56 {approx = true} : vector<8x1xf32> -> vector<8x1xf32>
      %c0_35 = arith.constant 0 : index
      %c0_36 = arith.constant 0 : index
      %58 = vector.load %arg14[%c0_35, %c0_36] : memref<8x128xf32, #tpu.memory_space<vmem>>, vector<8x128xf32>
      %59 = vector.broadcast %57 : vector<8x1xf32> to vector<8x128xf32>
      %60 = arith.mulf %58, %59 : vector<8x128xf32>
      %c0_37 = arith.constant 0 : index
      %c0_38 = arith.constant 0 : index
      %61 = vector.load %arg5[%c0_37, %c0_38] : memref<8x1xf32, #tpu.memory_space<vmem>>, vector<8x1xf32>
      %62 = vector.broadcast %61 : vector<8x1xf32> to vector<8x128xf32>
      %63 = arith.mulf %60, %62 : vector<8x128xf32>
      %c0_39 = arith.constant 0 : index
      %c0_40 = arith.constant 0 : index
      %64 = vector.load %arg11[%c0_39, %c0_40] : memref<8x128xf32, #tpu.memory_space<vmem>>, vector<8x128xf32>
      %65 = arith.addf %63, %64 : vector<8x128xf32>
      %cst_41 = arith.constant 0.000000e+00 : f32
      %66 = vector.broadcast %cst_41 : f32 to vector<8x128xf32>
      %67 = arith.maximumf %65, %66 : vector<8x128xf32>
      %68 = arith.truncf %67 : vector<8x128xf32> to vector<8x128xbf16>
      %c0_42 = arith.constant 0 : index
      %c0_43 = arith.constant 0 : index
      %69 = vector.load %arg9[%c0_42, %c0_43] : memref<8x128xbf16, #tpu.memory_space<vmem>>, vector<8x128xbf16>
      tpu.vector_store %arg9[%c0_42, %c0_43], %68 {strides = array<i32>} : memref<8x128xbf16, #tpu.memory_space<vmem>>, vector<8x128xbf16>,
    } else {
    }
    return
  }
  func.func @transform_0(%arg0: i32, %arg1: i32) -> (i32, i32) {
    %c0_i32 = arith.constant 0 : i32
    %c0_i32_0 = arith.constant 0 : i32
    return %arg0, %c0_i32 : i32, i32
  }
  func.func @transform_1(%arg0: i32, %arg1: i32) -> (i32, i32) {
    %c0_i32 = arith.constant 0 : i32
    %c0_i32_0 = arith.constant 0 : i32
    return %arg1, %c0_i32 : i32, i32
  }
  func.func @transform_2(%arg0: i32, %arg1: i32) -> (i32, i32) {
    %c0_i32 = arith.constant 0 : i32
    return %arg0, %arg1 : i32, i32
  }
  func.func @transform_3(%arg0: i32, %arg1: i32) -> (i32, i32) {
    %c0_i32 = arith.constant 0 : i32
    %c0_i32_0 = arith.constant 0 : i32
    return %arg0, %c0_i32 : i32, i32
  }
  func.func @transform_4(%arg0: i32, %arg1: i32) -> (i32, i32) {
    %c0_i32 = arith.constant 0 : i32
    %c0_i32_0 = arith.constant 0 : i32
    %c0_i32_1 = arith.constant 0 : i32
    return %c0_i32, %c0_i32_0 : i32, i32
  }
  func.func @transform_5(%arg0: i32, %arg1: i32) -> (i32, i32) {
    %c0_i32 = arith.constant 0 : i32
    %c0_i32_0 = arith.constant 0 : i32
    %c0_i32_1 = arith.constant 0 : i32
    return %c0_i32, %c0_i32_0 : i32, i32
  }
  func.func @transform_6(%arg0: i32, %arg1: i32) -> (i32, i32) {
    %c0_i32 = arith.constant 0 : i32
    %c0_i32_0 = arith.constant 0 : i32
    %c0_i32_1 = arith.constant 0 : i32
    return %c0_i32, %c0_i32_0 : i32, i32
  }
  func.func @transform_7(%arg0: i32, %arg1: i32) -> (i32, i32) {
    %c0_i32 = arith.constant 0 : i32
    %c0_i32_0 = arith.constant 0 : i32
    return %arg0, %c0_i32 : i32, i32
  }
}

</mosaic_0001>

<llo_original>
// kernel: gat_forward.2
$region0: #{gat_forward.2}
  #allocation0 [shape = 'u32[]', space=smem, size = 0x4, offset = 0x4, fixed_abs, tag = 'smem constant byte address 0x4 - core index']
  #allocation1 [shape = 'u32[144,128]{1,0:T(1,128)}', space=vmem, size = 0x12000, scoped, tag = 'internal scratch']
  #allocation2 [shape = 'f32[8,128]{1,0:T(8,128)}', space=vmem, size = 0x1000, scoped, tag = 'scratch operand']
  #allocation3 [shape = 'f32[8,128]{1,0:T(8,128)}', space=vmem, size = 0x1000, scoped, tag = 'scratch operand']
  #allocation4 [shape = 'f32[8,1]{1,0:T(8,128)}', space=vmem, size = 0x1000, scoped, tag = 'scratch operand']
  #allocation5 [shape = 'f32[8,1]{1,0:T(8,128)}', space=vmem, size = 0x1000, scoped, tag = 'scratch operand']
  #allocation6 [shape = 'f32[8,128]{1,0:T(8,128)}', space=vmem, size = 0x1000, scoped, tag = 'scratch operand']
  %s0 = inlined_call_operand.hbm [shape: bf16[24,128], index: 0, kind: input, shape index: {}, may-alias: {0,1}]
  %s1 = inlined_call_operand.hbm [shape: bf16[24,128], index: 1, kind: input, shape index: {}, may-alias: {0,1}]
  %s2 = inlined_call_operand.vmem [shape: f32[24,24], index: 2, kind: input, shape index: {}]
  %s3 = inlined_call_operand.vmem [shape: f32[24,1], index: 3, kind: input, shape index: {}]
  %s4 = inlined_call_operand.hbm [shape: bf16[128,384], index: 4, kind: input, shape index: {}]
  %s5 = inlined_call_operand.hbm [shape: f32[1,384], index: 5, kind: input, shape index: {}]
  %s6 = inlined_call_operand.hbm [shape: f32[1,128], index: 6, kind: input, shape index: {}]
  %s7 = inlined_call_operand.vmem [shape: bf16[24,128], index: 7, kind: output, shape index: {}]
  %s8 = sld [smem:[#allocation0]]
  $region89: #{gat_forward.2} parent=0
    _
  %s10 = ssub.s32 1, %s8
  %s11 = scalar_select 0, %s10, %s8
  $region1: #{gat_forward.2} parent=0
    #allocation7 [shape = 'u8[4096]{0}', space=vmem, size = 0x1000, scoped, tag = 'input window, operand 0']
    #allocation8 [shape = 's32[2]{0}', space=sflag, size = 0x8, scoped, tag = 'scoped memory for gat_forward.2']
    #allocation9 [shape = 'u8[6144]{0}', space=vmem, size = 0x1800, scoped, tag = 'input window, operand 1, single buffered']
    #allocation10 [shape = 's32[1]{0}', space=sflag, size = 0x4, scoped, tag = 'scoped memory for gat_forward.2']
    #allocation11 [shape = 'u8[98304]{0}', space=vmem, size = 0x18000, scoped, tag = 'input window, operand 4, single buffered']
    #allocation12 [shape = 'u8[1536]{0}', space=vmem, size = 0x800, scoped, tag = 'input window, operand 5, single buffered']
    #allocation13 [shape = 's32[1]{0}', space=sflag, size = 0x4, scoped, tag = 'scoped memory for gat_forward.2']
    #allocation14 [shape = 'u8[512]{0}', space=vmem, size = 0x400, scoped, tag = 'input window, operand 6, single buffered']
    %12 = vsyncpa [#allocation8], 0
    %s13 = scalar_lea.sflag [#allocation8], 1
    %14 = vsyncpa %s13, 0
    %15 = vsyncpa [#allocation10], 0
    %16 = vsyncpa [#allocation13], 0
    loop: start=0, step=1, limit=5
    $region2: #{gat_forward.2} parent=1 // loop_pre_header
      _
    $region3: #{gat_forward.2} parent=1 // loop_header
      %s18 = sphi 0, %s22
      %p19 = scmp.ge.s32.totalorder %s18, 5
      %s25 = sphi 0, %s37
      %s26 = sphi 0, %s33
      %s27 = sphi 0, %s25
      %s28 = sphi 0, %s26
      %s29 = sphi 0, %s27
      %s30 = sphi 0, %s28
      %s40 = sphi 0, %s42
      %s43 = sphi 0, %s40
      %s44 = sphi 0, %s43
      %s60 = sphi 0, %s44
      %s66 = sphi 0, %s68
      %s69 = sphi 0, %s66
      %s70 = sphi 0, %s69
      %s86 = sphi 0, %s70
      %s94 = sphi 0, %s96
      %s97 = sphi 0, %s94
      %s98 = sphi 0, %s97
      %s114 = sphi 0, %s98
      %s120 = sphi 0, %s122
      %s123 = sphi 0, %s120
      %s124 = sphi 0, %s123
      %s140 = sphi 0, %s124
      %s144 = sphi 0, %s144
      %s146 = sphi 0, %s144
      %s147 = sphi 0, %s146
      %s161 = sphi 0, %s147
      %s165 = sphi 0, %s165
      %s167 = sphi 0, %s165
      %s168 = sphi 0, %s167
      %s182 = sphi 0, %s168
      %s186 = sphi 0, %s186
      %s188 = sphi 0, %s186
      %s189 = sphi 0, %s188
      %s203 = sphi 0, %s189
      %s209 = sphi 0, %s211
      %s212 = sphi 0, %s209
      %s213 = sphi 0, %s212
      %s229 = sphi 0, %s213
    $region4: #{gat_forward.2} parent=1 // loop_header_branch
      %21 = sbr.rel (%p19) target = $region8
    $region5: #{gat_forward.2} parent=1 // loop_body
      %s23 = ssub.s32 %s18, 1
      %s24 = ssub.s32 %s18, 2
      %s31 = sadd.s32 1, %s26
      %p32 = scmp.ge.s32.totalorder %s31, 1
      %s33 = scalar_select %p32, 0, %s31
      %s34 = sadd.s32 1, %s25
      %s35 = scalar_select %p32, %s34, %s25
      %p36 = scmp.ge.s32.totalorder %s35, 3
      %s37 = scalar_select %p36, 0, %s35
      %s38 = ssub.s32 %s25, %s37
      %p39 = scmp.eq.s32.totalorder %s38, 0
      %s41 = sadd.s32 %s40, 1
      %s42 = scalar_select %p39, %s40, %s41
      %p45 = pneg %p39
      %p46 = scmp.eq.s32.totalorder %s18, 2
      %p47 = por %p45, %p46
      %p48 = scmp.ne.s32.totalorder %s40, %s43
      %p49 = scmp.eq.s32.totalorder %s18, 0
      %p50 = por %p48, %p49
      %p51 = scmp.ne.s32.totalorder %s40, %s43
      %p52 = scmp.eq.s32.totalorder %s23, 2
      %p53 = por %p51, %p52
      %p54 = scmp.ne.s32.totalorder %s43, %s44
      %p55 = scmp.eq.s32.totalorder %s23, 0
      %p56 = por %p54, %p55
      %p57 = scmp.ne.s32.totalorder %s43, %s44
      %p58 = scmp.eq.s32.totalorder %s24, 2
      %p59 = por %p57, %p58
      %p61 = scmp.ne.s32.totalorder %s44, %s60
      %p62 = scmp.eq.s32.totalorder %s24, 0
      %p63 = por %p61, %p62
      %s64 = ssub.s32 %s26, %s33
      %p65 = scmp.eq.s32.totalorder %s64, 0
      %s67 = sadd.s32 %s66, 1
      %s68 = scalar_select %p65, %s66, %s67
      %p71 = pneg %p65
      %p72 = scmp.eq.s32.totalorder %s18, 2
      %p73 = por %p71, %p72
      %p74 = scmp.ne.s32.totalorder %s66, %s69
      %p75 = scmp.eq.s32.totalorder %s18, 0
      %p76 = por %p74, %p75
      %p77 = scmp.ne.s32.totalorder %s66, %s69
      %p78 = scmp.eq.s32.totalorder %s23, 2
      %p79 = por %p77, %p78
      %p80 = scmp.ne.s32.totalorder %s69, %s70
      %p81 = scmp.eq.s32.totalorder %s23, 0
      %p82 = por %p80, %p81
      %p83 = scmp.ne.s32.totalorder %s69, %s70
      %p84 = scmp.eq.s32.totalorder %s24, 2
      %p85 = por %p83, %p84
      %p87 = scmp.ne.s32.totalorder %s70, %s86
      %p88 = scmp.eq.s32.totalorder %s24, 0
      %p89 = por %p87, %p88
      %s90 = ssub.s32 %s25, %s37
      %s91 = ssub.s32 %s26, %s33
      %s92 = sor.u32 %s90, %s91
      %p93 = scmp.eq.s32.totalorder %s92, 0
      %s95 = sadd.s32 %s94, 1
      %s96 = scalar_select %p93, %s94, %s95
      %p99 = pneg %p93
      %p100 = scmp.eq.s32.totalorder %s18, 2
      %p101 = por %p99, %p100
      %p102 = scmp.ne.s32.totalorder %s94, %s97
      %p103 = scmp.eq.s32.totalorder %s18, 0
      %p104 = por %p102, %p103
      %p105 = scmp.ne.s32.totalorder %s94, %s97
      %p106 = scmp.eq.s32.totalorder %s23, 2
      %p107 = por %p105, %p106
      %p108 = scmp.ne.s32.totalorder %s97, %s98
      %p109 = scmp.eq.s32.totalorder %s23, 0
      %p110 = por %p108, %p109
      %p111 = scmp.ne.s32.totalorder %s97, %s98
      %p112 = scmp.eq.s32.totalorder %s24, 2
      %p113 = por %p111, %p112
      %p115 = scmp.ne.s32.totalorder %s98, %s114
      %p116 = scmp.eq.s32.totalorder %s24, 0
      %p117 = por %p115, %p116
      %s118 = ssub.s32 %s25, %s37
      %p119 = scmp.eq.s32.totalorder %s118, 0
      %s121 = sadd.s32 %s120, 1
      %s122 = scalar_select %p119, %s120, %s121
      %p125 = pneg %p119
      %p126 = scmp.eq.s32.totalorder %s18, 2
      %p127 = por %p125, %p126
      %p128 = scmp.ne.s32.totalorder %s120, %s123
      %p129 = scmp.eq.s32.totalorder %s18, 0
      %p130 = por %p128, %p129
      %p131 = scmp.ne.s32.totalorder %s120, %s123
      %p132 = scmp.eq.s32.totalorder %s23, 2
      %p133 = por %p131, %p132
      %p134 = scmp.ne.s32.totalorder %s123, %s124
      %p135 = scmp.eq.s32.totalorder %s23, 0
      %p136 = por %p134, %p135
      %p137 = scmp.ne.s32.totalorder %s123, %s124
      %p138 = scmp.eq.s32.totalorder %s24, 2
      %p139 = por %p137, %p138
      %p141 = scmp.ne.s32.totalorder %s124, %s140
      %p142 = scmp.eq.s32.totalorder %s24, 0
      %p143 = por %p141, %p142
      %s145 = sadd.s32 %s144, 1
      %p148 = scmp.eq.s32.totalorder %s18, 2
      %p149 = scmp.ne.s32.totalorder %s144, %s146
      %p150 = scmp.eq.s32.totalorder %s18, 0
      %p151 = por %p149, %p150
      %p152 = scmp.ne.s32.totalorder %s144, %s146
      %p153 = scmp.eq.s32.totalorder %s23, 2
      %p154 = por %p152, %p153
      %p155 = scmp.ne.s32.totalorder %s146, %s147
      %p156 = scmp.eq.s32.totalorder %s23, 0
      %p157 = por %p155, %p156
      %p158 = scmp.ne.s32.totalorder %s146, %s147
      %p159 = scmp.eq.s32.totalorder %s24, 2
      %p160 = por %p158, %p159
      %p162 = scmp.ne.s32.totalorder %s147, %s161
      %p163 = scmp.eq.s32.totalorder %s24, 0
      %p164 = por %p162, %p163
      %s166 = sadd.s32 %s165, 1
      %p169 = scmp.eq.s32.totalorder %s18, 2
      %p170 = scmp.ne.s32.totalorder %s165, %s167
      %p171 = scmp.eq.s32.totalorder %s18, 0
      %p172 = por %p170, %p171
      %p173 = scmp.ne.s32.totalorder %s165, %s167
      %p174 = scmp.eq.s32.totalorder %s23, 2
      %p175 = por %p173, %p174
      %p176 = scmp.ne.s32.totalorder %s167, %s168
      %p177 = scmp.eq.s32.totalorder %s23, 0
      %p178 = por %p176, %p177
      %p179 = scmp.ne.s32.totalorder %s167, %s168
      %p180 = scmp.eq.s32.totalorder %s24, 2
      %p181 = por %p179, %p180
      %p183 = scmp.ne.s32.totalorder %s168, %s182
      %p184 = scmp.eq.s32.totalorder %s24, 0
      %p185 = por %p183, %p184
      %s187 = sadd.s32 %s186, 1
      %p190 = scmp.eq.s32.totalorder %s18, 2
      %p191 = scmp.ne.s32.totalorder %s186, %s188
      %p192 = scmp.eq.s32.totalorder %s18, 0
      %p193 = por %p191, %p192
      %p194 = scmp.ne.s32.totalorder %s186, %s188
      %p195 = scmp.eq.s32.totalorder %s23, 2
      %p196 = por %p194, %p195
      %p197 = scmp.ne.s32.totalorder %s188, %s189
      %p198 = scmp.eq.s32.totalorder %s23, 0
      %p199 = por %p197, %p198
      %p200 = scmp.ne.s32.totalorder %s188, %s189
      %p201 = scmp.eq.s32.totalorder %s24, 2
      %p202 = por %p200, %p201
      %p204 = scmp.ne.s32.totalorder %s189, %s203
      %p205 = scmp.eq.s32.totalorder %s24, 0
      %p206 = por %p204, %p205
      %s207 = ssub.s32 %s25, %s37
      %p208 = scmp.eq.s32.totalorder %s207, 0
      %s210 = sadd.s32 %s209, 1
      %s211 = scalar_select %p208, %s209, %s210
      %p214 = pneg %p208
      %p215 = scmp.eq.s32.totalorder %s18, 2
      %p216 = por %p214, %p215
      %p217 = scmp.ne.s32.totalorder %s209, %s212
      %p218 = scmp.eq.s32.totalorder %s18, 0
      %p219 = por %p217, %p218
      %p220 = scmp.ne.s32.totalorder %s209, %s212
      %p221 = scmp.eq.s32.totalorder %s23, 2
      %p222 = por %p220, %p221
      %p223 = scmp.ne.s32.totalorder %s212, %s213
      %p224 = scmp.eq.s32.totalorder %s23, 0
      %p225 = por %p223, %p224
      %p226 = scmp.ne.s32.totalorder %s212, %s213
      %p227 = scmp.eq.s32.totalorder %s24, 2
      %p228 = por %p226, %p227
      %p230 = scmp.ne.s32.totalorder %s213, %s229
      %p231 = scmp.eq.s32.totalorder %s24, 0
      %p232 = por %p230, %p231
      %p233 = scmp.le.s32.totalorder 1, %s18
      %p234 = scmp.lt.s32.totalorder %s18, 4
      %p235 = pnand %p233, %p234
      %p236 = pneg %p235
      // Predicated region
      $region9: #{gat_forward.2} parent=5 // pred_check
        _
      $region10: #{gat_forward.2} parent=5 // pred_check_branch
        %238 = sbr.rel (%p235) target = $region12
      $region11: #{gat_forward.2} parent=5 // pred_region
        %s239 = ssub.s32 %s18, 1
        // Predicated region
        $region13: #{gat_forward.2} parent=11 // pred_check
          %p240 = pneg %p82
        $region14: #{gat_forward.2} parent=11 // pred_check_branch
          %242 = sbr.rel (%p240) target = $region16
        $region15: #{gat_forward.2} parent=11 // pred_region
          %s243 = smul.u32 3, %s28
          %s245 = ssub.s32 192, 192
          %246 = vsyncadd [#allocation10], %s245
          %s247 = smul.addr %s243, 64
          %s248 = scalar_lea.hbm %s1, %s247
          %s249 = sshll.u32 [#allocation9], 4
          %s250 = int_to_ptr.vmem [resolvable:$true] %s249
          %255 = dma.hbm_to_vmem [thread:$0]  %s248, 192, %s250, [#allocation10], 64, 64, 4
        $region16: #{gat_forward.2} parent=11 // pred_fallthru
          _
        // Predicated region
        $region17: #{gat_forward.2} parent=11 // pred_check
          %p256 = pneg %p157
        $region18: #{gat_forward.2} parent=11 // pred_check_branch
          %258 = sbr.rel (%p256) target = $region20
        $region19: #{gat_forward.2} parent=11 // pred_region
          %s260 = ssub.s32 3072, 3072
          %261 = vsyncadd [#allocation10], %s260
          %s262 = sshll.u32 [#allocation11], 4
          %s263 = int_to_ptr.vmem [resolvable:$true] %s262
          %268 = dma.hbm_to_vmem [thread:$0]  %s4, 3072, %s263, [#allocation10], 192, 192, 12
        $region20: #{gat_forward.2} parent=11 // pred_fallthru
          _
        // Predicated region
        $region21: #{gat_forward.2} parent=11 // pred_check
          %p269 = pneg %p178
        $region22: #{gat_forward.2} parent=11 // pred_check_branch
          %271 = sbr.rel (%p269) target = $region24
        $region23: #{gat_forward.2} parent=11 // pred_region
          %s273 = ssub.s32 48, 48
          %274 = vsyncadd [#allocation13], %s273
          %s276 = sshll.u32 [#allocation12], 4
          %s277 = int_to_ptr.vmem [resolvable:$true] %s276
          %279 = dma.hbm_to_vmem [thread:$0]  %s5, 48, %s277, [#allocation13]
        $region24: #{gat_forward.2} parent=11 // pred_fallthru
          _
        // Predicated region
        $region25: #{gat_forward.2} parent=11 // pred_check
          %p280 = pneg %p199
        $region26: #{gat_forward.2} parent=11 // pred_check_branch
          %282 = sbr.rel (%p280) target = $region28
        $region27: #{gat_forward.2} parent=11 // pred_region
          %s284 = ssub.s32 16, 16
          %285 = vsyncadd [#allocation13], %s284
          %s287 = sshll.u32 [#allocation14], 4
          %s288 = int_to_ptr.vmem [resolvable:$true] %s287
          %290 = dma.hbm_to_vmem [thread:$0]  %s6, 16, %s288, [#allocation13]
        $region28: #{gat_forward.2} parent=11 // pred_fallthru
          _
      $region12: #{gat_forward.2} parent=5 // pred_fallthru
        _
      %p291 = scmp.lt.s32.totalorder %s18, 3
      // Predicated region
      $region29: #{gat_forward.2} parent=5 // pred_check
        %p292 = pneg %p291
      $region30: #{gat_forward.2} parent=5 // pred_check_branch
        %294 = sbr.rel (%p292) target = $region32
      $region31: #{gat_forward.2} parent=5 // pred_region
        // Predicated region
        $region33: #{gat_forward.2} parent=31 // pred_check
          %p295 = pneg %p50
        $region34: #{gat_forward.2} parent=31 // pred_check_branch
          %297 = sbr.rel (%p295) target = $region36
        $region35: #{gat_forward.2} parent=31 // pred_region
          %s298 = sand.u32 %s40, 1
          %s299 = scalar_lea.sflag [#allocation8], %s298
          %s300 = sand.u32 %s40, 1
          %s301 = smul.addr %s300, 4
          %s302 = scalar_lea.vmem [#allocation7], %s301
          %s304 = ssub.s32 64, 64
          %305 = vsyncadd %s299, %s304
          %s306 = smul.addr %s25, 64
          %s307 = scalar_lea.hbm %s0, %s306
          %s309 = sshll.u32 %s302, 4
          %s310 = int_to_ptr.vmem [resolvable:$true] %s309
          %312 = dma.hbm_to_vmem [thread:$0]  %s307, 64, %s310, %s299
        $region36: #{gat_forward.2} parent=31 // pred_fallthru
          _
        // Predicated region
        $region37: #{gat_forward.2} parent=31 // pred_check
          %p313 = pneg %p104
        $region38: #{gat_forward.2} parent=31 // pred_check_branch
          %315 = sbr.rel (%p313) target = $region40
        $region39: #{gat_forward.2} parent=31 // pred_region
          %p316 = scmp.lt.s32.totalorder %s25, 2
          %s317 = scalar_select %p316, %s25, 2
          %p318 = scmp.lt.s32.totalorder %s26, 0
          %s319 = scalar_select %p318, %s26, 0
          %s320 = sadd.s32 %s319, %s317
          %s321 = smul.addr %s320, 8
          %s322 = scalar_lea.vmem %s2, %s321
        $region40: #{gat_forward.2} parent=31 // pred_fallthru
          _
        // Predicated region
        $region41: #{gat_forward.2} parent=31 // pred_check
          %p323 = pneg %p130
        $region42: #{gat_forward.2} parent=31 // pred_check_branch
          %325 = sbr.rel (%p323) target = $region44
        $region43: #{gat_forward.2} parent=31 // pred_region
          %p326 = scmp.lt.s32.totalorder %s25, 2
          %s327 = scalar_select %p326, %s25, 2
          %s328 = smul.addr %s327, 8
          %s329 = scalar_lea.vmem %s3, %s328
        $region44: #{gat_forward.2} parent=31 // pred_fallthru
          _
      $region32: #{gat_forward.2} parent=5 // pred_fallthru
        _
      %p330 = scmp.le.s32.totalorder 1, %s18
      %p331 = scmp.lt.s32.totalorder %s18, 4
      %p332 = pnand %p330, %p331
      %p333 = pneg %p332
      // Predicated region
      $region45: #{gat_forward.2} parent=5 // pred_check
        _
      $region46: #{gat_forward.2} parent=5 // pred_check_branch
        %335 = sbr.rel (%p332) target = $region48
      $region47: #{gat_forward.2} parent=5 // pred_region
        %s336 = ssub.s32 %s18, 1
        %s337 = sand.u32 %s43, 1
        %s338 = scalar_lea.sflag [#allocation8], %s337
        %s339 = sand.u32 %s43, 1
        %s340 = smul.addr %s339, 4
        %s341 = scalar_lea.vmem [#allocation7], %s340
        // Predicated region
        $region49: #{gat_forward.2} parent=47 // pred_check
          %p342 = pneg %p56
        $region50: #{gat_forward.2} parent=47 // pred_check_branch
          %344 = sbr.rel (%p342) target = $region52
        $region51: #{gat_forward.2} parent=47 // pred_region
          %345 = dma.done %s338, 64
        $region52: #{gat_forward.2} parent=47 // pred_fallthru
          _
        // Predicated region
        $region53: #{gat_forward.2} parent=47 // pred_check
          %p346 = pneg %p82
        $region54: #{gat_forward.2} parent=47 // pred_check_branch
          %348 = sbr.rel (%p346) target = $region56
        $region55: #{gat_forward.2} parent=47 // pred_region
          %349 = dma.done [#allocation10], 192
        $region56: #{gat_forward.2} parent=47 // pred_fallthru
          _
        // Predicated region
        $region57: #{gat_forward.2} parent=47 // pred_check
          %p350 = pneg %p157
        $region58: #{gat_forward.2} parent=47 // pred_check_branch
          %352 = sbr.rel (%p350) target = $region60
        $region59: #{gat_forward.2} parent=47 // pred_region
          %353 = dma.done [#allocation10], 3072
        $region60: #{gat_forward.2} parent=47 // pred_fallthru
          _
        // Predicated region
        $region61: #{gat_forward.2} parent=47 // pred_check
          %p354 = pneg %p178
        $region62: #{gat_forward.2} parent=47 // pred_check_branch
          %356 = sbr.rel (%p354) target = $region64
        $region63: #{gat_forward.2} parent=47 // pred_region
          %357 = dma.done [#allocation13], 48
        $region64: #{gat_forward.2} parent=47 // pred_fallthru
          _
        // Predicated region
        $region65: #{gat_forward.2} parent=47 // pred_check
          %p358 = pneg %p199
        $region66: #{gat_forward.2} parent=47 // pred_check_branch
          %360 = sbr.rel (%p358) target = $region68
        $region67: #{gat_forward.2} parent=47 // pred_region
          %361 = dma.done [#allocation13], 16
        $region68: #{gat_forward.2} parent=47 // pred_fallthru
          _
        %s362 = sand.u32 %s43, 1
        %s363 = scalar_lea.sflag [#allocation8], %s362
        %s364 = sand.u32 %s43, 1
        %s365 = smul.addr %s364, 4
        %s366 = scalar_lea.vmem [#allocation7], %s365
        %p367 = pneg %p56
        %p368 = pneg %p53
        %p369 = pneg %p82
        %p370 = pneg %p79
        %p371 = scmp.lt.s32.totalorder %s27, 2
        %s372 = scalar_select %p371, %s27, 2
        %p373 = scmp.lt.s32.totalorder %s28, 0
        %s374 = scalar_select %p373, %s28, 0
        %s375 = sadd.s32 %s374, %s372
        %s376 = smul.addr %s375, 8
        %s377 = scalar_lea.vmem %s2, %s376
        %p378 = pneg %p110
        %p379 = pneg %p107
        %p380 = scmp.lt.s32.totalorder %s27, 2
        %s381 = scalar_select %p380, %s27, 2
        %s382 = smul.addr %s381, 8
        %s383 = scalar_lea.vmem %s3, %s382
        %p384 = pneg %p136
        %p385 = pneg %p133
        %p386 = pneg %p157
        %p387 = pneg %p154
        %p388 = pneg %p178
        %p389 = pneg %p175
        %p390 = pneg %p199
        %p391 = pneg %p196
        %p392 = pneg %p225
        %p393 = pneg %p222
        %p394 = scmp.lt.s32.totalorder %s27, 2
        %s395 = scalar_select %p394, %s27, 2
        %s396 = smul.addr %s395, 4
        %s397 = scalar_lea.vmem %s7, %s396
        %s398 = smul.u32 3, %s28
        %p399 = scmp.lt.s32.totalorder %s27, 2
        %s400 = scalar_select %p399, %s27, 2
        %p401 = scmp.lt.s32.totalorder %s28, 0
        %s402 = scalar_select %p401, %s28, 0
        %s403 = sadd.s32 %s402, %s400
        %s404 = smul.addr %s403, 8
        %s405 = scalar_lea.vmem %s2, %s404
        %p406 = scmp.lt.s32.totalorder %s27, 2
        %s407 = scalar_select %p406, %s27, 2
        %s408 = smul.addr %s407, 8
        %s409 = scalar_lea.vmem %s3, %s408
        %p410 = scmp.lt.s32.totalorder %s27, 2
        %s411 = scalar_select %p410, %s27, 2
        %s412 = smul.addr %s411, 4
        %s413 = scalar_lea.vmem %s7, %s412
        %p415 = scmp.eq.s32.totalorder %s28, 0
        // Predicated region
        $region69: #{gat_forward.2} parent=47 // pred_check
          %p416 = pneg %p415
        $region70: #{gat_forward.2} parent=47 // pred_check_branch
          %418 = sbr.rel (%p416) target = $region72
        $region71: #{gat_forward.2} parent=47 // pred_region
          %v419 = vld [vmem:[%s341] sm:$0xf]
          %v420 = vld [vmem:[#allocation11] sm:$0xff]
          %v421 = vld [vmem:[#allocation11 + $0x8] sm:$0xf]
          %v422 = vld [vmem:[#allocation11 + $0xc] sm:$0xff]
          %v423 = vld [vmem:[#allocation11 + $0x14] sm:$0xf]
          %v424 = vld [vmem:[#allocation11 + $0x18] sm:$0xff]
          %v425 = vld [vmem:[#allocation11 + $0x20] sm:$0xf]
          %v426 = vld [vmem:[#allocation11 + $0x24] sm:$0xff]
          %v427 = vld [vmem:[#allocation11 + $0x2c] sm:$0xf]
          %v428 = vld [vmem:[#allocation11 + $0x30] sm:$0xff]
          %v429 = vld [vmem:[#allocation11 + $0x38] sm:$0xf]
          %v430 = vld [vmem:[#allocation11 + $0x3c] sm:$0xff]
          %v431 = vld [vmem:[#allocation11 + $0x44] sm:$0xf]
          %v432 = vld [vmem:[#allocation11 + $0x48] sm:$0xff]
          %v433 = vld [vmem:[#allocation11 + $0x50] sm:$0xf]
          %v434 = vld [vmem:[#allocation11 + $0x54] sm:$0xff]
          %v435 = vld [vmem:[#allocation11 + $0x5c] sm:$0xf]
          %v436 = vld [vmem:[#allocation11 + $0x60] sm:$0xff]
          %v437 = vld [vmem:[#allocation11 + $0x68] sm:$0xf]
          %v438 = vld [vmem:[#allocation11 + $0x6c] sm:$0xff]
          %v439 = vld [vmem:[#allocation11 + $0x74] sm:$0xf]
          %v440 = vld [vmem:[#allocation11 + $0x78] sm:$0xff]
          %v441 = vld [vmem:[#allocation11 + $0x80] sm:$0xf]
          %v442 = vld [vmem:[#allocation11 + $0x84] sm:$0xff]
          %v443 = vld [vmem:[#allocation11 + $0x8c] sm:$0xf]
          %v444 = vld [vmem:[#allocation11 + $0x90] sm:$0xff]
          %v445 = vld [vmem:[#allocation11 + $0x98] sm:$0xf]
          %v446 = vld [vmem:[#allocation11 + $0x9c] sm:$0xff]
          %v447 = vld [vmem:[#allocation11 + $0xa4] sm:$0xf]
          %v448 = vld [vmem:[#allocation11 + $0xa8] sm:$0xff]
          %v449 = vld [vmem:[#allocation11 + $0xb0] sm:$0xf]
          %v450 = vld [vmem:[#allocation11 + $0xb4] sm:$0xff]
          %v451 = vld [vmem:[#allocation11 + $0xbc] sm:$0xf]
          %v452 = vld [vmem:[#allocation12] sm:$0x7]
          %v454 = vlaneseq
          %v455 = vshrl.u32 %v454, 7
          %v456 = vsub.s32 1, %v455
          %v457 = vrot.slane %v452, %v456
          %v458 = vlaneseq
          %v459 = vshrl.u32 %v458, 7
          %v460 = vsub.s32 2, %v459
          %v461 = vrot.slane %v452, %v460
          %v496 = vunpack.c.l.b16 %v420
          %v497 = vunpack.c.h.b16 %v420
          %v498 = vunpack.c.l.b16 %v421
          %v499 = vunpack.c.l.b16 %v422
          %v500 = vunpack.c.h.b16 %v422
          %v501 = vunpack.c.l.b16 %v423
          %v502 = vunpack.c.l.b16 %v424
          %v503 = vunpack.c.h.b16 %v424
          %v504 = vunpack.c.l.b16 %v425
          %v505 = vunpack.c.l.b16 %v426
          %v506 = vunpack.c.h.b16 %v426
          %v507 = vunpack.c.l.b16 %v427
          %v508 = vunpack.c.l.b16 %v428
          %v509 = vunpack.c.h.b16 %v428
          %v510 = vunpack.c.l.b16 %v429
          %v511 = vunpack.c.l.b16 %v430
          %v512 = vunpack.c.h.b16 %v430
          %v513 = vunpack.c.l.b16 %v431
          %v514 = vunpack.c.l.b16 %v432
          %v515 = vunpack.c.h.b16 %v432
          %v516 = vunpack.c.l.b16 %v433
          %v517 = vunpack.c.l.b16 %v434
          %v518 = vunpack.c.h.b16 %v434
          %v519 = vunpack.c.l.b16 %v435
          %v520 = vunpack.c.l.b16 %v436
          %v521 = vunpack.c.h.b16 %v436
          %v522 = vunpack.c.l.b16 %v437
          %v523 = vunpack.c.l.b16 %v438
          %v524 = vunpack.c.h.b16 %v438
          %v525 = vunpack.c.l.b16 %v439
          %v526 = vunpack.c.l.b16 %v440
          %v527 = vunpack.c.h.b16 %v440
          %v528 = vunpack.c.l.b16 %v441
          %v529 = vunpack.c.l.b16 %v442
          %v530 = vunpack.c.h.b16 %v442
          %v531 = vunpack.c.l.b16 %v443
          %v532 = vunpack.c.l.b16 %v444
          %v533 = vunpack.c.h.b16 %v444
          %v534 = vunpack.c.l.b16 %v445
          %v535 = vunpack.c.l.b16 %v446
          %v536 = vunpack.c.h.b16 %v446
          %v537 = vunpack.c.l.b16 %v447
          %v538 = vunpack.c.l.b16 %v448
          %v539 = vunpack.c.h.b16 %v448
          %v540 = vunpack.c.l.b16 %v449
          %v541 = vunpack.c.l.b16 %v450
          %v542 = vunpack.c.h.b16 %v450
          %v543 = vunpack.c.l.b16 %v451
          %v544 = vpack.c.b16 %v499, %v496
          %v545 = vpack.c.b16 %v500, %v497
          %v546 = vpack.c.b16 %v501, %v498
          %v547 = vpack.c.b16 %v505, %v502
          %v548 = vpack.c.b16 %v506, %v503
          %v549 = vpack.c.b16 %v507, %v504
          %v550 = vpack.c.b16 %v511, %v508
          %v551 = vpack.c.b16 %v512, %v509
          %v552 = vpack.c.b16 %v513, %v510
          %v553 = vpack.c.b16 %v517, %v514
          %v554 = vpack.c.b16 %v518, %v515
          %v555 = vpack.c.b16 %v519, %v516
          %v556 = vpack.c.b16 %v523, %v520
          %v557 = vpack.c.b16 %v524, %v521
          %v558 = vpack.c.b16 %v525, %v522
          %v559 = vpack.c.b16 %v529, %v526
          %v560 = vpack.c.b16 %v530, %v527
          %v561 = vpack.c.b16 %v531, %v528
          %v562 = vpack.c.b16 %v535, %v532
          %v563 = vpack.c.b16 %v536, %v533
          %v564 = vpack.c.b16 %v537, %v534
          %v565 = vpack.c.b16 %v541, %v538
          %v566 = vpack.c.b16 %v542, %v539
          %v567 = vpack.c.b16 %v543, %v540
          %592 = vmatprep.subr.bf16.mxu0 %v545
          %593 = vmatpush1.bf16.msra.mxu0 %v544
          %594 = vmatprep.subr.bf16.mxu0 %v548
          %595 = vmatpush1.bf16.msra.mxu0 %v547
          %596 = vmatprep.subr.bf16.mxu0 %v551
          %597 = vmatpush1.bf16.msra.mxu0 %v550
          %598 = vmatprep.subr.bf16.mxu0 %v554
          %599 = vmatpush1.bf16.msra.mxu0 %v553
          %600 = vmatprep.subr.bf16.mxu0 %v557
          %601 = vmatpush1.bf16.msra.mxu0 %v556
          %602 = vmatprep.subr.bf16.mxu0 %v560
          %603 = vmatpush1.bf16.msra.mxu0 %v559
          %604 = vmatprep.subr.bf16.mxu0 %v563
          %605 = vmatpush1.bf16.msra.mxu0 %v562
          %606 = vmatprep.subr.bf16.mxu0 %v566
          %607 = vmatpush1.bf16.msra.mxu0 %v565
          %608 = vmatprep.subr.bf16.mxu0 0
          %609 = vmatpush1.bf16.msra.mxu0 0
          %610 = vmatprep.subr.bf16.mxu0 0
          %611 = vmatpush1.bf16.msra.mxu0 0
          %612 = vmatprep.subr.bf16.mxu0 0
          %613 = vmatpush1.bf16.msra.mxu0 0
          %614 = vmatprep.subr.bf16.mxu0 0
          %615 = vmatpush1.bf16.msra.mxu0 0
          %616 = vmatprep.subr.bf16.mxu0 0
          %617 = vmatpush1.bf16.msra.mxu0 0
          %618 = vmatprep.subr.bf16.mxu0 0
          %619 = vmatpush1.bf16.msra.mxu0 0
          %620 = vmatprep.subr.bf16.mxu0 0
          %621 = vmatpush1.bf16.msra.mxu0 0
          %622 = vmatprep.subr.bf16.mxu0 0
          %623 = vmatpush1.bf16.msra.mxu0 0
          %624 = vmatprep.mubr.bf16.mxu0 0
          %625 = vmatmul.mubr.bf16.gmra.mrb[0].mxu0 %v419
          %v626 = vpop.f32.mrb[0].mxu0
          %v627 = vpop.f32.mrb[0].mxu0
          %v628 = vadd.f32 %v457, %v627
          %v629 = vpop.f32.mrb[0].mxu0
          %v630 = vpop.f32.mrb[0].mxu0
          %631 = vdwg.mxu0
          %632 = vmatprep.subr.bf16.mxu0 0
          %633 = vmatpush1.bf16.msra.mxu0 %v546
          %634 = vmatprep.subr.bf16.mxu0 0
          %635 = vmatpush1.bf16.msra.mxu0 %v549
          %636 = vmatprep.subr.bf16.mxu0 0
          %637 = vmatpush1.bf16.msra.mxu0 %v552
          %638 = vmatprep.subr.bf16.mxu0 0
          %639 = vmatpush1.bf16.msra.mxu0 %v555
          %640 = vmatprep.subr.bf16.mxu0 0
          %641 = vmatpush1.bf16.msra.mxu0 %v558
          %642 = vmatprep.subr.bf16.mxu0 0
          %643 = vmatpush1.bf16.msra.mxu0 %v561
          %644 = vmatprep.subr.bf16.mxu0 0
          %645 = vmatpush1.bf16.msra.mxu0 %v564
          %646 = vmatprep.subr.bf16.mxu0 0
          %647 = vmatpush1.bf16.msra.mxu0 %v567
          %648 = vmatprep.subr.bf16.mxu0 0
          %649 = vmatpush1.bf16.msra.mxu0 0
          %650 = vmatprep.subr.bf16.mxu0 0
          %651 = vmatpush1.bf16.msra.mxu0 0
          %652 = vmatprep.subr.bf16.mxu0 0
          %653 = vmatpush1.bf16.msra.mxu0 0
          %654 = vmatprep.subr.bf16.mxu0 0
          %655 = vmatpush1.bf16.msra.mxu0 0
          %656 = vmatprep.subr.bf16.mxu0 0
          %657 = vmatpush1.bf16.msra.mxu0 0
          %658 = vmatprep.subr.bf16.mxu0 0
          %659 = vmatpush1.bf16.msra.mxu0 0
          %660 = vmatprep.subr.bf16.mxu0 0
          %661 = vmatpush1.bf16.msra.mxu0 0
          %662 = vmatprep.subr.bf16.mxu0 0
          %663 = vmatpush1.bf16.msra.mxu0 0
          %664 = vmatprep.mubr.bf16.mxu0 0
          %665 = vmatmul.mubr.bf16.gmra.mrb[0].mxu0 %v419
          %v666 = vpop.f32.mrb[0].mxu0
          %v667 = vadd.f32 %v461, %v666
          %v668 = vpop.f32.mrb[0].mxu0
          %v669 = vpop.f32.mrb[0].mxu0
          %v670 = vpop.f32.mrb[0].mxu0
          %671 = vdwg.mxu0
          %672 = vst [vmem:[#allocation2] sm:$0xff] %v628
          %673 = vst [vmem:[#allocation3] sm:$0xff] %v667
          %vm674 = vcmask 7168
          %675 = vst.msk [vmem:[#allocation4] sm:$0xff] %vm674, -inf
          %676 = vst.msk [vmem:[#allocation5] sm:$0xff] %vm674, 0.0
          %677 = vst [vmem:[#allocation6] sm:$0xff] 0.0
        $region72: #{gat_forward.2} parent=47 // pred_fallthru
          _
        %v678 = vld [vmem:[#allocation9] sm:$0xf]
        %v679 = vld [vmem:[#allocation9 + $0x4] sm:$0xf]
        %v680 = vld [vmem:[#allocation9 + $0x8] sm:$0xf]
        %v681 = vld [vmem:[#allocation11] sm:$0xf]
        %v682 = vld [vmem:[#allocation11 + $0xc] sm:$0xf]
        %v683 = vld [vmem:[#allocation11 + $0x18] sm:$0xf]
        %v684 = vld [vmem:[#allocation11 + $0x24] sm:$0xf]
        %v685 = vld [vmem:[#allocation11 + $0x30] sm:$0xf]
        %v686 = vld [vmem:[#allocation11 + $0x3c] sm:$0xf]
        %v687 = vld [vmem:[#allocation11 + $0x48] sm:$0xf]
        %v688 = vld [vmem:[#allocation11 + $0x54] sm:$0xf]
        %v689 = vld [vmem:[#allocation11 + $0x60] sm:$0xf]
        %v690 = vld [vmem:[#allocation11 + $0x6c] sm:$0xf]
        %v691 = vld [vmem:[#allocation11 + $0x78] sm:$0xf]
        %v692 = vld [vmem:[#allocation11 + $0x84] sm:$0xf]
        %v693 = vld [vmem:[#allocation11 + $0x90] sm:$0xf]
        %v694 = vld [vmem:[#allocation11 + $0x9c] sm:$0xf]
        %v695 = vld [vmem:[#allocation11 + $0xa8] sm:$0xf]
        %v696 = vld [vmem:[#allocation11 + $0xb4] sm:$0xf]
        %v697 = vld [vmem:[#allocation12] sm:$0x1]
        %v699 = vlaneseq
        %v700 = vshrl.u32 %v699, 7
        %v701 = vsub.s32 0, %v700
        %v702 = vrot.slane %v697, %v701
        %v707 = vunpack.c.l.b16 %v678
        %v708 = vunpack.c.l.b16 %v679
        %v709 = vunpack.c.l.b16 %v680
        %v710 = vpack.c.b16 %v708, %v707
        %v711 = vpack.c.b16 %v709, %v709
        %v730 = vunpack.c.l.b16 %v681
        %v731 = vunpack.c.l.b16 %v682
        %v732 = vunpack.c.l.b16 %v683
        %v733 = vunpack.c.l.b16 %v684
        %v734 = vunpack.c.l.b16 %v685
        %v735 = vunpack.c.l.b16 %v686
        %v736 = vunpack.c.l.b16 %v687
        %v737 = vunpack.c.l.b16 %v688
        %v738 = vunpack.c.l.b16 %v689
        %v739 = vunpack.c.l.b16 %v690
        %v740 = vunpack.c.l.b16 %v691
        %v741 = vunpack.c.l.b16 %v692
        %v742 = vunpack.c.l.b16 %v693
        %v743 = vunpack.c.l.b16 %v694
        %v744 = vunpack.c.l.b16 %v695
        %v745 = vunpack.c.l.b16 %v696
        %v746 = vpack.c.b16 %v731, %v730
        %v747 = vpack.c.b16 %v733, %v732
        %v748 = vpack.c.b16 %v735, %v734
        %v749 = vpack.c.b16 %v737, %v736
        %v750 = vpack.c.b16 %v739, %v738
        %v751 = vpack.c.b16 %v741, %v740
        %v752 = vpack.c.b16 %v743, %v742
        %v753 = vpack.c.b16 %v745, %v744
        %762 = vmatprep.subr.bf16.mxu0 0
        %763 = vmatpush1.bf16.msra.mxu0 %v746
        %764 = vmatprep.subr.bf16.mxu0 0
        %765 = vmatpush1.bf16.msra.mxu0 %v747
        %766 = vmatprep.subr.bf16.mxu0 0
        %767 = vmatpush1.bf16.msra.mxu0 %v748
        %768 = vmatprep.subr.bf16.mxu0 0
        %769 = vmatpush1.bf16.msra.mxu0 %v749
        %770 = vmatprep.subr.bf16.mxu0 0
        %771 = vmatpush1.bf16.msra.mxu0 %v750
        %772 = vmatprep.subr.bf16.mxu0 0
        %773 = vmatpush1.bf16.msra.mxu0 %v751
        %774 = vmatprep.subr.bf16.mxu0 0
        %775 = vmatpush1.bf16.msra.mxu0 %v752
        %776 = vmatprep.subr.bf16.mxu0 0
        %777 = vmatpush1.bf16.msra.mxu0 %v753
        %778 = vmatprep.subr.bf16.mxu0 0
        %779 = vmatpush1.bf16.msra.mxu0 0
        %780 = vmatprep.subr.bf16.mxu0 0
        %781 = vmatpush1.bf16.msra.mxu0 0
        %782 = vmatprep.subr.bf16.mxu0 0
        %783 = vmatpush1.bf16.msra.mxu0 0
        %784 = vmatprep.subr.bf16.mxu0 0
        %785 = vmatpush1.bf16.msra.mxu0 0
        %786 = vmatprep.subr.bf16.mxu0 0
        %787 = vmatpush1.bf16.msra.mxu0 0
        %788 = vmatprep.subr.bf16.mxu0 0
        %789 = vmatpush1.bf16.msra.mxu0 0
        %790 = vmatprep.subr.bf16.mxu0 0
        %791 = vmatpush1.bf16.msra.mxu0 0
        %792 = vmatprep.subr.bf16.mxu0 0
        %793 = vmatpush1.bf16.msra.mxu0 0
        %794 = vmatprep.mubr.bf16.mxu0 0
        %795 = vmatmul.mubr.bf16.gmra.mrb[0].mxu0 %v710
        %v796 = vpop.f32.mrb[0].mxu0
        %v797 = vadd.f32 %v702, %v796
        %v798 = vpop.f32.mrb[0].mxu0
        %v799 = vpop.f32.mrb[0].mxu0
        %v800 = vadd.f32 %v702, %v799
        %v801 = vpop.f32.mrb[0].mxu0
        %802 = vmatprep.mubr.bf16.mxu0 0
        %803 = vmatmul.mubr.bf16.gmra.mrb[0].mxu0 %v711
        %v804 = vpop.f32.mrb[0].mxu0
        %v805 = vadd.f32 %v702, %v804
        %v806 = vpop.f32.mrb[0].mxu0
        %v807 = vpop.f32.mrb[0].mxu0
        %v808 = vpop.f32.mrb[0].mxu0
        %809 = vdwg.mxu0
        %v810 = vld [vmem:[#allocation2] sm:$0xff]
        %v812 = vcombine.high %v810, %v810
        %v814 = vunpack.c.l.s4 1966171168
        %v815 = vunpack.c.0.s8 %v814
        %v816 = vlaneseq
        %v817 = vshrl.u32 %v816, 7
        %v818 = vsub.s32 %v815, %v817
        %v819 = vrot.slane %v810, %v818
        %v821 = vunpack.c.l.s4 1966171168
        %v822 = vunpack.c.0.s8 %v821
        %v823 = vlaneseq
        %v824 = vshrl.u32 %v823, 7
        %v825 = vsub.s32 %v822, %v824
        %v826 = vrot.slane %v812, %v825
        %v827 = vcombine.high %v819, %v819
        %v828 = vcombine.high %v826, %v826
        %v830 = vunpack.c.l.s4 1966171168
        %v831 = vunpack.c.0.s8 %v830
        %v832 = vlaneseq
        %v833 = vshrl.u32 %v832, 7
        %v834 = vsub.s32 %v831, %v833
        %v835 = vrot.slane %v819, %v834
        %v837 = vunpack.c.l.s4 1966171168
        %v838 = vunpack.c.0.s8 %v837
        %v839 = vlaneseq
        %v840 = vshrl.u32 %v839, 7
        %v841 = vsub.s32 %v838, %v840
        %v842 = vrot.slane %v826, %v841
        %v844 = vunpack.c.l.s4 1966171168
        %v845 = vunpack.c.0.s8 %v844
        %v846 = vlaneseq
        %v847 = vshrl.u32 %v846, 7
        %v848 = vsub.s32 %v845, %v847
        %v849 = vrot.slane %v827, %v848
        %v851 = vunpack.c.l.s4 1966171168
        %v852 = vunpack.c.0.s8 %v851
        %v853 = vlaneseq
        %v854 = vshrl.u32 %v853, 7
        %v855 = vsub.s32 %v852, %v854
        %v856 = vrot.slane %v828, %v855
        %v857 = vcombine.high %v835, %v835
        %v858 = vcombine.high %v842, %v842
        %v859 = vcombine.high %v849, %v849
        %v860 = vcombine.high %v856, %v856
        %v861 = vlaneseq
        %v862 = vshrl.u32 %v861, 7
        %v863 = vsub.s32 0, %v862
        %v864 = vrot.slane %v835, %v863
        %v865 = vlaneseq
        %v866 = vshrl.u32 %v865, 7
        %v867 = vsub.s32 0, %v866
        %v868 = vrot.slane %v849, %v867
        %v869 = vlaneseq
        %v870 = vshrl.u32 %v869, 7
        %v871 = vsub.s32 0, %v870
        %v872 = vrot.slane %v857, %v871
        %v873 = vlaneseq
        %v874 = vshrl.u32 %v873, 7
        %v875 = vsub.s32 0, %v874
        %v876 = vrot.slane %v859, %v875
        %v877 = vlaneseq
        %v878 = vshrl.u32 %v877, 7
        %v879 = vsub.s32 0, %v878
        %v880 = vrot.slane %v842, %v879
        %v881 = vlaneseq
        %v882 = vshrl.u32 %v881, 7
        %v883 = vsub.s32 0, %v882
        %v884 = vrot.slane %v856, %v883
        %v885 = vlaneseq
        %v886 = vshrl.u32 %v885, 7
        %v887 = vsub.s32 0, %v886
        %v888 = vrot.slane %v858, %v887
        %v889 = vlaneseq
        %v890 = vshrl.u32 %v889, 7
        %v891 = vsub.s32 0, %v890
        %v892 = vrot.slane %v860, %v891
        %v901 = vadd.f32 %v797, %v864
        %v902 = vadd.f32 %v800, %v864
        %v903 = vadd.f32 %v805, %v864
        %v904 = vadd.f32 %v797, %v868
        %v905 = vadd.f32 %v800, %v868
        %v906 = vadd.f32 %v805, %v868
        %v907 = vadd.f32 %v797, %v872
        %v908 = vadd.f32 %v800, %v872
        %v909 = vadd.f32 %v805, %v872
        %v910 = vadd.f32 %v797, %v876
        %v911 = vadd.f32 %v800, %v876
        %v912 = vadd.f32 %v805, %v876
        %v913 = vadd.f32 %v797, %v880
        %v914 = vadd.f32 %v800, %v880
        %v915 = vadd.f32 %v805, %v880
        %v916 = vadd.f32 %v797, %v884
        %v917 = vadd.f32 %v800, %v884
        %v918 = vadd.f32 %v805, %v884
        %v919 = vadd.f32 %v797, %v888
        %v920 = vadd.f32 %v800, %v888
        %v921 = vadd.f32 %v805, %v888
        %v922 = vadd.f32 %v797, %v892
        %v923 = vadd.f32 %v800, %v892
        %v924 = vadd.f32 %v805, %v892
        %vm925 = vcmp.gt.f32.partialorder %v901, 0.0
        %vm926 = vcmp.gt.f32.partialorder %v902, 0.0
        %vm927 = vcmp.gt.f32.partialorder %v903, 0.0
        %vm928 = vcmp.gt.f32.partialorder %v904, 0.0
        %vm929 = vcmp.gt.f32.partialorder %v905, 0.0
        %vm930 = vcmp.gt.f32.partialorder %v906, 0.0
        %vm931 = vcmp.gt.f32.partialorder %v907, 0.0
        %vm932 = vcmp.gt.f32.partialorder %v908, 0.0
        %vm933 = vcmp.gt.f32.partialorder %v909, 0.0
        %vm934 = vcmp.gt.f32.partialorder %v910, 0.0
        %vm935 = vcmp.gt.f32.partialorder %v911, 0.0
        %vm936 = vcmp.gt.f32.partialorder %v912, 0.0
        %vm937 = vcmp.gt.f32.partialorder %v913, 0.0
        %vm938 = vcmp.gt.f32.partialorder %v914, 0.0
        %vm939 = vcmp.gt.f32.partialorder %v915, 0.0
        %vm940 = vcmp.gt.f32.partialorder %v916, 0.0
        %vm941 = vcmp.gt.f32.partialorder %v917, 0.0
        %vm942 = vcmp.gt.f32.partialorder %v918, 0.0
        %vm943 = vcmp.gt.f32.partialorder %v919, 0.0
        %vm944 = vcmp.gt.f32.partialorder %v920, 0.0
        %vm945 = vcmp.gt.f32.partialorder %v921, 0.0
        %vm946 = vcmp.gt.f32.partialorder %v922, 0.0
        %vm947 = vcmp.gt.f32.partialorder %v923, 0.0
        %vm948 = vcmp.gt.f32.partialorder %v924, 0.0
        %v949 = vmul.f32 %v901, 0.2
        %v950 = vmul.f32 %v902, 0.2
        %v951 = vmul.f32 %v903, 0.2
        %v952 = vmul.f32 %v904, 0.2
        %v953 = vmul.f32 %v905, 0.2
        %v954 = vmul.f32 %v906, 0.2
        %v955 = vmul.f32 %v907, 0.2
        %v956 = vmul.f32 %v908, 0.2
        %v957 = vmul.f32 %v909, 0.2
        %v958 = vmul.f32 %v910, 0.2
        %v959 = vmul.f32 %v911, 0.2
        %v960 = vmul.f32 %v912, 0.2
        %v961 = vmul.f32 %v913, 0.2
        %v962 = vmul.f32 %v914, 0.2
        %v963 = vmul.f32 %v915, 0.2
        %v964 = vmul.f32 %v916, 0.2
        %v965 = vmul.f32 %v917, 0.2
        %v966 = vmul.f32 %v918, 0.2
        %v967 = vmul.f32 %v919, 0.2
        %v968 = vmul.f32 %v920, 0.2
        %v969 = vmul.f32 %v921, 0.2
        %v970 = vmul.f32 %v922, 0.2
        %v971 = vmul.f32 %v923, 0.2
        %v972 = vmul.f32 %v924, 0.2
        %v973 = vsel %vm925, %v901, %v949
        %v974 = vsel %vm926, %v902, %v950
        %v975 = vsel %vm927, %v903, %v951
        %v976 = vsel %vm928, %v904, %v952
        %v977 = vsel %vm929, %v905, %v953
        %v978 = vsel %vm930, %v906, %v954
        %v979 = vsel %vm931, %v907, %v955
        %v980 = vsel %vm932, %v908, %v956
        %v981 = vsel %vm933, %v909, %v957
        %v982 = vsel %vm934, %v910, %v958
        %v983 = vsel %vm935, %v911, %v959
        %v984 = vsel %vm936, %v912, %v960
        %v985 = vsel %vm937, %v913, %v961
        %v986 = vsel %vm938, %v914, %v962
        %v987 = vsel %vm939, %v915, %v963
        %v988 = vsel %vm940, %v916, %v964
        %v989 = vsel %vm941, %v917, %v965
        %v990 = vsel %vm942, %v918, %v966
        %v991 = vsel %vm943, %v919, %v967
        %v992 = vsel %vm944, %v920, %v968
        %v993 = vsel %vm945, %v921, %v969
        %v994 = vsel %vm946, %v922, %v970
        %v995 = vsel %vm947, %v923, %v971
        %v996 = vsel %vm948, %v924, %v972
        %v997 = vld [vmem:[#allocation14] sm:$0x1]
        %v999 = vlaneseq
        %v1000 = vshrl.u32 %v999, 7
        %v1001 = vsub.s32 0, %v1000
        %v1002 = vrot.slane %v997, %v1001
        %v1004 = vmul.f32 %v973, %v1002
        %v1005 = vmul.f32 %v974, %v1002
        %v1006 = vmul.f32 %v975, %v1002
        %v1007 = vmul.f32 %v976, %v1002
        %v1008 = vmul.f32 %v977, %v1002
        %v1009 = vmul.f32 %v978, %v1002
        %v1010 = vmul.f32 %v979, %v1002
        %v1011 = vmul.f32 %v980, %v1002
        %v1012 = vmul.f32 %v981, %v1002
        %v1013 = vmul.f32 %v982, %v1002
        %v1014 = vmul.f32 %v983, %v1002
        %v1015 = vmul.f32 %v984, %v1002
        %v1016 = vmul.f32 %v985, %v1002
        %v1017 = vmul.f32 %v986, %v1002
        %v1018 = vmul.f32 %v987, %v1002
        %v1019 = vmul.f32 %v988, %v1002
        %v1020 = vmul.f32 %v989, %v1002
        %v1021 = vmul.f32 %v990, %v1002
        %v1022 = vmul.f32 %v991, %v1002
        %v1023 = vmul.f32 %v992, %v1002
        %v1024 = vmul.f32 %v993, %v1002
        %v1025 = vmul.f32 %v994, %v1002
        %v1026 = vmul.f32 %v995, %v1002
        %v1027 = vmul.f32 %v996, %v1002
        %1028 = vadd.xlane.f32.xlu0 %v1004
        %v1029 = vpop.xlane.xlu0 %1028
        %1030 = vadd.xlane.f32.xlu0 %v1005
        %v1031 = vpop.xlane.xlu0 %1030
        %1032 = vadd.xlane.f32.xlu0 %v1006
        %v1033 = vpop.xlane.xlu0 %1032
        %1034 = vadd.xlane.f32.xlu0 %v1007
        %v1035 = vpop.xlane.xlu0 %1034
        %1036 = vadd.xlane.f32.xlu0 %v1008
        %v1037 = vpop.xlane.xlu0 %1036
        %1038 = vadd.xlane.f32.xlu0 %v1009
        %v1039 = vpop.xlane.xlu0 %1038
        %1040 = vadd.xlane.f32.xlu0 %v1010
        %v1041 = vpop.xlane.xlu0 %1040
        %1042 = vadd.xlane.f32.xlu0 %v1011
        %v1043 = vpop.xlane.xlu0 %1042
        %1044 = vadd.xlane.f32.xlu0 %v1012
        %v1045 = vpop.xlane.xlu0 %1044
        %1046 = vadd.xlane.f32.xlu0 %v1013
        %v1047 = vpop.xlane.xlu0 %1046
        %1048 = vadd.xlane.f32.xlu0 %v1014
        %v1049 = vpop.xlane.xlu0 %1048
        %1050 = vadd.xlane.f32.xlu0 %v1015
        %v1051 = vpop.xlane.xlu0 %1050
        %1052 = vadd.xlane.f32.xlu0 %v1016
        %v1053 = vpop.xlane.xlu0 %1052
        %1054 = vadd.xlane.f32.xlu0 %v1017
        %v1055 = vpop.xlane.xlu0 %1054
        %1056 = vadd.xlane.f32.xlu0 %v1018
        %v1057 = vpop.xlane.xlu0 %1056
        %1058 = vadd.xlane.f32.xlu0 %v1019
        %v1059 = vpop.xlane.xlu0 %1058
        %1060 = vadd.xlane.f32.xlu0 %v1020
        %v1061 = vpop.xlane.xlu0 %1060
        %1062 = vadd.xlane.f32.xlu0 %v1021
        %v1063 = vpop.xlane.xlu0 %1062
        %1064 = vadd.xlane.f32.xlu0 %v1022
        %v1065 = vpop.xlane.xlu0 %1064
        %1066 = vadd.xlane.f32.xlu0 %v1023
        %v1067 = vpop.xlane.xlu0 %1066
        %1068 = vadd.xlane.f32.xlu0 %v1024
        %v1069 = vpop.xlane.xlu0 %1068
        %1070 = vadd.xlane.f32.xlu0 %v1025
        %v1071 = vpop.xlane.xlu0 %1070
        %1072 = vadd.xlane.f32.xlu0 %v1026
        %v1073 = vpop.xlane.xlu0 %1072
        %1074 = vadd.xlane.f32.xlu0 %v1027
        %v1075 = vpop.xlane.xlu0 %1074
        %v1076 = vld [vmem:[%s405] sm:$0xff]
        %v1078 = vlaneseq
        %v1079 = vshrl.u32 %v1078, 7
        %v1080 = vsub.s32 0, %v1079
        %v1081 = vrot.slane %v1076, %v1080
        %1083 = vbcast.lane.b32.xlu0 %v1081, 256
        %v1084 = vpop.permute.xlu0 %1083
        %s1086 = sor.u32 256, 8
        %1087 = vbcast.lane.b32.xlu0 %v1081, %s1086
        %v1088 = vpop.permute.xlu0 %1087
        %s1090 = sor.u32 256, 16
        %1091 = vbcast.lane.b32.xlu0 %v1081, %s1090
        %v1092 = vpop.permute.xlu0 %1091
        %v1093 = vlaneseq
        %v1094 = vshrl.u32 %v1093, 7
        %v1095 = vsub.s32 1, %v1094
        %v1096 = vrot.slane %v1076, %v1095
        %1098 = vbcast.lane.b32.xlu0 %v1096, 256
        %v1099 = vpop.permute.xlu0 %1098
        %s1101 = sor.u32 256, 8
        %1102 = vbcast.lane.b32.xlu0 %v1096, %s1101
        %v1103 = vpop.permute.xlu0 %1102
        %s1105 = sor.u32 256, 16
        %1106 = vbcast.lane.b32.xlu0 %v1096, %s1105
        %v1107 = vpop.permute.xlu0 %1106
        %v1108 = vlaneseq
        %v1109 = vshrl.u32 %v1108, 7
        %v1110 = vsub.s32 2, %v1109
        %v1111 = vrot.slane %v1076, %v1110
        %1113 = vbcast.lane.b32.xlu0 %v1111, 256
        %v1114 = vpop.permute.xlu0 %1113
        %s1116 = sor.u32 256, 8
        %1117 = vbcast.lane.b32.xlu0 %v1111, %s1116
        %v1118 = vpop.permute.xlu0 %1117
        %s1120 = sor.u32 256, 16
        %1121 = vbcast.lane.b32.xlu0 %v1111, %s1120
        %v1122 = vpop.permute.xlu0 %1121
        %v1123 = vlaneseq
        %v1124 = vshrl.u32 %v1123, 7
        %v1125 = vsub.s32 3, %v1124
        %v1126 = vrot.slane %v1076, %v1125
        %1128 = vbcast.lane.b32.xlu0 %v1126, 256
        %v1129 = vpop.permute.xlu0 %1128
        %s1131 = sor.u32 256, 8
        %1132 = vbcast.lane.b32.xlu0 %v1126, %s1131
        %v1133 = vpop.permute.xlu0 %1132
        %s1135 = sor.u32 256, 16
        %1136 = vbcast.lane.b32.xlu0 %v1126, %s1135
        %v1137 = vpop.permute.xlu0 %1136
        %v1138 = vlaneseq
        %v1139 = vshrl.u32 %v1138, 7
        %v1140 = vsub.s32 4, %v1139
        %v1141 = vrot.slane %v1076, %v1140
        %1143 = vbcast.lane.b32.xlu0 %v1141, 256
        %v1144 = vpop.permute.xlu0 %1143
        %s1146 = sor.u32 256, 8
        %1147 = vbcast.lane.b32.xlu0 %v1141, %s1146
        %v1148 = vpop.permute.xlu0 %1147
        %s1150 = sor.u32 256, 16
        %1151 = vbcast.lane.b32.xlu0 %v1141, %s1150
        %v1152 = vpop.permute.xlu0 %1151
        %v1153 = vlaneseq
        %v1154 = vshrl.u32 %v1153, 7
        %v1155 = vsub.s32 5, %v1154
        %v1156 = vrot.slane %v1076, %v1155
        %1158 = vbcast.lane.b32.xlu0 %v1156, 256
        %v1159 = vpop.permute.xlu0 %1158
        %s1161 = sor.u32 256, 8
        %1162 = vbcast.lane.b32.xlu0 %v1156, %s1161
        %v1163 = vpop.permute.xlu0 %1162
        %s1165 = sor.u32 256, 16
        %1166 = vbcast.lane.b32.xlu0 %v1156, %s1165
        %v1167 = vpop.permute.xlu0 %1166
        %v1168 = vlaneseq
        %v1169 = vshrl.u32 %v1168, 7
        %v1170 = vsub.s32 6, %v1169
        %v1171 = vrot.slane %v1076, %v1170
        %1173 = vbcast.lane.b32.xlu0 %v1171, 256
        %v1174 = vpop.permute.xlu0 %1173
        %s1176 = sor.u32 256, 8
        %1177 = vbcast.lane.b32.xlu0 %v1171, %s1176
        %v1178 = vpop.permute.xlu0 %1177
        %s1180 = sor.u32 256, 16
        %1181 = vbcast.lane.b32.xlu0 %v1171, %s1180
        %v1182 = vpop.permute.xlu0 %1181
        %v1183 = vlaneseq
        %v1184 = vshrl.u32 %v1183, 7
        %v1185 = vsub.s32 7, %v1184
        %v1186 = vrot.slane %v1076, %v1185
        %1188 = vbcast.lane.b32.xlu0 %v1186, 256
        %v1189 = vpop.permute.xlu0 %1188
        %s1191 = sor.u32 256, 8
        %1192 = vbcast.lane.b32.xlu0 %v1186, %s1191
        %v1193 = vpop.permute.xlu0 %1192
        %s1195 = sor.u32 256, 16
        %1196 = vbcast.lane.b32.xlu0 %v1186, %s1195
        %v1197 = vpop.permute.xlu0 %1196
        %v1222 = vadd.f32 %v1029, %v1084
        %v1223 = vadd.f32 %v1031, %v1088
        %v1224 = vadd.f32 %v1033, %v1092
        %v1225 = vadd.f32 %v1035, %v1099
        %v1226 = vadd.f32 %v1037, %v1103
        %v1227 = vadd.f32 %v1039, %v1107
        %v1228 = vadd.f32 %v1041, %v1114
        %v1229 = vadd.f32 %v1043, %v1118
        %v1230 = vadd.f32 %v1045, %v1122
        %v1231 = vadd.f32 %v1047, %v1129
        %v1232 = vadd.f32 %v1049, %v1133
        %v1233 = vadd.f32 %v1051, %v1137
        %v1234 = vadd.f32 %v1053, %v1144
        %v1235 = vadd.f32 %v1055, %v1148
        %v1236 = vadd.f32 %v1057, %v1152
        %v1237 = vadd.f32 %v1059, %v1159
        %v1238 = vadd.f32 %v1061, %v1163
        %v1239 = vadd.f32 %v1063, %v1167
        %v1240 = vadd.f32 %v1065, %v1174
        %v1241 = vadd.f32 %v1067, %v1178
        %v1242 = vadd.f32 %v1069, %v1182
        %v1243 = vadd.f32 %v1071, %v1189
        %v1244 = vadd.f32 %v1073, %v1193
        %v1245 = vadd.f32 %v1075, %v1197
        %v1246 = vld [vmem:[#allocation4] sm:$0xff]
        %1271 = vset.pattern.permute.xlu0 0
        %1272 = vperm.xlu0 %1271, %v1222
        %v1273 = vpop.permute.xlu0 %1272
        %1274 = vset.pattern.permute.xlu0 0
        %1275 = vperm.xlu0 %1274, %v1223
        %v1276 = vpop.permute.xlu0 %1275
        %1277 = vset.pattern.permute.xlu0 0
        %1278 = vperm.xlu0 %1277, %v1224
        %v1279 = vpop.permute.xlu0 %1278
        %1280 = vset.pattern.permute.xlu0 0
        %1281 = vperm.xlu0 %1280, %v1225
        %v1282 = vpop.permute.xlu0 %1281
        %1283 = vset.pattern.permute.xlu0 0
        %1284 = vperm.xlu0 %1283, %v1226
        %v1285 = vpop.permute.xlu0 %1284
        %1286 = vset.pattern.permute.xlu0 0
        %1287 = vperm.xlu0 %1286, %v1227
        %v1288 = vpop.permute.xlu0 %1287
        %1289 = vset.pattern.permute.xlu0 0
        %1290 = vperm.xlu0 %1289, %v1228
        %v1291 = vpop.permute.xlu0 %1290
        %1292 = vset.pattern.permute.xlu0 0
        %1293 = vperm.xlu0 %1292, %v1229
        %v1294 = vpop.permute.xlu0 %1293
        %1295 = vset.pattern.permute.xlu0 0
        %1296 = vperm.xlu0 %1295, %v1230
        %v1297 = vpop.permute.xlu0 %1296
        %1298 = vset.pattern.permute.xlu0 0
        %1299 = vperm.xlu0 %1298, %v1231
        %v1300 = vpop.permute.xlu0 %1299
        %1301 = vset.pattern.permute.xlu0 0
        %1302 = vperm.xlu0 %1301, %v1232
        %v1303 = vpop.permute.xlu0 %1302
        %1304 = vset.pattern.permute.xlu0 0
        %1305 = vperm.xlu0 %1304, %v1233
        %v1306 = vpop.permute.xlu0 %1305
        %1307 = vset.pattern.permute.xlu0 0
        %1308 = vperm.xlu0 %1307, %v1234
        %v1309 = vpop.permute.xlu0 %1308
        %1310 = vset.pattern.permute.xlu0 0
        %1311 = vperm.xlu0 %1310, %v1235
        %v1312 = vpop.permute.xlu0 %1311
        %1313 = vset.pattern.permute.xlu0 0
        %1314 = vperm.xlu0 %1313, %v1236
        %v1315 = vpop.permute.xlu0 %1314
        %1316 = vset.pattern.permute.xlu0 0
        %1317 = vperm.xlu0 %1316, %v1237
        %v1318 = vpop.permute.xlu0 %1317
        %1319 = vset.pattern.permute.xlu0 0
        %1320 = vperm.xlu0 %1319, %v1238
        %v1321 = vpop.permute.xlu0 %1320
        %1322 = vset.pattern.permute.xlu0 0
        %1323 = vperm.xlu0 %1322, %v1239
        %v1324 = vpop.permute.xlu0 %1323
        %1325 = vset.pattern.permute.xlu0 0
        %1326 = vperm.xlu0 %1325, %v1240
        %v1327 = vpop.permute.xlu0 %1326
        %1328 = vset.pattern.permute.xlu0 0
        %1329 = vperm.xlu0 %1328, %v1241
        %v1330 = vpop.permute.xlu0 %1329
        %1331 = vset.pattern.permute.xlu0 0
        %1332 = vperm.xlu0 %1331, %v1242
        %v1333 = vpop.permute.xlu0 %1332
        %1334 = vset.pattern.permute.xlu0 0
        %1335 = vperm.xlu0 %1334, %v1243
        %v1336 = vpop.permute.xlu0 %1335
        %1337 = vset.pattern.permute.xlu0 0
        %1338 = vperm.xlu0 %1337, %v1244
        %v1339 = vpop.permute.xlu0 %1338
        %1340 = vset.pattern.permute.xlu0 0
        %1341 = vperm.xlu0 %1340, %v1245
        %v1342 = vpop.permute.xlu0 %1341
        %v1343 = vlaneseq
        %v1344 = vand.u32 %v1343, 127
        %v1345 = vlaneseq
        %v1346 = vshrl.u32 %v1345, 7
        %v1347 = vsub.s32 %v1344, %v1346
        %v1348 = vrot.slane %v1273, %v1347
        %v1349 = vadd.s32 %v1344, 4294967288
        %v1350 = vlaneseq
        %v1351 = vshrl.u32 %v1350, 7
        %v1352 = vsub.s32 %v1349, %v1351
        %v1353 = vrot.slane %v1276, %v1352
        %vm1354 = vcmask 130112
        %v1355 = vsel %vm1354, %v1353, %v1348
        %v1356 = vadd.s32 %v1344, 4294967280
        %v1357 = vlaneseq
        %v1358 = vshrl.u32 %v1357, 7
        %v1359 = vsub.s32 %v1356, %v1358
        %v1360 = vrot.slane %v1279, %v1359
        %vm1361 = vcmask 195712
        %v1362 = vsel %vm1361, %v1360, %v1355
        %v1363 = vlaneseq
        %v1364 = vshrl.u32 %v1363, 7
        %v1365 = vsub.s32 %v1344, %v1364
        %v1366 = vrot.slane %v1282, %v1365
        %v1367 = vlaneseq
        %v1368 = vshrl.u32 %v1367, 7
        %v1369 = vsub.s32 %v1349, %v1368
        %v1370 = vrot.slane %v1285, %v1369
        %v1371 = vsel %vm1354, %v1370, %v1366
        %v1372 = vlaneseq
        %v1373 = vshrl.u32 %v1372, 7
        %v1374 = vsub.s32 %v1356, %v1373
        %v1375 = vrot.slane %v1288, %v1374
        %v1376 = vsel %vm1361, %v1375, %v1371
        %v1377 = vlaneseq
        %v1378 = vshrl.u32 %v1377, 7
        %v1379 = vsub.s32 %v1344, %v1378
        %v1380 = vrot.slane %v1291, %v1379
        %v1381 = vlaneseq
        %v1382 = vshrl.u32 %v1381, 7
        %v1383 = vsub.s32 %v1349, %v1382
        %v1384 = vrot.slane %v1294, %v1383
        %v1385 = vsel %vm1354, %v1384, %v1380
        %v1386 = vlaneseq
        %v1387 = vshrl.u32 %v1386, 7
        %v1388 = vsub.s32 %v1356, %v1387
        %v1389 = vrot.slane %v1297, %v1388
        %v1390 = vsel %vm1361, %v1389, %v1385
        %v1391 = vlaneseq
        %v1392 = vshrl.u32 %v1391, 7
        %v1393 = vsub.s32 %v1344, %v1392
        %v1394 = vrot.slane %v1300, %v1393
        %v1395 = vlaneseq
        %v1396 = vshrl.u32 %v1395, 7
        %v1397 = vsub.s32 %v1349, %v1396
        %v1398 = vrot.slane %v1303, %v1397
        %v1399 = vsel %vm1354, %v1398, %v1394
        %v1400 = vlaneseq
        %v1401 = vshrl.u32 %v1400, 7
        %v1402 = vsub.s32 %v1356, %v1401
        %v1403 = vrot.slane %v1306, %v1402
        %v1404 = vsel %vm1361, %v1403, %v1399
        %v1405 = vlaneseq
        %v1406 = vshrl.u32 %v1405, 7
        %v1407 = vsub.s32 %v1344, %v1406
        %v1408 = vrot.slane %v1309, %v1407
        %v1409 = vlaneseq
        %v1410 = vshrl.u32 %v1409, 7
        %v1411 = vsub.s32 %v1349, %v1410
        %v1412 = vrot.slane %v1312, %v1411
        %v1413 = vsel %vm1354, %v1412, %v1408
        %v1414 = vlaneseq
        %v1415 = vshrl.u32 %v1414, 7
        %v1416 = vsub.s32 %v1356, %v1415
        %v1417 = vrot.slane %v1315, %v1416
        %v1418 = vsel %vm1361, %v1417, %v1413
        %v1419 = vlaneseq
        %v1420 = vshrl.u32 %v1419, 7
        %v1421 = vsub.s32 %v1344, %v1420
        %v1422 = vrot.slane %v1318, %v1421
        %v1423 = vlaneseq
        %v1424 = vshrl.u32 %v1423, 7
        %v1425 = vsub.s32 %v1349, %v1424
        %v1426 = vrot.slane %v1321, %v1425
        %v1427 = vsel %vm1354, %v1426, %v1422
        %v1428 = vlaneseq
        %v1429 = vshrl.u32 %v1428, 7
        %v1430 = vsub.s32 %v1356, %v1429
        %v1431 = vrot.slane %v1324, %v1430
        %v1432 = vsel %vm1361, %v1431, %v1427
        %v1433 = vlaneseq
        %v1434 = vshrl.u32 %v1433, 7
        %v1435 = vsub.s32 %v1344, %v1434
        %v1436 = vrot.slane %v1327, %v1435
        %v1437 = vlaneseq
        %v1438 = vshrl.u32 %v1437, 7
        %v1439 = vsub.s32 %v1349, %v1438
        %v1440 = vrot.slane %v1330, %v1439
        %v1441 = vsel %vm1354, %v1440, %v1436
        %v1442 = vlaneseq
        %v1443 = vshrl.u32 %v1442, 7
        %v1444 = vsub.s32 %v1356, %v1443
        %v1445 = vrot.slane %v1333, %v1444
        %v1446 = vsel %vm1361, %v1445, %v1441
        %v1447 = vlaneseq
        %v1448 = vshrl.u32 %v1447, 7
        %v1449 = vsub.s32 %v1344, %v1448
        %v1450 = vrot.slane %v1336, %v1449
        %v1451 = vlaneseq
        %v1452 = vshrl.u32 %v1451, 7
        %v1453 = vsub.s32 %v1349, %v1452
        %v1454 = vrot.slane %v1339, %v1453
        %v1455 = vsel %vm1354, %v1454, %v1450
        %v1456 = vlaneseq
        %v1457 = vshrl.u32 %v1456, 7
        %v1458 = vsub.s32 %v1356, %v1457
        %v1459 = vrot.slane %v1342, %v1458
        %v1460 = vsel %vm1361, %v1459, %v1455
        %vm1461 = vcmask 1041409
        %v1462 = vsel %vm1461, %v1376, %v1362
        %vm1463 = vcmask 1042434
        %v1464 = vsel %vm1463, %v1390, %v1462
        %vm1465 = vcmask 1043459
        %v1466 = vsel %vm1465, %v1404, %v1464
        %vm1467 = vcmask 1044484
        %v1468 = vsel %vm1467, %v1418, %v1466
        %vm1469 = vcmask 1045509
        %v1470 = vsel %vm1469, %v1432, %v1468
        %vm1471 = vcmask 1046534
        %v1472 = vsel %vm1471, %v1446, %v1470
        %vm1473 = vcmask 1047559
        %v1474 = vsel %vm1473, %v1460, %v1472
        %vm1476 = vcmask 195584
        %v1477 = vsel %vm1476, %v1474, -inf
        %1478 = vmax.xlane.f32.xlu0 %v1477
        %v1479 = vpop.xlane.xlu0 %1478
        %v1480 = vmax.f32 %v1246, %v1479
        %v1481 = vsub.f32 %v1246, %v1480
        %v1482 = vmul.f32 %v1481, 1.442695
        %v1483 = vpow.pop %v1482
        %1485 = vset.pattern.permute.xlu0 0
        %1486 = vperm.xlu0 %1485, %v1480
        %v1487 = vpop.permute.xlu0 %1486
        %v1488 = vlaneseq
        %v1489 = vshrl.u32 %v1488, 7
        %v1490 = vsub.s32 0, %v1489
        %v1491 = vrot.slane %v1487, %v1490
        %v1492 = vlaneseq
        %v1493 = vshrl.u32 %v1492, 7
        %v1494 = vsub.s32 1, %v1493
        %v1495 = vrot.slane %v1487, %v1494
        %v1496 = vlaneseq
        %v1497 = vshrl.u32 %v1496, 7
        %v1498 = vsub.s32 2, %v1497
        %v1499 = vrot.slane %v1487, %v1498
        %v1500 = vlaneseq
        %v1501 = vshrl.u32 %v1500, 7
        %v1502 = vsub.s32 3, %v1501
        %v1503 = vrot.slane %v1487, %v1502
        %v1504 = vlaneseq
        %v1505 = vshrl.u32 %v1504, 7
        %v1506 = vsub.s32 4, %v1505
        %v1507 = vrot.slane %v1487, %v1506
        %v1508 = vlaneseq
        %v1509 = vshrl.u32 %v1508, 7
        %v1510 = vsub.s32 5, %v1509
        %v1511 = vrot.slane %v1487, %v1510
        %v1512 = vlaneseq
        %v1513 = vshrl.u32 %v1512, 7
        %v1514 = vsub.s32 6, %v1513
        %v1515 = vrot.slane %v1487, %v1514
        %v1516 = vlaneseq
        %v1517 = vshrl.u32 %v1516, 7
        %v1518 = vsub.s32 7, %v1517
        %v1519 = vrot.slane %v1487, %v1518
        %v1528 = vsub.f32 %v1222, %v1491
        %v1529 = vsub.f32 %v1223, %v1491
        %v1530 = vsub.f32 %v1224, %v1491
        %v1531 = vsub.f32 %v1225, %v1495
        %v1532 = vsub.f32 %v1226, %v1495
        %v1533 = vsub.f32 %v1227, %v1495
        %v1534 = vsub.f32 %v1228, %v1499
        %v1535 = vsub.f32 %v1229, %v1499
        %v1536 = vsub.f32 %v1230, %v1499
        %v1537 = vsub.f32 %v1231, %v1503
        %v1538 = vsub.f32 %v1232, %v1503
        %v1539 = vsub.f32 %v1233, %v1503
        %v1540 = vsub.f32 %v1234, %v1507
        %v1541 = vsub.f32 %v1235, %v1507
        %v1542 = vsub.f32 %v1236, %v1507
        %v1543 = vsub.f32 %v1237, %v1511
        %v1544 = vsub.f32 %v1238, %v1511
        %v1545 = vsub.f32 %v1239, %v1511
        %v1546 = vsub.f32 %v1240, %v1515
        %v1547 = vsub.f32 %v1241, %v1515
        %v1548 = vsub.f32 %v1242, %v1515
        %v1549 = vsub.f32 %v1243, %v1519
        %v1550 = vsub.f32 %v1244, %v1519
        %v1551 = vsub.f32 %v1245, %v1519
        %v1552 = vmul.f32 %v1528, 1.442695
        %v1553 = vpow.pop %v1552
        %v1554 = vmul.f32 %v1529, 1.442695
        %v1555 = vpow.pop %v1554
        %v1556 = vmul.f32 %v1530, 1.442695
        %v1557 = vpow.pop %v1556
        %v1558 = vmul.f32 %v1531, 1.442695
        %v1559 = vpow.pop %v1558
        %v1560 = vmul.f32 %v1532, 1.442695
        %v1561 = vpow.pop %v1560
        %v1562 = vmul.f32 %v1533, 1.442695
        %v1563 = vpow.pop %v1562
        %v1564 = vmul.f32 %v1534, 1.442695
        %v1565 = vpow.pop %v1564
        %v1566 = vmul.f32 %v1535, 1.442695
        %v1567 = vpow.pop %v1566
        %v1568 = vmul.f32 %v1536, 1.442695
        %v1569 = vpow.pop %v1568
        %v1570 = vmul.f32 %v1537, 1.442695
        %v1571 = vpow.pop %v1570
        %v1572 = vmul.f32 %v1538, 1.442695
        %v1573 = vpow.pop %v1572
        %v1574 = vmul.f32 %v1539, 1.442695
        %v1575 = vpow.pop %v1574
        %v1576 = vmul.f32 %v1540, 1.442695
        %v1577 = vpow.pop %v1576
        %v1578 = vmul.f32 %v1541, 1.442695
        %v1579 = vpow.pop %v1578
        %v1580 = vmul.f32 %v1542, 1.442695
        %v1581 = vpow.pop %v1580
        %v1582 = vmul.f32 %v1543, 1.442695
        %v1583 = vpow.pop %v1582
        %v1584 = vmul.f32 %v1544, 1.442695
        %v1585 = vpow.pop %v1584
        %v1586 = vmul.f32 %v1545, 1.442695
        %v1587 = vpow.pop %v1586
        %v1588 = vmul.f32 %v1546, 1.442695
        %v1589 = vpow.pop %v1588
        %v1590 = vmul.f32 %v1547, 1.442695
        %v1591 = vpow.pop %v1590
        %v1592 = vmul.f32 %v1548, 1.442695
        %v1593 = vpow.pop %v1592
        %v1594 = vmul.f32 %v1549, 1.442695
        %v1595 = vpow.pop %v1594
        %v1596 = vmul.f32 %v1550, 1.442695
        %v1597 = vpow.pop %v1596
        %v1598 = vmul.f32 %v1551, 1.442695
        %v1599 = vpow.pop %v1598
        %v1600 = vld [vmem:[#allocation5] sm:$0xff]
        %v1601 = vmul.f32 %v1483, %v1600
        %1626 = vset.pattern.permute.xlu0 0
        %1627 = vperm.xlu0 %1626, %v1553
        %v1628 = vpop.permute.xlu0 %1627
        %1629 = vset.pattern.permute.xlu0 0
        %1630 = vperm.xlu0 %1629, %v1555
        %v1631 = vpop.permute.xlu0 %1630
        %1632 = vset.pattern.permute.xlu0 0
        %1633 = vperm.xlu0 %1632, %v1557
        %v1634 = vpop.permute.xlu0 %1633
        %1635 = vset.pattern.permute.xlu0 0
        %1636 = vperm.xlu0 %1635, %v1559
        %v1637 = vpop.permute.xlu0 %1636
        %1638 = vset.pattern.permute.xlu0 0
        %1639 = vperm.xlu0 %1638, %v1561
        %v1640 = vpop.permute.xlu0 %1639
        %1641 = vset.pattern.permute.xlu0 0
        %1642 = vperm.xlu0 %1641, %v1563
        %v1643 = vpop.permute.xlu0 %1642
        %1644 = vset.pattern.permute.xlu0 0
        %1645 = vperm.xlu0 %1644, %v1565
        %v1646 = vpop.permute.xlu0 %1645
        %1647 = vset.pattern.permute.xlu0 0
        %1648 = vperm.xlu0 %1647, %v1567
        %v1649 = vpop.permute.xlu0 %1648
        %1650 = vset.pattern.permute.xlu0 0
        %1651 = vperm.xlu0 %1650, %v1569
        %v1652 = vpop.permute.xlu0 %1651
        %1653 = vset.pattern.permute.xlu0 0
        %1654 = vperm.xlu0 %1653, %v1571
        %v1655 = vpop.permute.xlu0 %1654
        %1656 = vset.pattern.permute.xlu0 0
        %1657 = vperm.xlu0 %1656, %v1573
        %v1658 = vpop.permute.xlu0 %1657
        %1659 = vset.pattern.permute.xlu0 0
        %1660 = vperm.xlu0 %1659, %v1575
        %v1661 = vpop.permute.xlu0 %1660
        %1662 = vset.pattern.permute.xlu0 0
        %1663 = vperm.xlu0 %1662, %v1577
        %v1664 = vpop.permute.xlu0 %1663
        %1665 = vset.pattern.permute.xlu0 0
        %1666 = vperm.xlu0 %1665, %v1579
        %v1667 = vpop.permute.xlu0 %1666
        %1668 = vset.pattern.permute.xlu0 0
        %1669 = vperm.xlu0 %1668, %v1581
        %v1670 = vpop.permute.xlu0 %1669
        %1671 = vset.pattern.permute.xlu0 0
        %1672 = vperm.xlu0 %1671, %v1583
        %v1673 = vpop.permute.xlu0 %1672
        %1674 = vset.pattern.permute.xlu0 0
        %1675 = vperm.xlu0 %1674, %v1585
        %v1676 = vpop.permute.xlu0 %1675
        %1677 = vset.pattern.permute.xlu0 0
        %1678 = vperm.xlu0 %1677, %v1587
        %v1679 = vpop.permute.xlu0 %1678
        %1680 = vset.pattern.permute.xlu0 0
        %1681 = vperm.xlu0 %1680, %v1589
        %v1682 = vpop.permute.xlu0 %1681
        %1683 = vset.pattern.permute.xlu0 0
        %1684 = vperm.xlu0 %1683, %v1591
        %v1685 = vpop.permute.xlu0 %1684
        %1686 = vset.pattern.permute.xlu0 0
        %1687 = vperm.xlu0 %1686, %v1593
        %v1688 = vpop.permute.xlu0 %1687
        %1689 = vset.pattern.permute.xlu0 0
        %1690 = vperm.xlu0 %1689, %v1595
        %v1691 = vpop.permute.xlu0 %1690
        %1692 = vset.pattern.permute.xlu0 0
        %1693 = vperm.xlu0 %1692, %v1597
        %v1694 = vpop.permute.xlu0 %1693
        %1695 = vset.pattern.permute.xlu0 0
        %1696 = vperm.xlu0 %1695, %v1599
        %v1697 = vpop.permute.xlu0 %1696
        %v1698 = vlaneseq
        %v1699 = vshrl.u32 %v1698, 7
        %v1700 = vsub.s32 %v1344, %v1699
        %v1701 = vrot.slane %v1628, %v1700
        %v1702 = vlaneseq
        %v1703 = vshrl.u32 %v1702, 7
        %v1704 = vsub.s32 %v1349, %v1703
        %v1705 = vrot.slane %v1631, %v1704
        %v1706 = vsel %vm1354, %v1705, %v1701
        %v1707 = vlaneseq
        %v1708 = vshrl.u32 %v1707, 7
        %v1709 = vsub.s32 %v1356, %v1708
        %v1710 = vrot.slane %v1634, %v1709
        %v1711 = vsel %vm1361, %v1710, %v1706
        %v1712 = vlaneseq
        %v1713 = vshrl.u32 %v1712, 7
        %v1714 = vsub.s32 %v1344, %v1713
        %v1715 = vrot.slane %v1637, %v1714
        %v1716 = vlaneseq
        %v1717 = vshrl.u32 %v1716, 7
        %v1718 = vsub.s32 %v1349, %v1717
        %v1719 = vrot.slane %v1640, %v1718
        %v1720 = vsel %vm1354, %v1719, %v1715
        %v1721 = vlaneseq
        %v1722 = vshrl.u32 %v1721, 7
        %v1723 = vsub.s32 %v1356, %v1722
        %v1724 = vrot.slane %v1643, %v1723
        %v1725 = vsel %vm1361, %v1724, %v1720
        %v1726 = vlaneseq
        %v1727 = vshrl.u32 %v1726, 7
        %v1728 = vsub.s32 %v1344, %v1727
        %v1729 = vrot.slane %v1646, %v1728
        %v1730 = vlaneseq
        %v1731 = vshrl.u32 %v1730, 7
        %v1732 = vsub.s32 %v1349, %v1731
        %v1733 = vrot.slane %v1649, %v1732
        %v1734 = vsel %vm1354, %v1733, %v1729
        %v1735 = vlaneseq
        %v1736 = vshrl.u32 %v1735, 7
        %v1737 = vsub.s32 %v1356, %v1736
        %v1738 = vrot.slane %v1652, %v1737
        %v1739 = vsel %vm1361, %v1738, %v1734
        %v1740 = vlaneseq
        %v1741 = vshrl.u32 %v1740, 7
        %v1742 = vsub.s32 %v1344, %v1741
        %v1743 = vrot.slane %v1655, %v1742
        %v1744 = vlaneseq
        %v1745 = vshrl.u32 %v1744, 7
        %v1746 = vsub.s32 %v1349, %v1745
        %v1747 = vrot.slane %v1658, %v1746
        %v1748 = vsel %vm1354, %v1747, %v1743
        %v1749 = vlaneseq
        %v1750 = vshrl.u32 %v1749, 7
        %v1751 = vsub.s32 %v1356, %v1750
        %v1752 = vrot.slane %v1661, %v1751
        %v1753 = vsel %vm1361, %v1752, %v1748
        %v1754 = vlaneseq
        %v1755 = vshrl.u32 %v1754, 7
        %v1756 = vsub.s32 %v1344, %v1755
        %v1757 = vrot.slane %v1664, %v1756
        %v1758 = vlaneseq
        %v1759 = vshrl.u32 %v1758, 7
        %v1760 = vsub.s32 %v1349, %v1759
        %v1761 = vrot.slane %v1667, %v1760
        %v1762 = vsel %vm1354, %v1761, %v1757
        %v1763 = vlaneseq
        %v1764 = vshrl.u32 %v1763, 7
        %v1765 = vsub.s32 %v1356, %v1764
        %v1766 = vrot.slane %v1670, %v1765
        %v1767 = vsel %vm1361, %v1766, %v1762
        %v1768 = vlaneseq
        %v1769 = vshrl.u32 %v1768, 7
        %v1770 = vsub.s32 %v1344, %v1769
        %v1771 = vrot.slane %v1673, %v1770
        %v1772 = vlaneseq
        %v1773 = vshrl.u32 %v1772, 7
        %v1774 = vsub.s32 %v1349, %v1773
        %v1775 = vrot.slane %v1676, %v1774
        %v1776 = vsel %vm1354, %v1775, %v1771
        %v1777 = vlaneseq
        %v1778 = vshrl.u32 %v1777, 7
        %v1779 = vsub.s32 %v1356, %v1778
        %v1780 = vrot.slane %v1679, %v1779
        %v1781 = vsel %vm1361, %v1780, %v1776
        %v1782 = vlaneseq
        %v1783 = vshrl.u32 %v1782, 7
        %v1784 = vsub.s32 %v1344, %v1783
        %v1785 = vrot.slane %v1682, %v1784
        %v1786 = vlaneseq
        %v1787 = vshrl.u32 %v1786, 7
        %v1788 = vsub.s32 %v1349, %v1787
        %v1789 = vrot.slane %v1685, %v1788
        %v1790 = vsel %vm1354, %v1789, %v1785
        %v1791 = vlaneseq
        %v1792 = vshrl.u32 %v1791, 7
        %v1793 = vsub.s32 %v1356, %v1792
        %v1794 = vrot.slane %v1688, %v1793
        %v1795 = vsel %vm1361, %v1794, %v1790
        %v1796 = vlaneseq
        %v1797 = vshrl.u32 %v1796, 7
        %v1798 = vsub.s32 %v1344, %v1797
        %v1799 = vrot.slane %v1691, %v1798
        %v1800 = vlaneseq
        %v1801 = vshrl.u32 %v1800, 7
        %v1802 = vsub.s32 %v1349, %v1801
        %v1803 = vrot.slane %v1694, %v1802
        %v1804 = vsel %vm1354, %v1803, %v1799
        %v1805 = vlaneseq
        %v1806 = vshrl.u32 %v1805, 7
        %v1807 = vsub.s32 %v1356, %v1806
        %v1808 = vrot.slane %v1697, %v1807
        %v1809 = vsel %vm1361, %v1808, %v1804
        %v1810 = vsel %vm1461, %v1725, %v1711
        %v1811 = vsel %vm1463, %v1739, %v1810
        %v1812 = vsel %vm1465, %v1753, %v1811
        %v1813 = vsel %vm1467, %v1767, %v1812
        %v1814 = vsel %vm1469, %v1781, %v1813
        %v1815 = vsel %vm1471, %v1795, %v1814
        %v1816 = vsel %vm1473, %v1809, %v1815
        %v1818 = vsel %vm1476, %v1816, 0.0
        %1819 = vadd.xlane.f32.xlu0 %v1818
        %v1820 = vpop.xlane.xlu0 %1819
        %v1821 = vadd.f32 %v1601, %v1820
        %vm1822 = vcmask 7168
        %1823 = vst.msk [vmem:[#allocation5] sm:$0xff] %vm1822, %v1821
        %v1824 = vld [vmem:[#allocation6] sm:$0xff]
        %1826 = vset.pattern.permute.xlu0 0
        %1827 = vperm.xlu0 %1826, %v1483
        %v1828 = vpop.permute.xlu0 %1827
        %v1830 = vmul.f32 %v1828, %v1824
        %v1831 = vpack.c.bf16 %v1555, %v1553
        %v1832 = vpack.c.bf16 %v1557, %v1557
        %v1833 = vpack.c.bf16 %v1561, %v1559
        %v1834 = vpack.c.bf16 %v1563, %v1563
        %v1835 = vpack.c.bf16 %v1567, %v1565
        %v1836 = vpack.c.bf16 %v1569, %v1569
        %v1837 = vpack.c.bf16 %v1573, %v1571
        %v1838 = vpack.c.bf16 %v1575, %v1575
        %v1839 = vpack.c.bf16 %v1579, %v1577
        %v1840 = vpack.c.bf16 %v1581, %v1581
        %v1841 = vpack.c.bf16 %v1585, %v1583
        %v1842 = vpack.c.bf16 %v1587, %v1587
        %v1843 = vpack.c.bf16 %v1591, %v1589
        %v1844 = vpack.c.bf16 %v1593, %v1593
        %v1845 = vpack.c.bf16 %v1597, %v1595
        %v1846 = vpack.c.bf16 %v1599, %v1599
        %v1847 = vpack.c.bf16 %v800, %v797
        %v1848 = vpack.c.bf16 %v805, %v805
        %v1865 = vunpack.c.l.b16 %v1831
        %v1866 = vunpack.c.h.b16 %v1831
        %v1867 = vunpack.c.l.b16 %v1832
        %v1868 = vunpack.c.l.b16 %v1833
        %v1869 = vunpack.c.h.b16 %v1833
        %v1870 = vunpack.c.l.b16 %v1834
        %v1871 = vunpack.c.l.b16 %v1835
        %v1872 = vunpack.c.h.b16 %v1835
        %v1873 = vunpack.c.l.b16 %v1836
        %v1874 = vunpack.c.l.b16 %v1837
        %v1875 = vunpack.c.h.b16 %v1837
        %v1876 = vunpack.c.l.b16 %v1838
        %v1877 = vunpack.c.l.b16 %v1839
        %v1878 = vunpack.c.h.b16 %v1839
        %v1879 = vunpack.c.l.b16 %v1840
        %v1880 = vunpack.c.l.b16 %v1841
        %v1881 = vunpack.c.h.b16 %v1841
        %v1882 = vunpack.c.l.b16 %v1842
        %v1883 = vunpack.c.l.b16 %v1843
        %v1884 = vunpack.c.h.b16 %v1843
        %v1885 = vunpack.c.l.b16 %v1844
        %v1886 = vunpack.c.l.b16 %v1845
        %v1887 = vunpack.c.h.b16 %v1845
        %v1888 = vunpack.c.l.b16 %v1846
        %1889 = vset.pattern.permute.xlu0 0
        %1890 = vperm.xlu0 %1889, %v1865
        %v1891 = vpop.permute.xlu0 %1890
        %1892 = vset.pattern.permute.xlu0 0
        %1893 = vperm.xlu0 %1892, %v1866
        %v1894 = vpop.permute.xlu0 %1893
        %1895 = vset.pattern.permute.xlu0 0
        %1896 = vperm.xlu0 %1895, %v1867
        %v1897 = vpop.permute.xlu0 %1896
        %1898 = vset.pattern.permute.xlu0 0
        %1899 = vperm.xlu0 %1898, %v1868
        %v1900 = vpop.permute.xlu0 %1899
        %1901 = vset.pattern.permute.xlu0 0
        %1902 = vperm.xlu0 %1901, %v1869
        %v1903 = vpop.permute.xlu0 %1902
        %1904 = vset.pattern.permute.xlu0 0
        %1905 = vperm.xlu0 %1904, %v1870
        %v1906 = vpop.permute.xlu0 %1905
        %1907 = vset.pattern.permute.xlu0 0
        %1908 = vperm.xlu0 %1907, %v1871
        %v1909 = vpop.permute.xlu0 %1908
        %1910 = vset.pattern.permute.xlu0 0
        %1911 = vperm.xlu0 %1910, %v1872
        %v1912 = vpop.permute.xlu0 %1911
        %1913 = vset.pattern.permute.xlu0 0
        %1914 = vperm.xlu0 %1913, %v1873
        %v1915 = vpop.permute.xlu0 %1914
        %1916 = vset.pattern.permute.xlu0 0
        %1917 = vperm.xlu0 %1916, %v1874
        %v1918 = vpop.permute.xlu0 %1917
        %1919 = vset.pattern.permute.xlu0 0
        %1920 = vperm.xlu0 %1919, %v1875
        %v1921 = vpop.permute.xlu0 %1920
        %1922 = vset.pattern.permute.xlu0 0
        %1923 = vperm.xlu0 %1922, %v1876
        %v1924 = vpop.permute.xlu0 %1923
        %1925 = vset.pattern.permute.xlu0 0
        %1926 = vperm.xlu0 %1925, %v1877
        %v1927 = vpop.permute.xlu0 %1926
        %1928 = vset.pattern.permute.xlu0 0
        %1929 = vperm.xlu0 %1928, %v1878
        %v1930 = vpop.permute.xlu0 %1929
        %1931 = vset.pattern.permute.xlu0 0
        %1932 = vperm.xlu0 %1931, %v1879
        %v1933 = vpop.permute.xlu0 %1932
        %1934 = vset.pattern.permute.xlu0 0
        %1935 = vperm.xlu0 %1934, %v1880
        %v1936 = vpop.permute.xlu0 %1935
        %1937 = vset.pattern.permute.xlu0 0
        %1938 = vperm.xlu0 %1937, %v1881
        %v1939 = vpop.permute.xlu0 %1938
        %1940 = vset.pattern.permute.xlu0 0
        %1941 = vperm.xlu0 %1940, %v1882
        %v1942 = vpop.permute.xlu0 %1941
        %1943 = vset.pattern.permute.xlu0 0
        %1944 = vperm.xlu0 %1943, %v1883
        %v1945 = vpop.permute.xlu0 %1944
        %1946 = vset.pattern.permute.xlu0 0
        %1947 = vperm.xlu0 %1946, %v1884
        %v1948 = vpop.permute.xlu0 %1947
        %1949 = vset.pattern.permute.xlu0 0
        %1950 = vperm.xlu0 %1949, %v1885
        %v1951 = vpop.permute.xlu0 %1950
        %1952 = vset.pattern.permute.xlu0 0
        %1953 = vperm.xlu0 %1952, %v1886
        %v1954 = vpop.permute.xlu0 %1953
        %1955 = vset.pattern.permute.xlu0 0
        %1956 = vperm.xlu0 %1955, %v1887
        %v1957 = vpop.permute.xlu0 %1956
        %1958 = vset.pattern.permute.xlu0 0
        %1959 = vperm.xlu0 %1958, %v1888
        %v1960 = vpop.permute.xlu0 %1959
        %v1961 = vlaneseq
        %v1962 = vshrl.u32 %v1961, 7
        %v1963 = vsub.s32 %v1344, %v1962
        %v1964 = vrot.slane %v1891, %v1963
        %v1965 = vlaneseq
        %v1966 = vshrl.u32 %v1965, 7
        %v1967 = vsub.s32 %v1349, %v1966
        %v1968 = vrot.slane %v1894, %v1967
        %v1969 = vsel %vm1354, %v1968, %v1964
        %v1970 = vlaneseq
        %v1971 = vshrl.u32 %v1970, 7
        %v1972 = vsub.s32 %v1356, %v1971
        %v1973 = vrot.slane %v1897, %v1972
        %v1974 = vsel %vm1361, %v1973, %v1969
        %v1975 = vlaneseq
        %v1976 = vshrl.u32 %v1975, 7
        %v1977 = vsub.s32 %v1344, %v1976
        %v1978 = vrot.slane %v1900, %v1977
        %v1979 = vlaneseq
        %v1980 = vshrl.u32 %v1979, 7
        %v1981 = vsub.s32 %v1349, %v1980
        %v1982 = vrot.slane %v1903, %v1981
        %v1983 = vsel %vm1354, %v1982, %v1978
        %v1984 = vlaneseq
        %v1985 = vshrl.u32 %v1984, 7
        %v1986 = vsub.s32 %v1356, %v1985
        %v1987 = vrot.slane %v1906, %v1986
        %v1988 = vsel %vm1361, %v1987, %v1983
        %v1989 = vlaneseq
        %v1990 = vshrl.u32 %v1989, 7
        %v1991 = vsub.s32 %v1344, %v1990
        %v1992 = vrot.slane %v1909, %v1991
        %v1993 = vlaneseq
        %v1994 = vshrl.u32 %v1993, 7
        %v1995 = vsub.s32 %v1349, %v1994
        %v1996 = vrot.slane %v1912, %v1995
        %v1997 = vsel %vm1354, %v1996, %v1992
        %v1998 = vlaneseq
        %v1999 = vshrl.u32 %v1998, 7
        %v2000 = vsub.s32 %v1356, %v1999
        %v2001 = vrot.slane %v1915, %v2000
        %v2002 = vsel %vm1361, %v2001, %v1997
        %v2003 = vlaneseq
        %v2004 = vshrl.u32 %v2003, 7
        %v2005 = vsub.s32 %v1344, %v2004
        %v2006 = vrot.slane %v1918, %v2005
        %v2007 = vlaneseq
        %v2008 = vshrl.u32 %v2007, 7
        %v2009 = vsub.s32 %v1349, %v2008
        %v2010 = vrot.slane %v1921, %v2009
        %v2011 = vsel %vm1354, %v2010, %v2006
        %v2012 = vlaneseq
        %v2013 = vshrl.u32 %v2012, 7
        %v2014 = vsub.s32 %v1356, %v2013
        %v2015 = vrot.slane %v1924, %v2014
        %v2016 = vsel %vm1361, %v2015, %v2011
        %v2017 = vlaneseq
        %v2018 = vshrl.u32 %v2017, 7
        %v2019 = vsub.s32 %v1344, %v2018
        %v2020 = vrot.slane %v1927, %v2019
        %v2021 = vlaneseq
        %v2022 = vshrl.u32 %v2021, 7
        %v2023 = vsub.s32 %v1349, %v2022
        %v2024 = vrot.slane %v1930, %v2023
        %v2025 = vsel %vm1354, %v2024, %v2020
        %v2026 = vlaneseq
        %v2027 = vshrl.u32 %v2026, 7
        %v2028 = vsub.s32 %v1356, %v2027
        %v2029 = vrot.slane %v1933, %v2028
        %v2030 = vsel %vm1361, %v2029, %v2025
        %v2031 = vlaneseq
        %v2032 = vshrl.u32 %v2031, 7
        %v2033 = vsub.s32 %v1344, %v2032
        %v2034 = vrot.slane %v1936, %v2033
        %v2035 = vlaneseq
        %v2036 = vshrl.u32 %v2035, 7
        %v2037 = vsub.s32 %v1349, %v2036
        %v2038 = vrot.slane %v1939, %v2037
        %v2039 = vsel %vm1354, %v2038, %v2034
        %v2040 = vlaneseq
        %v2041 = vshrl.u32 %v2040, 7
        %v2042 = vsub.s32 %v1356, %v2041
        %v2043 = vrot.slane %v1942, %v2042
        %v2044 = vsel %vm1361, %v2043, %v2039
        %v2045 = vlaneseq
        %v2046 = vshrl.u32 %v2045, 7
        %v2047 = vsub.s32 %v1344, %v2046
        %v2048 = vrot.slane %v1945, %v2047
        %v2049 = vlaneseq
        %v2050 = vshrl.u32 %v2049, 7
        %v2051 = vsub.s32 %v1349, %v2050
        %v2052 = vrot.slane %v1948, %v2051
        %v2053 = vsel %vm1354, %v2052, %v2048
        %v2054 = vlaneseq
        %v2055 = vshrl.u32 %v2054, 7
        %v2056 = vsub.s32 %v1356, %v2055
        %v2057 = vrot.slane %v1951, %v2056
        %v2058 = vsel %vm1361, %v2057, %v2053
        %v2059 = vlaneseq
        %v2060 = vshrl.u32 %v2059, 7
        %v2061 = vsub.s32 %v1344, %v2060
        %v2062 = vrot.slane %v1954, %v2061
        %v2063 = vlaneseq
        %v2064 = vshrl.u32 %v2063, 7
        %v2065 = vsub.s32 %v1349, %v2064
        %v2066 = vrot.slane %v1957, %v2065
        %v2067 = vsel %vm1354, %v2066, %v2062
        %v2068 = vlaneseq
        %v2069 = vshrl.u32 %v2068, 7
        %v2070 = vsub.s32 %v1356, %v2069
        %v2071 = vrot.slane %v1960, %v2070
        %v2072 = vsel %vm1361, %v2071, %v2067
        %v2073 = vsel %vm1461, %v1988, %v1974
        %v2074 = vsel %vm1463, %v2002, %v2073
        %v2075 = vsel %vm1465, %v2016, %v2074
        %v2076 = vsel %vm1467, %v2030, %v2075
        %v2077 = vsel %vm1469, %v2044, %v2076
        %v2078 = vsel %vm1471, %v2058, %v2077
        %v2079 = vsel %vm1473, %v2072, %v2078
        %v2080 = vpack.c.b16 %v2079, %v2079
        %v2082 = vsel %vm1476, %v2080, 0
        %vm2084 = vcmask 1043456
        %v2086 = vsel %vm2084, %v1848, 0
        %2088 = vmatprep.subr.bf16.mxu0 0
        %2089 = vmatpush1.bf16.msra.mxu0 %v1847
        %2090 = vmatprep.subr.bf16.mxu0 0
        %2091 = vmatpush1.bf16.msra.mxu0 %v2086
        %2092 = vmatprep.subr.bf16.mxu0 0
        %2093 = vmatpush1.bf16.msra.mxu0 0
        %2094 = vmatprep.subr.bf16.mxu0 0
        %2095 = vmatpush1.bf16.msra.mxu0 0
        %2096 = vmatprep.subr.bf16.mxu0 0
        %2097 = vmatpush1.bf16.msra.mxu0 0
        %2098 = vmatprep.subr.bf16.mxu0 0
        %2099 = vmatpush1.bf16.msra.mxu0 0
        %2100 = vmatprep.subr.bf16.mxu0 0
        %2101 = vmatpush1.bf16.msra.mxu0 0
        %2102 = vmatprep.subr.bf16.mxu0 0
        %2103 = vmatpush1.bf16.msra.mxu0 0
        %2104 = vmatprep.subr.bf16.mxu0 0
        %2105 = vmatpush1.bf16.msra.mxu0 0
        %2106 = vmatprep.subr.bf16.mxu0 0
        %2107 = vmatpush1.bf16.msra.mxu0 0
        %2108 = vmatprep.subr.bf16.mxu0 0
        %2109 = vmatpush1.bf16.msra.mxu0 0
        %2110 = vmatprep.subr.bf16.mxu0 0
        %2111 = vmatpush1.bf16.msra.mxu0 0
        %2112 = vmatprep.subr.bf16.mxu0 0
        %2113 = vmatpush1.bf16.msra.mxu0 0
        %2114 = vmatprep.subr.bf16.mxu0 0
        %2115 = vmatpush1.bf16.msra.mxu0 0
        %2116 = vmatprep.subr.bf16.mxu0 0
        %2117 = vmatpush1.bf16.msra.mxu0 0
        %2118 = vmatprep.subr.bf16.mxu0 0
        %2119 = vmatpush1.bf16.msra.mxu0 0
        %2120 = vmatprep.mubr.bf16.mxu0 0
        %2121 = vmatmul.mubr.bf16.gmra.mrb[0].mxu0 %v2082
        %v2122 = vpop.f32.mrb[0].mxu0
        %v2123 = vadd.f32 0.0, %v2122
        %v2124 = vpop.f32.mrb[0].mxu0
        %v2125 = vpop.f32.mrb[0].mxu0
        %v2126 = vpop.f32.mrb[0].mxu0
        %2127 = vdwg.mxu0
        %v2128 = vadd.f32 %v1830, %v2123
        %2129 = vst [vmem:[#allocation6] sm:$0xff] %v2128
        %2130 = vst.msk [vmem:[#allocation4] sm:$0xff] %vm1822, %v1480
        // Predicated region
        $region73: #{gat_forward.2} parent=47 // pred_check
          %p2131 = pneg %p415
        $region74: #{gat_forward.2} parent=47 // pred_check_branch
          %2133 = sbr.rel (%p2131) target = $region76
        $region75: #{gat_forward.2} parent=47 // pred_region
          %v2134 = vld [vmem:[#allocation5] sm:$0xff]
          %v2135 = vmax.f32 %v2134, 1e-20
          %v2136 = vrcp.pop %v2135
          %v2137 = vld [vmem:[#allocation6] sm:$0xff]
          %2139 = vset.pattern.permute.xlu0 0
          %2140 = vperm.xlu0 %2139, %v2136
          %v2141 = vpop.permute.xlu0 %2140
          %v2143 = vmul.f32 %v2137, %v2141
          %v2144 = vld [vmem:[%s409] sm:$0xff]
          %2146 = vset.pattern.permute.xlu0 0
          %2147 = vperm.xlu0 %2146, %v2144
          %v2148 = vpop.permute.xlu0 %2147
          %v2150 = vmul.f32 %v2143, %v2148
          %v2151 = vld [vmem:[#allocation3] sm:$0xff]
          %v2152 = vadd.f32 %v2150, %v2151
          %v2153 = vmax.f32 %v2152, 0.0
          %v2154 = vpack.c.bf16 %v2153, %v2153
          %2155 = vst [vmem:[%s413] sm:$0xf] %v2154
        $region76: #{gat_forward.2} parent=47 // pred_fallthru
          _
        %p2156 = scmp.lt.s32.totalorder %s27, 2
        %s2157 = scalar_select %p2156, %s27, 2
        %s2158 = smul.addr %s2157, 4
        %s2159 = scalar_lea.vmem %s7, %s2158
        // Predicated region
        $region77: #{gat_forward.2} parent=47 // pred_check
          %p2160 = pneg %p222
        $region78: #{gat_forward.2} parent=47 // pred_check_branch
          %2162 = sbr.rel (%p2160) target = $region80
        $region79: #{gat_forward.2} parent=47 // pred_region
          _
        $region80: #{gat_forward.2} parent=47 // pred_fallthru
          _
      $region48: #{gat_forward.2} parent=5 // pred_fallthru
        _
      %p2163 = scmp.le.s32.totalorder 2, %s18
      // Predicated region
      $region81: #{gat_forward.2} parent=5 // pred_check
        %p2164 = pneg %p2163
      $region82: #{gat_forward.2} parent=5 // pred_check_branch
        %2166 = sbr.rel (%p2164) target = $region84
      $region83: #{gat_forward.2} parent=5 // pred_region
        %s2167 = ssub.s32 %s18, 2
        // Predicated region
        $region85: #{gat_forward.2} parent=83 // pred_check
          %p2168 = pneg %p228
        $region86: #{gat_forward.2} parent=83 // pred_check_branch
          %2170 = sbr.rel (%p2168) target = $region88
        $region87: #{gat_forward.2} parent=83 // pred_region
          %p2171 = scmp.lt.s32.totalorder %s29, 2
          %s2172 = scalar_select %p2171, %s29, 2
          %s2173 = smul.addr %s2172, 4
          %s2174 = scalar_lea.vmem %s7, %s2173
        $region88: #{gat_forward.2} parent=83 // pred_fallthru
          _
      $region84: #{gat_forward.2} parent=5 // pred_fallthru
        _
    $region6: #{gat_forward.2} parent=1 // loop_footer
      %s22 = sadd.s32 1, %s18
    $region7: #{gat_forward.2} parent=1 // loop_footer_branch
      %17 = sbr.rel target = $region3
    $region8: #{gat_forward.2} parent=1 // loop_exit
      _
    %2175 = vsyncpa [#allocation8], 1
    %s2176 = scalar_lea.sflag [#allocation8], 1
    %2177 = vsyncpa %s2176, 1
    %2178 = vsyncpa [#allocation10], 1
    %2179 = vsyncpa [#allocation13], 1

// kernel: gat_forward.3
$region0: #{gat_forward.3}
  #allocation0 [shape = 'u32[]', space=smem, size = 0x4, offset = 0x4, fixed_abs, tag = 'smem constant byte address 0x4 - core index']
  #allocation1 [shape = 'u32[144,128]{1,0:T(1,128)}', space=vmem, size = 0x12000, scoped, tag = 'internal scratch']
  #allocation2 [shape = 'f32[8,128]{1,0:T(8,128)}', space=vmem, size = 0x1000, scoped, tag = 'scratch operand']
  #allocation3 [shape = 'f32[8,128]{1,0:T(8,128)}', space=vmem, size = 0x1000, scoped, tag = 'scratch operand']
  #allocation4 [shape = 'f32[8,1]{1,0:T(8,128)}', space=vmem, size = 0x1000, scoped, tag = 'scratch operand']
  #allocation5 [shape = 'f32[8,1]{1,0:T(8,128)}', space=vmem, size = 0x1000, scoped, tag = 'scratch operand']
  #allocation6 [shape = 'f32[8,128]{1,0:T(8,128)}', space=vmem, size = 0x1000, scoped, tag = 'scratch operand']
  %s0 = inlined_call_operand.vmem [shape: bf16[24,128], index: 0, kind: input, shape index: {}, may-alias: {0,1}]
  %s1 = inlined_call_operand.vmem [shape: bf16[24,128], index: 1, kind: input, shape index: {}, may-alias: {0,1}]
  %s2 = inlined_call_operand.vmem [shape: f32[24,24], index: 2, kind: input, shape index: {}]
  %s3 = inlined_call_operand.vmem [shape: f32[24,1], index: 3, kind: input, shape index: {}]
  %s4 = inlined_call_operand.vmem [shape: bf16[128,384], index: 4, kind: input, shape index: {}]
  %s5 = inlined_call_operand.vmem [shape: f32[1,384], index: 5, kind: input, shape index: {}]
  %s6 = inlined_call_operand.vmem [shape: f32[1,128], index: 6, kind: input, shape index: {}]
  %s7 = inlined_call_operand.hbm [shape: f32[24,128], index: 7, kind: output, shape index: {}]
  %s8 = sld [smem:[#allocation0]]
  $region69: #{gat_forward.3} parent=0
    _
  %s10 = ssub.s32 1, %s8
  %s11 = scalar_select 0, %s10, %s8
  $region1: #{gat_forward.3} parent=0
    #allocation7 [shape = 'u8[8192]{0}', space=vmem, size = 0x2000, scoped, tag = 'output window, operand 0']
    #allocation8 [shape = 's32[2]{0}', space=sflag, size = 0x8, scoped, tag = 'scoped memory for gat_forward.3']
    %12 = vsyncpa [#allocation8], 0
    %s13 = scalar_lea.sflag [#allocation8], 1
    %14 = vsyncpa %s13, 0
    loop: start=0, step=1, limit=5
    $region2: #{gat_forward.3} parent=1 // loop_pre_header
      _
    $region3: #{gat_forward.3} parent=1 // loop_header
      %s16 = sphi 0, %s20
      %p17 = scmp.ge.s32.totalorder %s16, 5
      %s23 = sphi 0, %s35
      %s24 = sphi 0, %s31
      %s25 = sphi 0, %s23
      %s26 = sphi 0, %s24
      %s27 = sphi 0, %s25
      %s28 = sphi 0, %s26
      %s38 = sphi 0, %s40
      %s41 = sphi 0, %s38
      %s42 = sphi 0, %s41
      %s58 = sphi 0, %s42
      %s64 = sphi 0, %s66
      %s67 = sphi 0, %s64
      %s68 = sphi 0, %s67
      %s84 = sphi 0, %s68
      %s92 = sphi 0, %s94
      %s95 = sphi 0, %s92
      %s96 = sphi 0, %s95
      %s112 = sphi 0, %s96
      %s118 = sphi 0, %s120
      %s121 = sphi 0, %s118
      %s122 = sphi 0, %s121
      %s138 = sphi 0, %s122
      %s142 = sphi 0, %s142
      %s144 = sphi 0, %s142
      %s145 = sphi 0, %s144
      %s159 = sphi 0, %s145
      %s163 = sphi 0, %s163
      %s165 = sphi 0, %s163
      %s166 = sphi 0, %s165
      %s180 = sphi 0, %s166
      %s184 = sphi 0, %s184
      %s186 = sphi 0, %s184
      %s187 = sphi 0, %s186
      %s201 = sphi 0, %s187
      %s207 = sphi 0, %s209
      %s210 = sphi 0, %s207
      %s211 = sphi 0, %s210
      %s227 = sphi 0, %s211
    $region4: #{gat_forward.3} parent=1 // loop_header_branch
      %19 = sbr.rel (%p17) target = $region8
    $region5: #{gat_forward.3} parent=1 // loop_body
      %s21 = ssub.s32 %s16, 1
      %s22 = ssub.s32 %s16, 2
      %s29 = sadd.s32 1, %s24
      %p30 = scmp.ge.s32.totalorder %s29, 1
      %s31 = scalar_select %p30, 0, %s29
      %s32 = sadd.s32 1, %s23
      %s33 = scalar_select %p30, %s32, %s23
      %p34 = scmp.ge.s32.totalorder %s33, 3
      %s35 = scalar_select %p34, 0, %s33
      %s36 = ssub.s32 %s23, %s35
      %p37 = scmp.eq.s32.totalorder %s36, 0
      %s39 = sadd.s32 %s38, 1
      %s40 = scalar_select %p37, %s38, %s39
      %p43 = pneg %p37
      %p44 = scmp.eq.s32.totalorder %s16, 2
      %p45 = por %p43, %p44
      %p46 = scmp.ne.s32.totalorder %s38, %s41
      %p47 = scmp.eq.s32.totalorder %s16, 0
      %p48 = por %p46, %p47
      %p49 = scmp.ne.s32.totalorder %s38, %s41
      %p50 = scmp.eq.s32.totalorder %s21, 2
      %p51 = por %p49, %p50
      %p52 = scmp.ne.s32.totalorder %s41, %s42
      %p53 = scmp.eq.s32.totalorder %s21, 0
      %p54 = por %p52, %p53
      %p55 = scmp.ne.s32.totalorder %s41, %s42
      %p56 = scmp.eq.s32.totalorder %s22, 2
      %p57 = por %p55, %p56
      %p59 = scmp.ne.s32.totalorder %s42, %s58
      %p60 = scmp.eq.s32.totalorder %s22, 0
      %p61 = por %p59, %p60
      %s62 = ssub.s32 %s24, %s31
      %p63 = scmp.eq.s32.totalorder %s62, 0
      %s65 = sadd.s32 %s64, 1
      %s66 = scalar_select %p63, %s64, %s65
      %p69 = pneg %p63
      %p70 = scmp.eq.s32.totalorder %s16, 2
      %p71 = por %p69, %p70
      %p72 = scmp.ne.s32.totalorder %s64, %s67
      %p73 = scmp.eq.s32.totalorder %s16, 0
      %p74 = por %p72, %p73
      %p75 = scmp.ne.s32.totalorder %s64, %s67
      %p76 = scmp.eq.s32.totalorder %s21, 2
      %p77 = por %p75, %p76
      %p78 = scmp.ne.s32.totalorder %s67, %s68
      %p79 = scmp.eq.s32.totalorder %s21, 0
      %p80 = por %p78, %p79
      %p81 = scmp.ne.s32.totalorder %s67, %s68
      %p82 = scmp.eq.s32.totalorder %s22, 2
      %p83 = por %p81, %p82
      %p85 = scmp.ne.s32.totalorder %s68, %s84
      %p86 = scmp.eq.s32.totalorder %s22, 0
      %p87 = por %p85, %p86
      %s88 = ssub.s32 %s23, %s35
      %s89 = ssub.s32 %s24, %s31
      %s90 = sor.u32 %s88, %s89
      %p91 = scmp.eq.s32.totalorder %s90, 0
      %s93 = sadd.s32 %s92, 1
      %s94 = scalar_select %p91, %s92, %s93
      %p97 = pneg %p91
      %p98 = scmp.eq.s32.totalorder %s16, 2
      %p99 = por %p97, %p98
      %p100 = scmp.ne.s32.totalorder %s92, %s95
      %p101 = scmp.eq.s32.totalorder %s16, 0
      %p102 = por %p100, %p101
      %p103 = scmp.ne.s32.totalorder %s92, %s95
      %p104 = scmp.eq.s32.totalorder %s21, 2
      %p105 = por %p103, %p104
      %p106 = scmp.ne.s32.totalorder %s95, %s96
      %p107 = scmp.eq.s32.totalorder %s21, 0
      %p108 = por %p106, %p107
      %p109 = scmp.ne.s32.totalorder %s95, %s96
      %p110 = scmp.eq.s32.totalorder %s22, 2
      %p111 = por %p109, %p110
      %p113 = scmp.ne.s32.totalorder %s96, %s112
      %p114 = scmp.eq.s32.totalorder %s22, 0
      %p115 = por %p113, %p114
      %s116 = ssub.s32 %s23, %s35
      %p117 = scmp.eq.s32.totalorder %s116, 0
      %s119 = sadd.s32 %s118, 1
      %s120 = scalar_select %p117, %s118, %s119
      %p123 = pneg %p117
      %p124 = scmp.eq.s32.totalorder %s16, 2
      %p125 = por %p123, %p124
      %p126 = scmp.ne.s32.totalorder %s118, %s121
      %p127 = scmp.eq.s32.totalorder %s16, 0
      %p128 = por %p126, %p127
      %p129 = scmp.ne.s32.totalorder %s118, %s121
      %p130 = scmp.eq.s32.totalorder %s21, 2
      %p131 = por %p129, %p130
      %p132 = scmp.ne.s32.totalorder %s121, %s122
      %p133 = scmp.eq.s32.totalorder %s21, 0
      %p134 = por %p132, %p133
      %p135 = scmp.ne.s32.totalorder %s121, %s122
      %p136 = scmp.eq.s32.totalorder %s22, 2
      %p137 = por %p135, %p136
      %p139 = scmp.ne.s32.totalorder %s122, %s138
      %p140 = scmp.eq.s32.totalorder %s22, 0
      %p141 = por %p139, %p140
      %s143 = sadd.s32 %s142, 1
      %p146 = scmp.eq.s32.totalorder %s16, 2
      %p147 = scmp.ne.s32.totalorder %s142, %s144
      %p148 = scmp.eq.s32.totalorder %s16, 0
      %p149 = por %p147, %p148
      %p150 = scmp.ne.s32.totalorder %s142, %s144
      %p151 = scmp.eq.s32.totalorder %s21, 2
      %p152 = por %p150, %p151
      %p153 = scmp.ne.s32.totalorder %s144, %s145
      %p154 = scmp.eq.s32.totalorder %s21, 0
      %p155 = por %p153, %p154
      %p156 = scmp.ne.s32.totalorder %s144, %s145
      %p157 = scmp.eq.s32.totalorder %s22, 2
      %p158 = por %p156, %p157
      %p160 = scmp.ne.s32.totalorder %s145, %s159
      %p161 = scmp.eq.s32.totalorder %s22, 0
      %p162 = por %p160, %p161
      %s164 = sadd.s32 %s163, 1
      %p167 = scmp.eq.s32.totalorder %s16, 2
      %p168 = scmp.ne.s32.totalorder %s163, %s165
      %p169 = scmp.eq.s32.totalorder %s16, 0
      %p170 = por %p168, %p169
      %p171 = scmp.ne.s32.totalorder %s163, %s165
      %p172 = scmp.eq.s32.totalorder %s21, 2
      %p173 = por %p171, %p172
      %p174 = scmp.ne.s32.totalorder %s165, %s166
      %p175 = scmp.eq.s32.totalorder %s21, 0
      %p176 = por %p174, %p175
      %p177 = scmp.ne.s32.totalorder %s165, %s166
      %p178 = scmp.eq.s32.totalorder %s22, 2
      %p179 = por %p177, %p178
      %p181 = scmp.ne.s32.totalorder %s166, %s180
      %p182 = scmp.eq.s32.totalorder %s22, 0
      %p183 = por %p181, %p182
      %s185 = sadd.s32 %s184, 1
      %p188 = scmp.eq.s32.totalorder %s16, 2
      %p189 = scmp.ne.s32.totalorder %s184, %s186
      %p190 = scmp.eq.s32.totalorder %s16, 0
      %p191 = por %p189, %p190
      %p192 = scmp.ne.s32.totalorder %s184, %s186
      %p193 = scmp.eq.s32.totalorder %s21, 2
      %p194 = por %p192, %p193
      %p195 = scmp.ne.s32.totalorder %s186, %s187
      %p196 = scmp.eq.s32.totalorder %s21, 0
      %p197 = por %p195, %p196
      %p198 = scmp.ne.s32.totalorder %s186, %s187
      %p199 = scmp.eq.s32.totalorder %s22, 2
      %p200 = por %p198, %p199
      %p202 = scmp.ne.s32.totalorder %s187, %s201
      %p203 = scmp.eq.s32.totalorder %s22, 0
      %p204 = por %p202, %p203
      %s205 = ssub.s32 %s23, %s35
      %p206 = scmp.eq.s32.totalorder %s205, 0
      %s208 = sadd.s32 %s207, 1
      %s209 = scalar_select %p206, %s207, %s208
      %p212 = pneg %p206
      %p213 = scmp.eq.s32.totalorder %s16, 2
      %p214 = por %p212, %p213
      %p215 = scmp.ne.s32.totalorder %s207, %s210
      %p216 = scmp.eq.s32.totalorder %s16, 0
      %p217 = por %p215, %p216
      %p218 = scmp.ne.s32.totalorder %s207, %s210
      %p219 = scmp.eq.s32.totalorder %s21, 2
      %p220 = por %p218, %p219
      %p221 = scmp.ne.s32.totalorder %s210, %s211
      %p222 = scmp.eq.s32.totalorder %s21, 0
      %p223 = por %p221, %p222
      %p224 = scmp.ne.s32.totalorder %s210, %s211
      %p225 = scmp.eq.s32.totalorder %s22, 2
      %p226 = por %p224, %p225
      %p228 = scmp.ne.s32.totalorder %s211, %s227
      %p229 = scmp.eq.s32.totalorder %s22, 0
      %p230 = por %p228, %p229
      %p231 = scmp.le.s32.totalorder 1, %s16
      %p232 = scmp.lt.s32.totalorder %s16, 4
      %p233 = pnand %p231, %p232
      %p234 = pneg %p233
      // Predicated region
      $region9: #{gat_forward.3} parent=5 // pred_check
        _
      $region10: #{gat_forward.3} parent=5 // pred_check_branch
        %236 = sbr.rel (%p233) target = $region12
      $region11: #{gat_forward.3} parent=5 // pred_region
        %s237 = ssub.s32 %s16, 1
        // Predicated region
        $region13: #{gat_forward.3} parent=11 // pred_check
          %p238 = pneg %p80
        $region14: #{gat_forward.3} parent=11 // pred_check_branch
          %240 = sbr.rel (%p238) target = $region16
        $region15: #{gat_forward.3} parent=11 // pred_region
          %s241 = smul.u32 3, %s26
          %p242 = scmp.lt.s32.totalorder %s241, 2
          %s243 = scalar_select %p242, %s241, 2
          %s244 = smul.addr %s243, 4
          %s245 = scalar_lea.vmem %s1, %s244
          %s246 = smul.u32 3, %s26
        $region16: #{gat_forward.3} parent=11 // pred_fallthru
          _
        // Predicated region
        $region17: #{gat_forward.3} parent=11 // pred_check
          %p247 = pneg %p155
        $region18: #{gat_forward.3} parent=11 // pred_check_branch
          %249 = sbr.rel (%p247) target = $region20
        $region19: #{gat_forward.3} parent=11 // pred_region
          _
        $region20: #{gat_forward.3} parent=11 // pred_fallthru
          _
        // Predicated region
        $region21: #{gat_forward.3} parent=11 // pred_check
          %p250 = pneg %p176
        $region22: #{gat_forward.3} parent=11 // pred_check_branch
          %252 = sbr.rel (%p250) target = $region24
        $region23: #{gat_forward.3} parent=11 // pred_region
          _
        $region24: #{gat_forward.3} parent=11 // pred_fallthru
          _
        // Predicated region
        $region25: #{gat_forward.3} parent=11 // pred_check
          %p253 = pneg %p197
        $region26: #{gat_forward.3} parent=11 // pred_check_branch
          %255 = sbr.rel (%p253) target = $region28
        $region27: #{gat_forward.3} parent=11 // pred_region
          _
        $region28: #{gat_forward.3} parent=11 // pred_fallthru
          _
      $region12: #{gat_forward.3} parent=5 // pred_fallthru
        _
      %p256 = scmp.lt.s32.totalorder %s16, 3
      // Predicated region
      $region29: #{gat_forward.3} parent=5 // pred_check
        %p257 = pneg %p256
      $region30: #{gat_forward.3} parent=5 // pred_check_branch
        %259 = sbr.rel (%p257) target = $region32
      $region31: #{gat_forward.3} parent=5 // pred_region
        // Predicated region
        $region33: #{gat_forward.3} parent=31 // pred_check
          %p260 = pneg %p48
        $region34: #{gat_forward.3} parent=31 // pred_check_branch
          %262 = sbr.rel (%p260) target = $region36
        $region35: #{gat_forward.3} parent=31 // pred_region
          %p263 = scmp.lt.s32.totalorder %s23, 2
          %s264 = scalar_select %p263, %s23, 2
          %s265 = smul.addr %s264, 4
          %s266 = scalar_lea.vmem %s0, %s265
        $region36: #{gat_forward.3} parent=31 // pred_fallthru
          _
        // Predicated region
        $region37: #{gat_forward.3} parent=31 // pred_check
          %p267 = pneg %p102
        $region38: #{gat_forward.3} parent=31 // pred_check_branch
          %269 = sbr.rel (%p267) target = $region40
        $region39: #{gat_forward.3} parent=31 // pred_region
          %p270 = scmp.lt.s32.totalorder %s23, 2
          %s271 = scalar_select %p270, %s23, 2
          %p272 = scmp.lt.s32.totalorder %s24, 0
          %s273 = scalar_select %p272, %s24, 0
          %s274 = sadd.s32 %s273, %s271
          %s275 = smul.addr %s274, 8
          %s276 = scalar_lea.vmem %s2, %s275
        $region40: #{gat_forward.3} parent=31 // pred_fallthru
          _
        // Predicated region
        $region41: #{gat_forward.3} parent=31 // pred_check
          %p277 = pneg %p128
        $region42: #{gat_forward.3} parent=31 // pred_check_branch
          %279 = sbr.rel (%p277) target = $region44
        $region43: #{gat_forward.3} parent=31 // pred_region
          %p280 = scmp.lt.s32.totalorder %s23, 2
          %s281 = scalar_select %p280, %s23, 2
          %s282 = smul.addr %s281, 8
          %s283 = scalar_lea.vmem %s3, %s282
        $region44: #{gat_forward.3} parent=31 // pred_fallthru
          _
      $region32: #{gat_forward.3} parent=5 // pred_fallthru
        _
      %p284 = scmp.le.s32.totalorder 1, %s16
      %p285 = scmp.lt.s32.totalorder %s16, 4
      %p286 = pnand %p284, %p285
      %p287 = pneg %p286
      // Predicated region
      $region45: #{gat_forward.3} parent=5 // pred_check
        _
      $region46: #{gat_forward.3} parent=5 // pred_check_branch
        %289 = sbr.rel (%p286) target = $region48
      $region47: #{gat_forward.3} parent=5 // pred_region
        %s290 = ssub.s32 %s16, 1
        %p291 = scmp.lt.s32.totalorder %s25, 2
        %s292 = scalar_select %p291, %s25, 2
        %s293 = smul.addr %s292, 4
        %s294 = scalar_lea.vmem %s0, %s293
        %p295 = pneg %p54
        %p296 = pneg %p51
        %s297 = smul.u32 3, %s26
        %p298 = scmp.lt.s32.totalorder %s297, 2
        %s299 = scalar_select %p298, %s297, 2
        %s300 = smul.addr %s299, 4
        %s301 = scalar_lea.vmem %s1, %s300
        %p302 = pneg %p80
        %p303 = pneg %p77
        %p304 = scmp.lt.s32.totalorder %s25, 2
        %s305 = scalar_select %p304, %s25, 2
        %p306 = scmp.lt.s32.totalorder %s26, 0
        %s307 = scalar_select %p306, %s26, 0
        %s308 = sadd.s32 %s307, %s305
        %s309 = smul.addr %s308, 8
        %s310 = scalar_lea.vmem %s2, %s309
        %p311 = pneg %p108
        %p312 = pneg %p105
        %p313 = scmp.lt.s32.totalorder %s25, 2
        %s314 = scalar_select %p313, %s25, 2
        %s315 = smul.addr %s314, 8
        %s316 = scalar_lea.vmem %s3, %s315
        %p317 = pneg %p134
        %p318 = pneg %p131
        %p319 = pneg %p155
        %p320 = pneg %p152
        %p321 = pneg %p176
        %p322 = pneg %p173
        %p323 = pneg %p197
        %p324 = pneg %p194
        %p325 = pneg %p223
        %p326 = pneg %p220
        %s327 = sand.u32 %s210, 1
        %s328 = scalar_lea.sflag [#allocation8], %s327
        %s329 = sand.u32 %s210, 1
        %s330 = smul.addr %s329, 8
        %s331 = scalar_lea.vmem [#allocation7], %s330
        %p332 = scmp.lt.s32.totalorder %s25, 2
        %s333 = scalar_select %p332, %s25, 2
        %s334 = smul.addr %s333, 4
        %s335 = scalar_lea.vmem %s0, %s334
        %s336 = smul.u32 3, %s26
        %p337 = scmp.lt.s32.totalorder %s336, 2
        %s338 = scalar_select %p337, %s336, 2
        %s339 = smul.addr %s338, 4
        %s340 = scalar_lea.vmem %s1, %s339
        %s341 = smul.u32 3, %s26
        %p342 = scmp.lt.s32.totalorder %s25, 2
        %s343 = scalar_select %p342, %s25, 2
        %p344 = scmp.lt.s32.totalorder %s26, 0
        %s345 = scalar_select %p344, %s26, 0
        %s346 = sadd.s32 %s345, %s343
        %s347 = smul.addr %s346, 8
        %s348 = scalar_lea.vmem %s2, %s347
        %p349 = scmp.lt.s32.totalorder %s25, 2
        %s350 = scalar_select %p349, %s25, 2
        %s351 = smul.addr %s350, 8
        %s352 = scalar_lea.vmem %s3, %s351
        %p354 = scmp.eq.s32.totalorder %s26, 0
        // Predicated region
        $region49: #{gat_forward.3} parent=47 // pred_check
          %p355 = pneg %p354
        $region50: #{gat_forward.3} parent=47 // pred_check_branch
          %357 = sbr.rel (%p355) target = $region52
        $region51: #{gat_forward.3} parent=47 // pred_region
          %v358 = vld [vmem:[%s335] sm:$0xf]
          %v359 = vld [vmem:[%s4] sm:$0xff]
          %v360 = vld [vmem:[%s4 + $0x8] sm:$0xf]
          %v361 = vld [vmem:[%s4 + $0xc] sm:$0xff]
          %v362 = vld [vmem:[%s4 + $0x14] sm:$0xf]
          %v363 = vld [vmem:[%s4 + $0x18] sm:$0xff]
          %v364 = vld [vmem:[%s4 + $0x20] sm:$0xf]
          %v365 = vld [vmem:[%s4 + $0x24] sm:$0xff]
          %v366 = vld [vmem:[%s4 + $0x2c] sm:$0xf]
          %v367 = vld [vmem:[%s4 + $0x30] sm:$0xff]
          %v368 = vld [vmem:[%s4 + $0x38] sm:$0xf]
          %v369 = vld [vmem:[%s4 + $0x3c] sm:$0xff]
          %v370 = vld [vmem:[%s4 + $0x44] sm:$0xf]
          %v371 = vld [vmem:[%s4 + $0x48] sm:$0xff]
          %v372 = vld [vmem:[%s4 + $0x50] sm:$0xf]
          %v373 = vld [vmem:[%s4 + $0x54] sm:$0xff]
          %v374 = vld [vmem:[%s4 + $0x5c] sm:$0xf]
          %v375 = vld [vmem:[%s4 + $0x60] sm:$0xff]
          %v376 = vld [vmem:[%s4 + $0x68] sm:$0xf]
          %v377 = vld [vmem:[%s4 + $0x6c] sm:$0xff]
          %v378 = vld [vmem:[%s4 + $0x74] sm:$0xf]
          %v379 = vld [vmem:[%s4 + $0x78] sm:$0xff]
          %v380 = vld [vmem:[%s4 + $0x80] sm:$0xf]
          %v381 = vld [vmem:[%s4 + $0x84] sm:$0xff]
          %v382 = vld [vmem:[%s4 + $0x8c] sm:$0xf]
          %v383 = vld [vmem:[%s4 + $0x90] sm:$0xff]
          %v384 = vld [vmem:[%s4 + $0x98] sm:$0xf]
          %v385 = vld [vmem:[%s4 + $0x9c] sm:$0xff]
          %v386 = vld [vmem:[%s4 + $0xa4] sm:$0xf]
          %v387 = vld [vmem:[%s4 + $0xa8] sm:$0xff]
          %v388 = vld [vmem:[%s4 + $0xb0] sm:$0xf]
          %v389 = vld [vmem:[%s4 + $0xb4] sm:$0xff]
          %v390 = vld [vmem:[%s4 + $0xbc] sm:$0xf]
          %v391 = vld [vmem:[%s5] sm:$0x7]
          %v393 = vlaneseq
          %v394 = vshrl.u32 %v393, 7
          %v395 = vsub.s32 1, %v394
          %v396 = vrot.slane %v391, %v395
          %v397 = vlaneseq
          %v398 = vshrl.u32 %v397, 7
          %v399 = vsub.s32 2, %v398
          %v400 = vrot.slane %v391, %v399
          %v435 = vunpack.c.l.b16 %v359
          %v436 = vunpack.c.h.b16 %v359
          %v437 = vunpack.c.l.b16 %v360
          %v438 = vunpack.c.l.b16 %v361
          %v439 = vunpack.c.h.b16 %v361
          %v440 = vunpack.c.l.b16 %v362
          %v441 = vunpack.c.l.b16 %v363
          %v442 = vunpack.c.h.b16 %v363
          %v443 = vunpack.c.l.b16 %v364
          %v444 = vunpack.c.l.b16 %v365
          %v445 = vunpack.c.h.b16 %v365
          %v446 = vunpack.c.l.b16 %v366
          %v447 = vunpack.c.l.b16 %v367
          %v448 = vunpack.c.h.b16 %v367
          %v449 = vunpack.c.l.b16 %v368
          %v450 = vunpack.c.l.b16 %v369
          %v451 = vunpack.c.h.b16 %v369
          %v452 = vunpack.c.l.b16 %v370
          %v453 = vunpack.c.l.b16 %v371
          %v454 = vunpack.c.h.b16 %v371
          %v455 = vunpack.c.l.b16 %v372
          %v456 = vunpack.c.l.b16 %v373
          %v457 = vunpack.c.h.b16 %v373
          %v458 = vunpack.c.l.b16 %v374
          %v459 = vunpack.c.l.b16 %v375
          %v460 = vunpack.c.h.b16 %v375
          %v461 = vunpack.c.l.b16 %v376
          %v462 = vunpack.c.l.b16 %v377
          %v463 = vunpack.c.h.b16 %v377
          %v464 = vunpack.c.l.b16 %v378
          %v465 = vunpack.c.l.b16 %v379
          %v466 = vunpack.c.h.b16 %v379
          %v467 = vunpack.c.l.b16 %v380
          %v468 = vunpack.c.l.b16 %v381
          %v469 = vunpack.c.h.b16 %v381
          %v470 = vunpack.c.l.b16 %v382
          %v471 = vunpack.c.l.b16 %v383
          %v472 = vunpack.c.h.b16 %v383
          %v473 = vunpack.c.l.b16 %v384
          %v474 = vunpack.c.l.b16 %v385
          %v475 = vunpack.c.h.b16 %v385
          %v476 = vunpack.c.l.b16 %v386
          %v477 = vunpack.c.l.b16 %v387
          %v478 = vunpack.c.h.b16 %v387
          %v479 = vunpack.c.l.b16 %v388
          %v480 = vunpack.c.l.b16 %v389
          %v481 = vunpack.c.h.b16 %v389
          %v482 = vunpack.c.l.b16 %v390
          %v483 = vpack.c.b16 %v438, %v435
          %v484 = vpack.c.b16 %v439, %v436
          %v485 = vpack.c.b16 %v440, %v437
          %v486 = vpack.c.b16 %v444, %v441
          %v487 = vpack.c.b16 %v445, %v442
          %v488 = vpack.c.b16 %v446, %v443
          %v489 = vpack.c.b16 %v450, %v447
          %v490 = vpack.c.b16 %v451, %v448
          %v491 = vpack.c.b16 %v452, %v449
          %v492 = vpack.c.b16 %v456, %v453
          %v493 = vpack.c.b16 %v457, %v454
          %v494 = vpack.c.b16 %v458, %v455
          %v495 = vpack.c.b16 %v462, %v459
          %v496 = vpack.c.b16 %v463, %v460
          %v497 = vpack.c.b16 %v464, %v461
          %v498 = vpack.c.b16 %v468, %v465
          %v499 = vpack.c.b16 %v469, %v466
          %v500 = vpack.c.b16 %v470, %v467
          %v501 = vpack.c.b16 %v474, %v471
          %v502 = vpack.c.b16 %v475, %v472
          %v503 = vpack.c.b16 %v476, %v473
          %v504 = vpack.c.b16 %v480, %v477
          %v505 = vpack.c.b16 %v481, %v478
          %v506 = vpack.c.b16 %v482, %v479
          %531 = vmatprep.subr.bf16.mxu0 %v484
          %532 = vmatpush1.bf16.msra.mxu0 %v483
          %533 = vmatprep.subr.bf16.mxu0 %v487
          %534 = vmatpush1.bf16.msra.mxu0 %v486
          %535 = vmatprep.subr.bf16.mxu0 %v490
          %536 = vmatpush1.bf16.msra.mxu0 %v489
          %537 = vmatprep.subr.bf16.mxu0 %v493
          %538 = vmatpush1.bf16.msra.mxu0 %v492
          %539 = vmatprep.subr.bf16.mxu0 %v496
          %540 = vmatpush1.bf16.msra.mxu0 %v495
          %541 = vmatprep.subr.bf16.mxu0 %v499
          %542 = vmatpush1.bf16.msra.mxu0 %v498
          %543 = vmatprep.subr.bf16.mxu0 %v502
          %544 = vmatpush1.bf16.msra.mxu0 %v501
          %545 = vmatprep.subr.bf16.mxu0 %v505
          %546 = vmatpush1.bf16.msra.mxu0 %v504
          %547 = vmatprep.subr.bf16.mxu0 0
          %548 = vmatpush1.bf16.msra.mxu0 0
          %549 = vmatprep.subr.bf16.mxu0 0
          %550 = vmatpush1.bf16.msra.mxu0 0
          %551 = vmatprep.subr.bf16.mxu0 0
          %552 = vmatpush1.bf16.msra.mxu0 0
          %553 = vmatprep.subr.bf16.mxu0 0
          %554 = vmatpush1.bf16.msra.mxu0 0
          %555 = vmatprep.subr.bf16.mxu0 0
          %556 = vmatpush1.bf16.msra.mxu0 0
          %557 = vmatprep.subr.bf16.mxu0 0
          %558 = vmatpush1.bf16.msra.mxu0 0
          %559 = vmatprep.subr.bf16.mxu0 0
          %560 = vmatpush1.bf16.msra.mxu0 0
          %561 = vmatprep.subr.bf16.mxu0 0
          %562 = vmatpush1.bf16.msra.mxu0 0
          %563 = vmatprep.mubr.bf16.mxu0 0
          %564 = vmatmul.mubr.bf16.gmra.mrb[0].mxu0 %v358
          %v565 = vpop.f32.mrb[0].mxu0
          %v566 = vpop.f32.mrb[0].mxu0
          %v567 = vadd.f32 %v396, %v566
          %v568 = vpop.f32.mrb[0].mxu0
          %v569 = vpop.f32.mrb[0].mxu0
          %570 = vdwg.mxu0
          %571 = vmatprep.subr.bf16.mxu0 0
          %572 = vmatpush1.bf16.msra.mxu0 %v485
          %573 = vmatprep.subr.bf16.mxu0 0
          %574 = vmatpush1.bf16.msra.mxu0 %v488
          %575 = vmatprep.subr.bf16.mxu0 0
          %576 = vmatpush1.bf16.msra.mxu0 %v491
          %577 = vmatprep.subr.bf16.mxu0 0
          %578 = vmatpush1.bf16.msra.mxu0 %v494
          %579 = vmatprep.subr.bf16.mxu0 0
          %580 = vmatpush1.bf16.msra.mxu0 %v497
          %581 = vmatprep.subr.bf16.mxu0 0
          %582 = vmatpush1.bf16.msra.mxu0 %v500
          %583 = vmatprep.subr.bf16.mxu0 0
          %584 = vmatpush1.bf16.msra.mxu0 %v503
          %585 = vmatprep.subr.bf16.mxu0 0
          %586 = vmatpush1.bf16.msra.mxu0 %v506
          %587 = vmatprep.subr.bf16.mxu0 0
          %588 = vmatpush1.bf16.msra.mxu0 0
          %589 = vmatprep.subr.bf16.mxu0 0
          %590 = vmatpush1.bf16.msra.mxu0 0
          %591 = vmatprep.subr.bf16.mxu0 0
          %592 = vmatpush1.bf16.msra.mxu0 0
          %593 = vmatprep.subr.bf16.mxu0 0
          %594 = vmatpush1.bf16.msra.mxu0 0
          %595 = vmatprep.subr.bf16.mxu0 0
          %596 = vmatpush1.bf16.msra.mxu0 0
          %597 = vmatprep.subr.bf16.mxu0 0
          %598 = vmatpush1.bf16.msra.mxu0 0
          %599 = vmatprep.subr.bf16.mxu0 0
          %600 = vmatpush1.bf16.msra.mxu0 0
          %601 = vmatprep.subr.bf16.mxu0 0
          %602 = vmatpush1.bf16.msra.mxu0 0
          %603 = vmatprep.mubr.bf16.mxu0 0
          %604 = vmatmul.mubr.bf16.gmra.mrb[0].mxu0 %v358
          %v605 = vpop.f32.mrb[0].mxu0
          %v606 = vadd.f32 %v400, %v605
          %v607 = vpop.f32.mrb[0].mxu0
          %v608 = vpop.f32.mrb[0].mxu0
          %v609 = vpop.f32.mrb[0].mxu0
          %610 = vdwg.mxu0
          %611 = vst [vmem:[#allocation2] sm:$0xff] %v567
          %612 = vst [vmem:[#allocation3] sm:$0xff] %v606
          %vm613 = vcmask 7168
          %614 = vst.msk [vmem:[#allocation4] sm:$0xff] %vm613, -inf
          %615 = vst.msk [vmem:[#allocation5] sm:$0xff] %vm613, 0.0
          %616 = vst [vmem:[#allocation6] sm:$0xff] 0.0
        $region52: #{gat_forward.3} parent=47 // pred_fallthru
          _
        %v617 = vld [vmem:[%s340] sm:$0xf]
        %v618 = vld [vmem:[%s340 + $0x4] sm:$0xf]
        %v619 = vld [vmem:[%s340 + $0x8] sm:$0xf]
        %v620 = vld [vmem:[%s4] sm:$0xf]
        %v621 = vld [vmem:[%s4 + $0xc] sm:$0xf]
        %v622 = vld [vmem:[%s4 + $0x18] sm:$0xf]
        %v623 = vld [vmem:[%s4 + $0x24] sm:$0xf]
        %v624 = vld [vmem:[%s4 + $0x30] sm:$0xf]
        %v625 = vld [vmem:[%s4 + $0x3c] sm:$0xf]
        %v626 = vld [vmem:[%s4 + $0x48] sm:$0xf]
        %v627 = vld [vmem:[%s4 + $0x54] sm:$0xf]
        %v628 = vld [vmem:[%s4 + $0x60] sm:$0xf]
        %v629 = vld [vmem:[%s4 + $0x6c] sm:$0xf]
        %v630 = vld [vmem:[%s4 + $0x78] sm:$0xf]
        %v631 = vld [vmem:[%s4 + $0x84] sm:$0xf]
        %v632 = vld [vmem:[%s4 + $0x90] sm:$0xf]
        %v633 = vld [vmem:[%s4 + $0x9c] sm:$0xf]
        %v634 = vld [vmem:[%s4 + $0xa8] sm:$0xf]
        %v635 = vld [vmem:[%s4 + $0xb4] sm:$0xf]
        %v636 = vld [vmem:[%s5] sm:$0x1]
        %v638 = vlaneseq
        %v639 = vshrl.u32 %v638, 7
        %v640 = vsub.s32 0, %v639
        %v641 = vrot.slane %v636, %v640
        %v646 = vunpack.c.l.b16 %v617
        %v647 = vunpack.c.l.b16 %v618
        %v648 = vunpack.c.l.b16 %v619
        %v649 = vpack.c.b16 %v647, %v646
        %v650 = vpack.c.b16 %v648, %v648
        %v669 = vunpack.c.l.b16 %v620
        %v670 = vunpack.c.l.b16 %v621
        %v671 = vunpack.c.l.b16 %v622
        %v672 = vunpack.c.l.b16 %v623
        %v673 = vunpack.c.l.b16 %v624
        %v674 = vunpack.c.l.b16 %v625
        %v675 = vunpack.c.l.b16 %v626
        %v676 = vunpack.c.l.b16 %v627
        %v677 = vunpack.c.l.b16 %v628
        %v678 = vunpack.c.l.b16 %v629
        %v679 = vunpack.c.l.b16 %v630
        %v680 = vunpack.c.l.b16 %v631
        %v681 = vunpack.c.l.b16 %v632
        %v682 = vunpack.c.l.b16 %v633
        %v683 = vunpack.c.l.b16 %v634
        %v684 = vunpack.c.l.b16 %v635
        %v685 = vpack.c.b16 %v670, %v669
        %v686 = vpack.c.b16 %v672, %v671
        %v687 = vpack.c.b16 %v674, %v673
        %v688 = vpack.c.b16 %v676, %v675
        %v689 = vpack.c.b16 %v678, %v677
        %v690 = vpack.c.b16 %v680, %v679
        %v691 = vpack.c.b16 %v682, %v681
        %v692 = vpack.c.b16 %v684, %v683
        %701 = vmatprep.subr.bf16.mxu0 0
        %702 = vmatpush1.bf16.msra.mxu0 %v685
        %703 = vmatprep.subr.bf16.mxu0 0
        %704 = vmatpush1.bf16.msra.mxu0 %v686
        %705 = vmatprep.subr.bf16.mxu0 0
        %706 = vmatpush1.bf16.msra.mxu0 %v687
        %707 = vmatprep.subr.bf16.mxu0 0
        %708 = vmatpush1.bf16.msra.mxu0 %v688
        %709 = vmatprep.subr.bf16.mxu0 0
        %710 = vmatpush1.bf16.msra.mxu0 %v689
        %711 = vmatprep.subr.bf16.mxu0 0
        %712 = vmatpush1.bf16.msra.mxu0 %v690
        %713 = vmatprep.subr.bf16.mxu0 0
        %714 = vmatpush1.bf16.msra.mxu0 %v691
        %715 = vmatprep.subr.bf16.mxu0 0
        %716 = vmatpush1.bf16.msra.mxu0 %v692
        %717 = vmatprep.subr.bf16.mxu0 0
        %718 = vmatpush1.bf16.msra.mxu0 0
        %719 = vmatprep.subr.bf16.mxu0 0
        %720 = vmatpush1.bf16.msra.mxu0 0
        %721 = vmatprep.subr.bf16.mxu0 0
        %722 = vmatpush1.bf16.msra.mxu0 0
        %723 = vmatprep.subr.bf16.mxu0 0
        %724 = vmatpush1.bf16.msra.mxu0 0
        %725 = vmatprep.subr.bf16.mxu0 0
        %726 = vmatpush1.bf16.msra.mxu0 0
        %727 = vmatprep.subr.bf16.mxu0 0
        %728 = vmatpush1.bf16.msra.mxu0 0
        %729 = vmatprep.subr.bf16.mxu0 0
        %730 = vmatpush1.bf16.msra.mxu0 0
        %731 = vmatprep.subr.bf16.mxu0 0
        %732 = vmatpush1.bf16.msra.mxu0 0
        %733 = vmatprep.mubr.bf16.mxu0 0
        %734 = vmatmul.mubr.bf16.gmra.mrb[0].mxu0 %v649
        %v735 = vpop.f32.mrb[0].mxu0
        %v736 = vadd.f32 %v641, %v735
        %v737 = vpop.f32.mrb[0].mxu0
        %v738 = vpop.f32.mrb[0].mxu0
        %v739 = vadd.f32 %v641, %v738
        %v740 = vpop.f32.mrb[0].mxu0
        %741 = vmatprep.mubr.bf16.mxu0 0
        %742 = vmatmul.mubr.bf16.gmra.mrb[0].mxu0 %v650
        %v743 = vpop.f32.mrb[0].mxu0
        %v744 = vadd.f32 %v641, %v743
        %v745 = vpop.f32.mrb[0].mxu0
        %v746 = vpop.f32.mrb[0].mxu0
        %v747 = vpop.f32.mrb[0].mxu0
        %748 = vdwg.mxu0
        %v749 = vld [vmem:[#allocation2] sm:$0xff]
        %v751 = vcombine.high %v749, %v749
        %v753 = vunpack.c.l.s4 1966171168
        %v754 = vunpack.c.0.s8 %v753
        %v755 = vlaneseq
        %v756 = vshrl.u32 %v755, 7
        %v757 = vsub.s32 %v754, %v756
        %v758 = vrot.slane %v749, %v757
        %v760 = vunpack.c.l.s4 1966171168
        %v761 = vunpack.c.0.s8 %v760
        %v762 = vlaneseq
        %v763 = vshrl.u32 %v762, 7
        %v764 = vsub.s32 %v761, %v763
        %v765 = vrot.slane %v751, %v764
        %v766 = vcombine.high %v758, %v758
        %v767 = vcombine.high %v765, %v765
        %v769 = vunpack.c.l.s4 1966171168
        %v770 = vunpack.c.0.s8 %v769
        %v771 = vlaneseq
        %v772 = vshrl.u32 %v771, 7
        %v773 = vsub.s32 %v770, %v772
        %v774 = vrot.slane %v758, %v773
        %v776 = vunpack.c.l.s4 1966171168
        %v777 = vunpack.c.0.s8 %v776
        %v778 = vlaneseq
        %v779 = vshrl.u32 %v778, 7
        %v780 = vsub.s32 %v777, %v779
        %v781 = vrot.slane %v765, %v780
        %v783 = vunpack.c.l.s4 1966171168
        %v784 = vunpack.c.0.s8 %v783
        %v785 = vlaneseq
        %v786 = vshrl.u32 %v785, 7
        %v787 = vsub.s32 %v784, %v786
        %v788 = vrot.slane %v766, %v787
        %v790 = vunpack.c.l.s4 1966171168
        %v791 = vunpack.c.0.s8 %v790
        %v792 = vlaneseq
        %v793 = vshrl.u32 %v792, 7
        %v794 = vsub.s32 %v791, %v793
        %v795 = vrot.slane %v767, %v794
        %v796 = vcombine.high %v774, %v774
        %v797 = vcombine.high %v781, %v781
        %v798 = vcombine.high %v788, %v788
        %v799 = vcombine.high %v795, %v795
        %v800 = vlaneseq
        %v801 = vshrl.u32 %v800, 7
        %v802 = vsub.s32 0, %v801
        %v803 = vrot.slane %v774, %v802
        %v804 = vlaneseq
        %v805 = vshrl.u32 %v804, 7
        %v806 = vsub.s32 0, %v805
        %v807 = vrot.slane %v788, %v806
        %v808 = vlaneseq
        %v809 = vshrl.u32 %v808, 7
        %v810 = vsub.s32 0, %v809
        %v811 = vrot.slane %v796, %v810
        %v812 = vlaneseq
        %v813 = vshrl.u32 %v812, 7
        %v814 = vsub.s32 0, %v813
        %v815 = vrot.slane %v798, %v814
        %v816 = vlaneseq
        %v817 = vshrl.u32 %v816, 7
        %v818 = vsub.s32 0, %v817
        %v819 = vrot.slane %v781, %v818
        %v820 = vlaneseq
        %v821 = vshrl.u32 %v820, 7
        %v822 = vsub.s32 0, %v821
        %v823 = vrot.slane %v795, %v822
        %v824 = vlaneseq
        %v825 = vshrl.u32 %v824, 7
        %v826 = vsub.s32 0, %v825
        %v827 = vrot.slane %v797, %v826
        %v828 = vlaneseq
        %v829 = vshrl.u32 %v828, 7
        %v830 = vsub.s32 0, %v829
        %v831 = vrot.slane %v799, %v830
        %v840 = vadd.f32 %v736, %v803
        %v841 = vadd.f32 %v739, %v803
        %v842 = vadd.f32 %v744, %v803
        %v843 = vadd.f32 %v736, %v807
        %v844 = vadd.f32 %v739, %v807
        %v845 = vadd.f32 %v744, %v807
        %v846 = vadd.f32 %v736, %v811
        %v847 = vadd.f32 %v739, %v811
        %v848 = vadd.f32 %v744, %v811
        %v849 = vadd.f32 %v736, %v815
        %v850 = vadd.f32 %v739, %v815
        %v851 = vadd.f32 %v744, %v815
        %v852 = vadd.f32 %v736, %v819
        %v853 = vadd.f32 %v739, %v819
        %v854 = vadd.f32 %v744, %v819
        %v855 = vadd.f32 %v736, %v823
        %v856 = vadd.f32 %v739, %v823
        %v857 = vadd.f32 %v744, %v823
        %v858 = vadd.f32 %v736, %v827
        %v859 = vadd.f32 %v739, %v827
        %v860 = vadd.f32 %v744, %v827
        %v861 = vadd.f32 %v736, %v831
        %v862 = vadd.f32 %v739, %v831
        %v863 = vadd.f32 %v744, %v831
        %vm864 = vcmp.gt.f32.partialorder %v840, 0.0
        %vm865 = vcmp.gt.f32.partialorder %v841, 0.0
        %vm866 = vcmp.gt.f32.partialorder %v842, 0.0
        %vm867 = vcmp.gt.f32.partialorder %v843, 0.0
        %vm868 = vcmp.gt.f32.partialorder %v844, 0.0
        %vm869 = vcmp.gt.f32.partialorder %v845, 0.0
        %vm870 = vcmp.gt.f32.partialorder %v846, 0.0
        %vm871 = vcmp.gt.f32.partialorder %v847, 0.0
        %vm872 = vcmp.gt.f32.partialorder %v848, 0.0
        %vm873 = vcmp.gt.f32.partialorder %v849, 0.0
        %vm874 = vcmp.gt.f32.partialorder %v850, 0.0
        %vm875 = vcmp.gt.f32.partialorder %v851, 0.0
        %vm876 = vcmp.gt.f32.partialorder %v852, 0.0
        %vm877 = vcmp.gt.f32.partialorder %v853, 0.0
        %vm878 = vcmp.gt.f32.partialorder %v854, 0.0
        %vm879 = vcmp.gt.f32.partialorder %v855, 0.0
        %vm880 = vcmp.gt.f32.partialorder %v856, 0.0
        %vm881 = vcmp.gt.f32.partialorder %v857, 0.0
        %vm882 = vcmp.gt.f32.partialorder %v858, 0.0
        %vm883 = vcmp.gt.f32.partialorder %v859, 0.0
        %vm884 = vcmp.gt.f32.partialorder %v860, 0.0
        %vm885 = vcmp.gt.f32.partialorder %v861, 0.0
        %vm886 = vcmp.gt.f32.partialorder %v862, 0.0
        %vm887 = vcmp.gt.f32.partialorder %v863, 0.0
        %v888 = vmul.f32 %v840, 0.2
        %v889 = vmul.f32 %v841, 0.2
        %v890 = vmul.f32 %v842, 0.2
        %v891 = vmul.f32 %v843, 0.2
        %v892 = vmul.f32 %v844, 0.2
        %v893 = vmul.f32 %v845, 0.2
        %v894 = vmul.f32 %v846, 0.2
        %v895 = vmul.f32 %v847, 0.2
        %v896 = vmul.f32 %v848, 0.2
        %v897 = vmul.f32 %v849, 0.2
        %v898 = vmul.f32 %v850, 0.2
        %v899 = vmul.f32 %v851, 0.2
        %v900 = vmul.f32 %v852, 0.2
        %v901 = vmul.f32 %v853, 0.2
        %v902 = vmul.f32 %v854, 0.2
        %v903 = vmul.f32 %v855, 0.2
        %v904 = vmul.f32 %v856, 0.2
        %v905 = vmul.f32 %v857, 0.2
        %v906 = vmul.f32 %v858, 0.2
        %v907 = vmul.f32 %v859, 0.2
        %v908 = vmul.f32 %v860, 0.2
        %v909 = vmul.f32 %v861, 0.2
        %v910 = vmul.f32 %v862, 0.2
        %v911 = vmul.f32 %v863, 0.2
        %v912 = vsel %vm864, %v840, %v888
        %v913 = vsel %vm865, %v841, %v889
        %v914 = vsel %vm866, %v842, %v890
        %v915 = vsel %vm867, %v843, %v891
        %v916 = vsel %vm868, %v844, %v892
        %v917 = vsel %vm869, %v845, %v893
        %v918 = vsel %vm870, %v846, %v894
        %v919 = vsel %vm871, %v847, %v895
        %v920 = vsel %vm872, %v848, %v896
        %v921 = vsel %vm873, %v849, %v897
        %v922 = vsel %vm874, %v850, %v898
        %v923 = vsel %vm875, %v851, %v899
        %v924 = vsel %vm876, %v852, %v900
        %v925 = vsel %vm877, %v853, %v901
        %v926 = vsel %vm878, %v854, %v902
        %v927 = vsel %vm879, %v855, %v903
        %v928 = vsel %vm880, %v856, %v904
        %v929 = vsel %vm881, %v857, %v905
        %v930 = vsel %vm882, %v858, %v906
        %v931 = vsel %vm883, %v859, %v907
        %v932 = vsel %vm884, %v860, %v908
        %v933 = vsel %vm885, %v861, %v909
        %v934 = vsel %vm886, %v862, %v910
        %v935 = vsel %vm887, %v863, %v911
        %v936 = vld [vmem:[%s6] sm:$0x1]
        %v938 = vlaneseq
        %v939 = vshrl.u32 %v938, 7
        %v940 = vsub.s32 0, %v939
        %v941 = vrot.slane %v936, %v940
        %v943 = vmul.f32 %v912, %v941
        %v944 = vmul.f32 %v913, %v941
        %v945 = vmul.f32 %v914, %v941
        %v946 = vmul.f32 %v915, %v941
        %v947 = vmul.f32 %v916, %v941
        %v948 = vmul.f32 %v917, %v941
        %v949 = vmul.f32 %v918, %v941
        %v950 = vmul.f32 %v919, %v941
        %v951 = vmul.f32 %v920, %v941
        %v952 = vmul.f32 %v921, %v941
        %v953 = vmul.f32 %v922, %v941
        %v954 = vmul.f32 %v923, %v941
        %v955 = vmul.f32 %v924, %v941
        %v956 = vmul.f32 %v925, %v941
        %v957 = vmul.f32 %v926, %v941
        %v958 = vmul.f32 %v927, %v941
        %v959 = vmul.f32 %v928, %v941
        %v960 = vmul.f32 %v929, %v941
        %v961 = vmul.f32 %v930, %v941
        %v962 = vmul.f32 %v931, %v941
        %v963 = vmul.f32 %v932, %v941
        %v964 = vmul.f32 %v933, %v941
        %v965 = vmul.f32 %v934, %v941
        %v966 = vmul.f32 %v935, %v941
        %967 = vadd.xlane.f32.xlu0 %v943
        %v968 = vpop.xlane.xlu0 %967
        %969 = vadd.xlane.f32.xlu0 %v944
        %v970 = vpop.xlane.xlu0 %969
        %971 = vadd.xlane.f32.xlu0 %v945
        %v972 = vpop.xlane.xlu0 %971
        %973 = vadd.xlane.f32.xlu0 %v946
        %v974 = vpop.xlane.xlu0 %973
        %975 = vadd.xlane.f32.xlu0 %v947
        %v976 = vpop.xlane.xlu0 %975
        %977 = vadd.xlane.f32.xlu0 %v948
        %v978 = vpop.xlane.xlu0 %977
        %979 = vadd.xlane.f32.xlu0 %v949
        %v980 = vpop.xlane.xlu0 %979
        %981 = vadd.xlane.f32.xlu0 %v950
        %v982 = vpop.xlane.xlu0 %981
        %983 = vadd.xlane.f32.xlu0 %v951
        %v984 = vpop.xlane.xlu0 %983
        %985 = vadd.xlane.f32.xlu0 %v952
        %v986 = vpop.xlane.xlu0 %985
        %987 = vadd.xlane.f32.xlu0 %v953
        %v988 = vpop.xlane.xlu0 %987
        %989 = vadd.xlane.f32.xlu0 %v954
        %v990 = vpop.xlane.xlu0 %989
        %991 = vadd.xlane.f32.xlu0 %v955
        %v992 = vpop.xlane.xlu0 %991
        %993 = vadd.xlane.f32.xlu0 %v956
        %v994 = vpop.xlane.xlu0 %993
        %995 = vadd.xlane.f32.xlu0 %v957
        %v996 = vpop.xlane.xlu0 %995
        %997 = vadd.xlane.f32.xlu0 %v958
        %v998 = vpop.xlane.xlu0 %997
        %999 = vadd.xlane.f32.xlu0 %v959
        %v1000 = vpop.xlane.xlu0 %999
        %1001 = vadd.xlane.f32.xlu0 %v960
        %v1002 = vpop.xlane.xlu0 %1001
        %1003 = vadd.xlane.f32.xlu0 %v961
        %v1004 = vpop.xlane.xlu0 %1003
        %1005 = vadd.xlane.f32.xlu0 %v962
        %v1006 = vpop.xlane.xlu0 %1005
        %1007 = vadd.xlane.f32.xlu0 %v963
        %v1008 = vpop.xlane.xlu0 %1007
        %1009 = vadd.xlane.f32.xlu0 %v964
        %v1010 = vpop.xlane.xlu0 %1009
        %1011 = vadd.xlane.f32.xlu0 %v965
        %v1012 = vpop.xlane.xlu0 %1011
        %1013 = vadd.xlane.f32.xlu0 %v966
        %v1014 = vpop.xlane.xlu0 %1013
        %v1015 = vld [vmem:[%s348] sm:$0xff]
        %v1017 = vlaneseq
        %v1018 = vshrl.u32 %v1017, 7
        %v1019 = vsub.s32 0, %v1018
        %v1020 = vrot.slane %v1015, %v1019
        %1022 = vbcast.lane.b32.xlu0 %v1020, 256
        %v1023 = vpop.permute.xlu0 %1022
        %s1025 = sor.u32 256, 8
        %1026 = vbcast.lane.b32.xlu0 %v1020, %s1025
        %v1027 = vpop.permute.xlu0 %1026
        %s1029 = sor.u32 256, 16
        %1030 = vbcast.lane.b32.xlu0 %v1020, %s1029
        %v1031 = vpop.permute.xlu0 %1030
        %v1032 = vlaneseq
        %v1033 = vshrl.u32 %v1032, 7
        %v1034 = vsub.s32 1, %v1033
        %v1035 = vrot.slane %v1015, %v1034
        %1037 = vbcast.lane.b32.xlu0 %v1035, 256
        %v1038 = vpop.permute.xlu0 %1037
        %s1040 = sor.u32 256, 8
        %1041 = vbcast.lane.b32.xlu0 %v1035, %s1040
        %v1042 = vpop.permute.xlu0 %1041
        %s1044 = sor.u32 256, 16
        %1045 = vbcast.lane.b32.xlu0 %v1035, %s1044
        %v1046 = vpop.permute.xlu0 %1045
        %v1047 = vlaneseq
        %v1048 = vshrl.u32 %v1047, 7
        %v1049 = vsub.s32 2, %v1048
        %v1050 = vrot.slane %v1015, %v1049
        %1052 = vbcast.lane.b32.xlu0 %v1050, 256
        %v1053 = vpop.permute.xlu0 %1052
        %s1055 = sor.u32 256, 8
        %1056 = vbcast.lane.b32.xlu0 %v1050, %s1055
        %v1057 = vpop.permute.xlu0 %1056
        %s1059 = sor.u32 256, 16
        %1060 = vbcast.lane.b32.xlu0 %v1050, %s1059
        %v1061 = vpop.permute.xlu0 %1060
        %v1062 = vlaneseq
        %v1063 = vshrl.u32 %v1062, 7
        %v1064 = vsub.s32 3, %v1063
        %v1065 = vrot.slane %v1015, %v1064
        %1067 = vbcast.lane.b32.xlu0 %v1065, 256
        %v1068 = vpop.permute.xlu0 %1067
        %s1070 = sor.u32 256, 8
        %1071 = vbcast.lane.b32.xlu0 %v1065, %s1070
        %v1072 = vpop.permute.xlu0 %1071
        %s1074 = sor.u32 256, 16
        %1075 = vbcast.lane.b32.xlu0 %v1065, %s1074
        %v1076 = vpop.permute.xlu0 %1075
        %v1077 = vlaneseq
        %v1078 = vshrl.u32 %v1077, 7
        %v1079 = vsub.s32 4, %v1078
        %v1080 = vrot.slane %v1015, %v1079
        %1082 = vbcast.lane.b32.xlu0 %v1080, 256
        %v1083 = vpop.permute.xlu0 %1082
        %s1085 = sor.u32 256, 8
        %1086 = vbcast.lane.b32.xlu0 %v1080, %s1085
        %v1087 = vpop.permute.xlu0 %1086
        %s1089 = sor.u32 256, 16
        %1090 = vbcast.lane.b32.xlu0 %v1080, %s1089
        %v1091 = vpop.permute.xlu0 %1090
        %v1092 = vlaneseq
        %v1093 = vshrl.u32 %v1092, 7
        %v1094 = vsub.s32 5, %v1093
        %v1095 = vrot.slane %v1015, %v1094
        %1097 = vbcast.lane.b32.xlu0 %v1095, 256
        %v1098 = vpop.permute.xlu0 %1097
        %s1100 = sor.u32 256, 8
        %1101 = vbcast.lane.b32.xlu0 %v1095, %s1100
        %v1102 = vpop.permute.xlu0 %1101
        %s1104 = sor.u32 256, 16
        %1105 = vbcast.lane.b32.xlu0 %v1095, %s1104
        %v1106 = vpop.permute.xlu0 %1105
        %v1107 = vlaneseq
        %v1108 = vshrl.u32 %v1107, 7
        %v1109 = vsub.s32 6, %v1108
        %v1110 = vrot.slane %v1015, %v1109
        %1112 = vbcast.lane.b32.xlu0 %v1110, 256
        %v1113 = vpop.permute.xlu0 %1112
        %s1115 = sor.u32 256, 8
        %1116 = vbcast.lane.b32.xlu0 %v1110, %s1115
        %v1117 = vpop.permute.xlu0 %1116
        %s1119 = sor.u32 256, 16
        %1120 = vbcast.lane.b32.xlu0 %v1110, %s1119
        %v1121 = vpop.permute.xlu0 %1120
        %v1122 = vlaneseq
        %v1123 = vshrl.u32 %v1122, 7
        %v1124 = vsub.s32 7, %v1123
        %v1125 = vrot.slane %v1015, %v1124
        %1127 = vbcast.lane.b32.xlu0 %v1125, 256
        %v1128 = vpop.permute.xlu0 %1127
        %s1130 = sor.u32 256, 8
        %1131 = vbcast.lane.b32.xlu0 %v1125, %s1130
        %v1132 = vpop.permute.xlu0 %1131
        %s1134 = sor.u32 256, 16
        %1135 = vbcast.lane.b32.xlu0 %v1125, %s1134
        %v1136 = vpop.permute.xlu0 %1135
        %v1161 = vadd.f32 %v968, %v1023
        %v1162 = vadd.f32 %v970, %v1027
        %v1163 = vadd.f32 %v972, %v1031
        %v1164 = vadd.f32 %v974, %v1038
        %v1165 = vadd.f32 %v976, %v1042
        %v1166 = vadd.f32 %v978, %v1046
        %v1167 = vadd.f32 %v980, %v1053
        %v1168 = vadd.f32 %v982, %v1057
        %v1169 = vadd.f32 %v984, %v1061
        %v1170 = vadd.f32 %v986, %v1068
        %v1171 = vadd.f32 %v988, %v1072
        %v1172 = vadd.f32 %v990, %v1076
        %v1173 = vadd.f32 %v992, %v1083
        %v1174 = vadd.f32 %v994, %v1087
        %v1175 = vadd.f32 %v996, %v1091
        %v1176 = vadd.f32 %v998, %v1098
        %v1177 = vadd.f32 %v1000, %v1102
        %v1178 = vadd.f32 %v1002, %v1106
        %v1179 = vadd.f32 %v1004, %v1113
        %v1180 = vadd.f32 %v1006, %v1117
        %v1181 = vadd.f32 %v1008, %v1121
        %v1182 = vadd.f32 %v1010, %v1128
        %v1183 = vadd.f32 %v1012, %v1132
        %v1184 = vadd.f32 %v1014, %v1136
        %v1185 = vld [vmem:[#allocation4] sm:$0xff]
        %1210 = vset.pattern.permute.xlu0 0
        %1211 = vperm.xlu0 %1210, %v1161
        %v1212 = vpop.permute.xlu0 %1211
        %1213 = vset.pattern.permute.xlu0 0
        %1214 = vperm.xlu0 %1213, %v1162
        %v1215 = vpop.permute.xlu0 %1214
        %1216 = vset.pattern.permute.xlu0 0
        %1217 = vperm.xlu0 %1216, %v1163
        %v1218 = vpop.permute.xlu0 %1217
        %1219 = vset.pattern.permute.xlu0 0
        %1220 = vperm.xlu0 %1219, %v1164
        %v1221 = vpop.permute.xlu0 %1220
        %1222 = vset.pattern.permute.xlu0 0
        %1223 = vperm.xlu0 %1222, %v1165
        %v1224 = vpop.permute.xlu0 %1223
        %1225 = vset.pattern.permute.xlu0 0
        %1226 = vperm.xlu0 %1225, %v1166
        %v1227 = vpop.permute.xlu0 %1226
        %1228 = vset.pattern.permute.xlu0 0
        %1229 = vperm.xlu0 %1228, %v1167
        %v1230 = vpop.permute.xlu0 %1229
        %1231 = vset.pattern.permute.xlu0 0
        %1232 = vperm.xlu0 %1231, %v1168
        %v1233 = vpop.permute.xlu0 %1232
        %1234 = vset.pattern.permute.xlu0 0
        %1235 = vperm.xlu0 %1234, %v1169
        %v1236 = vpop.permute.xlu0 %1235
        %1237 = vset.pattern.permute.xlu0 0
        %1238 = vperm.xlu0 %1237, %v1170
        %v1239 = vpop.permute.xlu0 %1238
        %1240 = vset.pattern.permute.xlu0 0
        %1241 = vperm.xlu0 %1240, %v1171
        %v1242 = vpop.permute.xlu0 %1241
        %1243 = vset.pattern.permute.xlu0 0
        %1244 = vperm.xlu0 %1243, %v1172
        %v1245 = vpop.permute.xlu0 %1244
        %1246 = vset.pattern.permute.xlu0 0
        %1247 = vperm.xlu0 %1246, %v1173
        %v1248 = vpop.permute.xlu0 %1247
        %1249 = vset.pattern.permute.xlu0 0
        %1250 = vperm.xlu0 %1249, %v1174
        %v1251 = vpop.permute.xlu0 %1250
        %1252 = vset.pattern.permute.xlu0 0
        %1253 = vperm.xlu0 %1252, %v1175
        %v1254 = vpop.permute.xlu0 %1253
        %1255 = vset.pattern.permute.xlu0 0
        %1256 = vperm.xlu0 %1255, %v1176
        %v1257 = vpop.permute.xlu0 %1256
        %1258 = vset.pattern.permute.xlu0 0
        %1259 = vperm.xlu0 %1258, %v1177
        %v1260 = vpop.permute.xlu0 %1259
        %1261 = vset.pattern.permute.xlu0 0
        %1262 = vperm.xlu0 %1261, %v1178
        %v1263 = vpop.permute.xlu0 %1262
        %1264 = vset.pattern.permute.xlu0 0
        %1265 = vperm.xlu0 %1264, %v1179
        %v1266 = vpop.permute.xlu0 %1265
        %1267 = vset.pattern.permute.xlu0 0
        %1268 = vperm.xlu0 %1267, %v1180
        %v1269 = vpop.permute.xlu0 %1268
        %1270 = vset.pattern.permute.xlu0 0
        %1271 = vperm.xlu0 %1270, %v1181
        %v1272 = vpop.permute.xlu0 %1271
        %1273 = vset.pattern.permute.xlu0 0
        %1274 = vperm.xlu0 %1273, %v1182
        %v1275 = vpop.permute.xlu0 %1274
        %1276 = vset.pattern.permute.xlu0 0
        %1277 = vperm.xlu0 %1276, %v1183
        %v1278 = vpop.permute.xlu0 %1277
        %1279 = vset.pattern.permute.xlu0 0
        %1280 = vperm.xlu0 %1279, %v1184
        %v1281 = vpop.permute.xlu0 %1280
        %v1282 = vlaneseq
        %v1283 = vand.u32 %v1282, 127
        %v1284 = vlaneseq
        %v1285 = vshrl.u32 %v1284, 7
        %v1286 = vsub.s32 %v1283, %v1285
        %v1287 = vrot.slane %v1212, %v1286
        %v1288 = vadd.s32 %v1283, 4294967288
        %v1289 = vlaneseq
        %v1290 = vshrl.u32 %v1289, 7
        %v1291 = vsub.s32 %v1288, %v1290
        %v1292 = vrot.slane %v1215, %v1291
        %vm1293 = vcmask 130112
        %v1294 = vsel %vm1293, %v1292, %v1287
        %v1295 = vadd.s32 %v1283, 4294967280
        %v1296 = vlaneseq
        %v1297 = vshrl.u32 %v1296, 7
        %v1298 = vsub.s32 %v1295, %v1297
        %v1299 = vrot.slane %v1218, %v1298
        %vm1300 = vcmask 195712
        %v1301 = vsel %vm1300, %v1299, %v1294
        %v1302 = vlaneseq
        %v1303 = vshrl.u32 %v1302, 7
        %v1304 = vsub.s32 %v1283, %v1303
        %v1305 = vrot.slane %v1221, %v1304
        %v1306 = vlaneseq
        %v1307 = vshrl.u32 %v1306, 7
        %v1308 = vsub.s32 %v1288, %v1307
        %v1309 = vrot.slane %v1224, %v1308
        %v1310 = vsel %vm1293, %v1309, %v1305
        %v1311 = vlaneseq
        %v1312 = vshrl.u32 %v1311, 7
        %v1313 = vsub.s32 %v1295, %v1312
        %v1314 = vrot.slane %v1227, %v1313
        %v1315 = vsel %vm1300, %v1314, %v1310
        %v1316 = vlaneseq
        %v1317 = vshrl.u32 %v1316, 7
        %v1318 = vsub.s32 %v1283, %v1317
        %v1319 = vrot.slane %v1230, %v1318
        %v1320 = vlaneseq
        %v1321 = vshrl.u32 %v1320, 7
        %v1322 = vsub.s32 %v1288, %v1321
        %v1323 = vrot.slane %v1233, %v1322
        %v1324 = vsel %vm1293, %v1323, %v1319
        %v1325 = vlaneseq
        %v1326 = vshrl.u32 %v1325, 7
        %v1327 = vsub.s32 %v1295, %v1326
        %v1328 = vrot.slane %v1236, %v1327
        %v1329 = vsel %vm1300, %v1328, %v1324
        %v1330 = vlaneseq
        %v1331 = vshrl.u32 %v1330, 7
        %v1332 = vsub.s32 %v1283, %v1331
        %v1333 = vrot.slane %v1239, %v1332
        %v1334 = vlaneseq
        %v1335 = vshrl.u32 %v1334, 7
        %v1336 = vsub.s32 %v1288, %v1335
        %v1337 = vrot.slane %v1242, %v1336
        %v1338 = vsel %vm1293, %v1337, %v1333
        %v1339 = vlaneseq
        %v1340 = vshrl.u32 %v1339, 7
        %v1341 = vsub.s32 %v1295, %v1340
        %v1342 = vrot.slane %v1245, %v1341
        %v1343 = vsel %vm1300, %v1342, %v1338
        %v1344 = vlaneseq
        %v1345 = vshrl.u32 %v1344, 7
        %v1346 = vsub.s32 %v1283, %v1345
        %v1347 = vrot.slane %v1248, %v1346
        %v1348 = vlaneseq
        %v1349 = vshrl.u32 %v1348, 7
        %v1350 = vsub.s32 %v1288, %v1349
        %v1351 = vrot.slane %v1251, %v1350
        %v1352 = vsel %vm1293, %v1351, %v1347
        %v1353 = vlaneseq
        %v1354 = vshrl.u32 %v1353, 7
        %v1355 = vsub.s32 %v1295, %v1354
        %v1356 = vrot.slane %v1254, %v1355
        %v1357 = vsel %vm1300, %v1356, %v1352
        %v1358 = vlaneseq
        %v1359 = vshrl.u32 %v1358, 7
        %v1360 = vsub.s32 %v1283, %v1359
        %v1361 = vrot.slane %v1257, %v1360
        %v1362 = vlaneseq
        %v1363 = vshrl.u32 %v1362, 7
        %v1364 = vsub.s32 %v1288, %v1363
        %v1365 = vrot.slane %v1260, %v1364
        %v1366 = vsel %vm1293, %v1365, %v1361
        %v1367 = vlaneseq
        %v1368 = vshrl.u32 %v1367, 7
        %v1369 = vsub.s32 %v1295, %v1368
        %v1370 = vrot.slane %v1263, %v1369
        %v1371 = vsel %vm1300, %v1370, %v1366
        %v1372 = vlaneseq
        %v1373 = vshrl.u32 %v1372, 7
        %v1374 = vsub.s32 %v1283, %v1373
        %v1375 = vrot.slane %v1266, %v1374
        %v1376 = vlaneseq
        %v1377 = vshrl.u32 %v1376, 7
        %v1378 = vsub.s32 %v1288, %v1377
        %v1379 = vrot.slane %v1269, %v1378
        %v1380 = vsel %vm1293, %v1379, %v1375
        %v1381 = vlaneseq
        %v1382 = vshrl.u32 %v1381, 7
        %v1383 = vsub.s32 %v1295, %v1382
        %v1384 = vrot.slane %v1272, %v1383
        %v1385 = vsel %vm1300, %v1384, %v1380
        %v1386 = vlaneseq
        %v1387 = vshrl.u32 %v1386, 7
        %v1388 = vsub.s32 %v1283, %v1387
        %v1389 = vrot.slane %v1275, %v1388
        %v1390 = vlaneseq
        %v1391 = vshrl.u32 %v1390, 7
        %v1392 = vsub.s32 %v1288, %v1391
        %v1393 = vrot.slane %v1278, %v1392
        %v1394 = vsel %vm1293, %v1393, %v1389
        %v1395 = vlaneseq
        %v1396 = vshrl.u32 %v1395, 7
        %v1397 = vsub.s32 %v1295, %v1396
        %v1398 = vrot.slane %v1281, %v1397
        %v1399 = vsel %vm1300, %v1398, %v1394
        %vm1400 = vcmask 1041409
        %v1401 = vsel %vm1400, %v1315, %v1301
        %vm1402 = vcmask 1042434
        %v1403 = vsel %vm1402, %v1329, %v1401
        %vm1404 = vcmask 1043459
        %v1405 = vsel %vm1404, %v1343, %v1403
        %vm1406 = vcmask 1044484
        %v1407 = vsel %vm1406, %v1357, %v1405
        %vm1408 = vcmask 1045509
        %v1409 = vsel %vm1408, %v1371, %v1407
        %vm1410 = vcmask 1046534
        %v1411 = vsel %vm1410, %v1385, %v1409
        %vm1412 = vcmask 1047559
        %v1413 = vsel %vm1412, %v1399, %v1411
        %vm1415 = vcmask 195584
        %v1416 = vsel %vm1415, %v1413, -inf
        %1417 = vmax.xlane.f32.xlu0 %v1416
        %v1418 = vpop.xlane.xlu0 %1417
        %v1419 = vmax.f32 %v1185, %v1418
        %v1420 = vsub.f32 %v1185, %v1419
        %v1421 = vmul.f32 %v1420, 1.442695
        %v1422 = vpow.pop %v1421
        %1424 = vset.pattern.permute.xlu0 0
        %1425 = vperm.xlu0 %1424, %v1419
        %v1426 = vpop.permute.xlu0 %1425
        %v1427 = vlaneseq
        %v1428 = vshrl.u32 %v1427, 7
        %v1429 = vsub.s32 0, %v1428
        %v1430 = vrot.slane %v1426, %v1429
        %v1431 = vlaneseq
        %v1432 = vshrl.u32 %v1431, 7
        %v1433 = vsub.s32 1, %v1432
        %v1434 = vrot.slane %v1426, %v1433
        %v1435 = vlaneseq
        %v1436 = vshrl.u32 %v1435, 7
        %v1437 = vsub.s32 2, %v1436
        %v1438 = vrot.slane %v1426, %v1437
        %v1439 = vlaneseq
        %v1440 = vshrl.u32 %v1439, 7
        %v1441 = vsub.s32 3, %v1440
        %v1442 = vrot.slane %v1426, %v1441
        %v1443 = vlaneseq
        %v1444 = vshrl.u32 %v1443, 7
        %v1445 = vsub.s32 4, %v1444
        %v1446 = vrot.slane %v1426, %v1445
        %v1447 = vlaneseq
        %v1448 = vshrl.u32 %v1447, 7
        %v1449 = vsub.s32 5, %v1448
        %v1450 = vrot.slane %v1426, %v1449
        %v1451 = vlaneseq
        %v1452 = vshrl.u32 %v1451, 7
        %v1453 = vsub.s32 6, %v1452
        %v1454 = vrot.slane %v1426, %v1453
        %v1455 = vlaneseq
        %v1456 = vshrl.u32 %v1455, 7
        %v1457 = vsub.s32 7, %v1456
        %v1458 = vrot.slane %v1426, %v1457
        %v1467 = vsub.f32 %v1161, %v1430
        %v1468 = vsub.f32 %v1162, %v1430
        %v1469 = vsub.f32 %v1163, %v1430
        %v1470 = vsub.f32 %v1164, %v1434
        %v1471 = vsub.f32 %v1165, %v1434
        %v1472 = vsub.f32 %v1166, %v1434
        %v1473 = vsub.f32 %v1167, %v1438
        %v1474 = vsub.f32 %v1168, %v1438
        %v1475 = vsub.f32 %v1169, %v1438
        %v1476 = vsub.f32 %v1170, %v1442
        %v1477 = vsub.f32 %v1171, %v1442
        %v1478 = vsub.f32 %v1172, %v1442
        %v1479 = vsub.f32 %v1173, %v1446
        %v1480 = vsub.f32 %v1174, %v1446
        %v1481 = vsub.f32 %v1175, %v1446
        %v1482 = vsub.f32 %v1176, %v1450
        %v1483 = vsub.f32 %v1177, %v1450
        %v1484 = vsub.f32 %v1178, %v1450
        %v1485 = vsub.f32 %v1179, %v1454
        %v1486 = vsub.f32 %v1180, %v1454
        %v1487 = vsub.f32 %v1181, %v1454
        %v1488 = vsub.f32 %v1182, %v1458
        %v1489 = vsub.f32 %v1183, %v1458
        %v1490 = vsub.f32 %v1184, %v1458
        %v1491 = vmul.f32 %v1467, 1.442695
        %v1492 = vpow.pop %v1491
        %v1493 = vmul.f32 %v1468, 1.442695
        %v1494 = vpow.pop %v1493
        %v1495 = vmul.f32 %v1469, 1.442695
        %v1496 = vpow.pop %v1495
        %v1497 = vmul.f32 %v1470, 1.442695
        %v1498 = vpow.pop %v1497
        %v1499 = vmul.f32 %v1471, 1.442695
        %v1500 = vpow.pop %v1499
        %v1501 = vmul.f32 %v1472, 1.442695
        %v1502 = vpow.pop %v1501
        %v1503 = vmul.f32 %v1473, 1.442695
        %v1504 = vpow.pop %v1503
        %v1505 = vmul.f32 %v1474, 1.442695
        %v1506 = vpow.pop %v1505
        %v1507 = vmul.f32 %v1475, 1.442695
        %v1508 = vpow.pop %v1507
        %v1509 = vmul.f32 %v1476, 1.442695
        %v1510 = vpow.pop %v1509
        %v1511 = vmul.f32 %v1477, 1.442695
        %v1512 = vpow.pop %v1511
        %v1513 = vmul.f32 %v1478, 1.442695
        %v1514 = vpow.pop %v1513
        %v1515 = vmul.f32 %v1479, 1.442695
        %v1516 = vpow.pop %v1515
        %v1517 = vmul.f32 %v1480, 1.442695
        %v1518 = vpow.pop %v1517
        %v1519 = vmul.f32 %v1481, 1.442695
        %v1520 = vpow.pop %v1519
        %v1521 = vmul.f32 %v1482, 1.442695
        %v1522 = vpow.pop %v1521
        %v1523 = vmul.f32 %v1483, 1.442695
        %v1524 = vpow.pop %v1523
        %v1525 = vmul.f32 %v1484, 1.442695
        %v1526 = vpow.pop %v1525
        %v1527 = vmul.f32 %v1485, 1.442695
        %v1528 = vpow.pop %v1527
        %v1529 = vmul.f32 %v1486, 1.442695
        %v1530 = vpow.pop %v1529
        %v1531 = vmul.f32 %v1487, 1.442695
        %v1532 = vpow.pop %v1531
        %v1533 = vmul.f32 %v1488, 1.442695
        %v1534 = vpow.pop %v1533
        %v1535 = vmul.f32 %v1489, 1.442695
        %v1536 = vpow.pop %v1535
        %v1537 = vmul.f32 %v1490, 1.442695
        %v1538 = vpow.pop %v1537
        %v1539 = vld [vmem:[#allocation5] sm:$0xff]
        %v1540 = vmul.f32 %v1422, %v1539
        %1565 = vset.pattern.permute.xlu0 0
        %1566 = vperm.xlu0 %1565, %v1492
        %v1567 = vpop.permute.xlu0 %1566
        %1568 = vset.pattern.permute.xlu0 0
        %1569 = vperm.xlu0 %1568, %v1494
        %v1570 = vpop.permute.xlu0 %1569
        %1571 = vset.pattern.permute.xlu0 0
        %1572 = vperm.xlu0 %1571, %v1496
        %v1573 = vpop.permute.xlu0 %1572
        %1574 = vset.pattern.permute.xlu0 0
        %1575 = vperm.xlu0 %1574, %v1498
        %v1576 = vpop.permute.xlu0 %1575
        %1577 = vset.pattern.permute.xlu0 0
        %1578 = vperm.xlu0 %1577, %v1500
        %v1579 = vpop.permute.xlu0 %1578
        %1580 = vset.pattern.permute.xlu0 0
        %1581 = vperm.xlu0 %1580, %v1502
        %v1582 = vpop.permute.xlu0 %1581
        %1583 = vset.pattern.permute.xlu0 0
        %1584 = vperm.xlu0 %1583, %v1504
        %v1585 = vpop.permute.xlu0 %1584
        %1586 = vset.pattern.permute.xlu0 0
        %1587 = vperm.xlu0 %1586, %v1506
        %v1588 = vpop.permute.xlu0 %1587
        %1589 = vset.pattern.permute.xlu0 0
        %1590 = vperm.xlu0 %1589, %v1508
        %v1591 = vpop.permute.xlu0 %1590
        %1592 = vset.pattern.permute.xlu0 0
        %1593 = vperm.xlu0 %1592, %v1510
        %v1594 = vpop.permute.xlu0 %1593
        %1595 = vset.pattern.permute.xlu0 0
        %1596 = vperm.xlu0 %1595, %v1512
        %v1597 = vpop.permute.xlu0 %1596
        %1598 = vset.pattern.permute.xlu0 0
        %1599 = vperm.xlu0 %1598, %v1514
        %v1600 = vpop.permute.xlu0 %1599
        %1601 = vset.pattern.permute.xlu0 0
        %1602 = vperm.xlu0 %1601, %v1516
        %v1603 = vpop.permute.xlu0 %1602
        %1604 = vset.pattern.permute.xlu0 0
        %1605 = vperm.xlu0 %1604, %v1518
        %v1606 = vpop.permute.xlu0 %1605
        %1607 = vset.pattern.permute.xlu0 0
        %1608 = vperm.xlu0 %1607, %v1520
        %v1609 = vpop.permute.xlu0 %1608
        %1610 = vset.pattern.permute.xlu0 0
        %1611 = vperm.xlu0 %1610, %v1522
        %v1612 = vpop.permute.xlu0 %1611
        %1613 = vset.pattern.permute.xlu0 0
        %1614 = vperm.xlu0 %1613, %v1524
        %v1615 = vpop.permute.xlu0 %1614
        %1616 = vset.pattern.permute.xlu0 0
        %1617 = vperm.xlu0 %1616, %v1526
        %v1618 = vpop.permute.xlu0 %1617
        %1619 = vset.pattern.permute.xlu0 0
        %1620 = vperm.xlu0 %1619, %v1528
        %v1621 = vpop.permute.xlu0 %1620
        %1622 = vset.pattern.permute.xlu0 0
        %1623 = vperm.xlu0 %1622, %v1530
        %v1624 = vpop.permute.xlu0 %1623
        %1625 = vset.pattern.permute.xlu0 0
        %1626 = vperm.xlu0 %1625, %v1532
        %v1627 = vpop.permute.xlu0 %1626
        %1628 = vset.pattern.permute.xlu0 0
        %1629 = vperm.xlu0 %1628, %v1534
        %v1630 = vpop.permute.xlu0 %1629
        %1631 = vset.pattern.permute.xlu0 0
        %1632 = vperm.xlu0 %1631, %v1536
        %v1633 = vpop.permute.xlu0 %1632
        %1634 = vset.pattern.permute.xlu0 0
        %1635 = vperm.xlu0 %1634, %v1538
        %v1636 = vpop.permute.xlu0 %1635
        %v1637 = vlaneseq
        %v1638 = vshrl.u32 %v1637, 7
        %v1639 = vsub.s32 %v1283, %v1638
        %v1640 = vrot.slane %v1567, %v1639
        %v1641 = vlaneseq
        %v1642 = vshrl.u32 %v1641, 7
        %v1643 = vsub.s32 %v1288, %v1642
        %v1644 = vrot.slane %v1570, %v1643
        %v1645 = vsel %vm1293, %v1644, %v1640
        %v1646 = vlaneseq
        %v1647 = vshrl.u32 %v1646, 7
        %v1648 = vsub.s32 %v1295, %v1647
        %v1649 = vrot.slane %v1573, %v1648
        %v1650 = vsel %vm1300, %v1649, %v1645
        %v1651 = vlaneseq
        %v1652 = vshrl.u32 %v1651, 7
        %v1653 = vsub.s32 %v1283, %v1652
        %v1654 = vrot.slane %v1576, %v1653
        %v1655 = vlaneseq
        %v1656 = vshrl.u32 %v1655, 7
        %v1657 = vsub.s32 %v1288, %v1656
        %v1658 = vrot.slane %v1579, %v1657
        %v1659 = vsel %vm1293, %v1658, %v1654
        %v1660 = vlaneseq
        %v1661 = vshrl.u32 %v1660, 7
        %v1662 = vsub.s32 %v1295, %v1661
        %v1663 = vrot.slane %v1582, %v1662
        %v1664 = vsel %vm1300, %v1663, %v1659
        %v1665 = vlaneseq
        %v1666 = vshrl.u32 %v1665, 7
        %v1667 = vsub.s32 %v1283, %v1666
        %v1668 = vrot.slane %v1585, %v1667
        %v1669 = vlaneseq
        %v1670 = vshrl.u32 %v1669, 7
        %v1671 = vsub.s32 %v1288, %v1670
        %v1672 = vrot.slane %v1588, %v1671
        %v1673 = vsel %vm1293, %v1672, %v1668
        %v1674 = vlaneseq
        %v1675 = vshrl.u32 %v1674, 7
        %v1676 = vsub.s32 %v1295, %v1675
        %v1677 = vrot.slane %v1591, %v1676
        %v1678 = vsel %vm1300, %v1677, %v1673
        %v1679 = vlaneseq
        %v1680 = vshrl.u32 %v1679, 7
        %v1681 = vsub.s32 %v1283, %v1680
        %v1682 = vrot.slane %v1594, %v1681
        %v1683 = vlaneseq
        %v1684 = vshrl.u32 %v1683, 7
        %v1685 = vsub.s32 %v1288, %v1684
        %v1686 = vrot.slane %v1597, %v1685
        %v1687 = vsel %vm1293, %v1686, %v1682
        %v1688 = vlaneseq
        %v1689 = vshrl.u32 %v1688, 7
        %v1690 = vsub.s32 %v1295, %v1689
        %v1691 = vrot.slane %v1600, %v1690
        %v1692 = vsel %vm1300, %v1691, %v1687
        %v1693 = vlaneseq
        %v1694 = vshrl.u32 %v1693, 7
        %v1695 = vsub.s32 %v1283, %v1694
        %v1696 = vrot.slane %v1603, %v1695
        %v1697 = vlaneseq
        %v1698 = vshrl.u32 %v1697, 7
        %v1699 = vsub.s32 %v1288, %v1698
        %v1700 = vrot.slane %v1606, %v1699
        %v1701 = vsel %vm1293, %v1700, %v1696
        %v1702 = vlaneseq
        %v1703 = vshrl.u32 %v1702, 7
        %v1704 = vsub.s32 %v1295, %v1703
        %v1705 = vrot.slane %v1609, %v1704
        %v1706 = vsel %vm1300, %v1705, %v1701
        %v1707 = vlaneseq
        %v1708 = vshrl.u32 %v1707, 7
        %v1709 = vsub.s32 %v1283, %v1708
        %v1710 = vrot.slane %v1612, %v1709
        %v1711 = vlaneseq
        %v1712 = vshrl.u32 %v1711, 7
        %v1713 = vsub.s32 %v1288, %v1712
        %v1714 = vrot.slane %v1615, %v1713
        %v1715 = vsel %vm1293, %v1714, %v1710
        %v1716 = vlaneseq
        %v1717 = vshrl.u32 %v1716, 7
        %v1718 = vsub.s32 %v1295, %v1717
        %v1719 = vrot.slane %v1618, %v1718
        %v1720 = vsel %vm1300, %v1719, %v1715
        %v1721 = vlaneseq
        %v1722 = vshrl.u32 %v1721, 7
        %v1723 = vsub.s32 %v1283, %v1722
        %v1724 = vrot.slane %v1621, %v1723
        %v1725 = vlaneseq
        %v1726 = vshrl.u32 %v1725, 7
        %v1727 = vsub.s32 %v1288, %v1726
        %v1728 = vrot.slane %v1624, %v1727
        %v1729 = vsel %vm1293, %v1728, %v1724
        %v1730 = vlaneseq
        %v1731 = vshrl.u32 %v1730, 7
        %v1732 = vsub.s32 %v1295, %v1731
        %v1733 = vrot.slane %v1627, %v1732
        %v1734 = vsel %vm1300, %v1733, %v1729
        %v1735 = vlaneseq
        %v1736 = vshrl.u32 %v1735, 7
        %v1737 = vsub.s32 %v1283, %v1736
        %v1738 = vrot.slane %v1630, %v1737
        %v1739 = vlaneseq
        %v1740 = vshrl.u32 %v1739, 7
        %v1741 = vsub.s32 %v1288, %v1740
        %v1742 = vrot.slane %v1633, %v1741
        %v1743 = vsel %vm1293, %v1742, %v1738
        %v1744 = vlaneseq
        %v1745 = vshrl.u32 %v1744, 7
        %v1746 = vsub.s32 %v1295, %v1745
        %v1747 = vrot.slane %v1636, %v1746
        %v1748 = vsel %vm1300, %v1747, %v1743
        %v1749 = vsel %vm1400, %v1664, %v1650
        %v1750 = vsel %vm1402, %v1678, %v1749
        %v1751 = vsel %vm1404, %v1692, %v1750
        %v1752 = vsel %vm1406, %v1706, %v1751
        %v1753 = vsel %vm1408, %v1720, %v1752
        %v1754 = vsel %vm1410, %v1734, %v1753
        %v1755 = vsel %vm1412, %v1748, %v1754
        %v1757 = vsel %vm1415, %v1755, 0.0
        %1758 = vadd.xlane.f32.xlu0 %v1757
        %v1759 = vpop.xlane.xlu0 %1758
        %v1760 = vadd.f32 %v1540, %v1759
        %vm1761 = vcmask 7168
        %1762 = vst.msk [vmem:[#allocation5] sm:$0xff] %vm1761, %v1760
        %v1763 = vld [vmem:[#allocation6] sm:$0xff]
        %1765 = vset.pattern.permute.xlu0 0
        %1766 = vperm.xlu0 %1765, %v1422
        %v1767 = vpop.permute.xlu0 %1766
        %v1769 = vmul.f32 %v1767, %v1763
        %v1770 = vpack.c.bf16 %v1494, %v1492
        %v1771 = vpack.c.bf16 %v1496, %v1496
        %v1772 = vpack.c.bf16 %v1500, %v1498
        %v1773 = vpack.c.bf16 %v1502, %v1502
        %v1774 = vpack.c.bf16 %v1506, %v1504
        %v1775 = vpack.c.bf16 %v1508, %v1508
        %v1776 = vpack.c.bf16 %v1512, %v1510
        %v1777 = vpack.c.bf16 %v1514, %v1514
        %v1778 = vpack.c.bf16 %v1518, %v1516
        %v1779 = vpack.c.bf16 %v1520, %v1520
        %v1780 = vpack.c.bf16 %v1524, %v1522
        %v1781 = vpack.c.bf16 %v1526, %v1526
        %v1782 = vpack.c.bf16 %v1530, %v1528
        %v1783 = vpack.c.bf16 %v1532, %v1532
        %v1784 = vpack.c.bf16 %v1536, %v1534
        %v1785 = vpack.c.bf16 %v1538, %v1538
        %v1786 = vpack.c.bf16 %v739, %v736
        %v1787 = vpack.c.bf16 %v744, %v744
        %v1804 = vunpack.c.l.b16 %v1770
        %v1805 = vunpack.c.h.b16 %v1770
        %v1806 = vunpack.c.l.b16 %v1771
        %v1807 = vunpack.c.l.b16 %v1772
        %v1808 = vunpack.c.h.b16 %v1772
        %v1809 = vunpack.c.l.b16 %v1773
        %v1810 = vunpack.c.l.b16 %v1774
        %v1811 = vunpack.c.h.b16 %v1774
        %v1812 = vunpack.c.l.b16 %v1775
        %v1813 = vunpack.c.l.b16 %v1776
        %v1814 = vunpack.c.h.b16 %v1776
        %v1815 = vunpack.c.l.b16 %v1777
        %v1816 = vunpack.c.l.b16 %v1778
        %v1817 = vunpack.c.h.b16 %v1778
        %v1818 = vunpack.c.l.b16 %v1779
        %v1819 = vunpack.c.l.b16 %v1780
        %v1820 = vunpack.c.h.b16 %v1780
        %v1821 = vunpack.c.l.b16 %v1781
        %v1822 = vunpack.c.l.b16 %v1782
        %v1823 = vunpack.c.h.b16 %v1782
        %v1824 = vunpack.c.l.b16 %v1783
        %v1825 = vunpack.c.l.b16 %v1784
        %v1826 = vunpack.c.h.b16 %v1784
        %v1827 = vunpack.c.l.b16 %v1785
        %1828 = vset.pattern.permute.xlu0 0
        %1829 = vperm.xlu0 %1828, %v1804
        %v1830 = vpop.permute.xlu0 %1829
        %1831 = vset.pattern.permute.xlu0 0
        %1832 = vperm.xlu0 %1831, %v1805
        %v1833 = vpop.permute.xlu0 %1832
        %1834 = vset.pattern.permute.xlu0 0
        %1835 = vperm.xlu0 %1834, %v1806
        %v1836 = vpop.permute.xlu0 %1835
        %1837 = vset.pattern.permute.xlu0 0
        %1838 = vperm.xlu0 %1837, %v1807
        %v1839 = vpop.permute.xlu0 %1838
        %1840 = vset.pattern.permute.xlu0 0
        %1841 = vperm.xlu0 %1840, %v1808
        %v1842 = vpop.permute.xlu0 %1841
        %1843 = vset.pattern.permute.xlu0 0
        %1844 = vperm.xlu0 %1843, %v1809
        %v1845 = vpop.permute.xlu0 %1844
        %1846 = vset.pattern.permute.xlu0 0
        %1847 = vperm.xlu0 %1846, %v1810
        %v1848 = vpop.permute.xlu0 %1847
        %1849 = vset.pattern.permute.xlu0 0
        %1850 = vperm.xlu0 %1849, %v1811
        %v1851 = vpop.permute.xlu0 %1850
        %1852 = vset.pattern.permute.xlu0 0
        %1853 = vperm.xlu0 %1852, %v1812
        %v1854 = vpop.permute.xlu0 %1853
        %1855 = vset.pattern.permute.xlu0 0
        %1856 = vperm.xlu0 %1855, %v1813
        %v1857 = vpop.permute.xlu0 %1856
        %1858 = vset.pattern.permute.xlu0 0
        %1859 = vperm.xlu0 %1858, %v1814
        %v1860 = vpop.permute.xlu0 %1859
        %1861 = vset.pattern.permute.xlu0 0
        %1862 = vperm.xlu0 %1861, %v1815
        %v1863 = vpop.permute.xlu0 %1862
        %1864 = vset.pattern.permute.xlu0 0
        %1865 = vperm.xlu0 %1864, %v1816
        %v1866 = vpop.permute.xlu0 %1865
        %1867 = vset.pattern.permute.xlu0 0
        %1868 = vperm.xlu0 %1867, %v1817
        %v1869 = vpop.permute.xlu0 %1868
        %1870 = vset.pattern.permute.xlu0 0
        %1871 = vperm.xlu0 %1870, %v1818
        %v1872 = vpop.permute.xlu0 %1871
        %1873 = vset.pattern.permute.xlu0 0
        %1874 = vperm.xlu0 %1873, %v1819
        %v1875 = vpop.permute.xlu0 %1874
        %1876 = vset.pattern.permute.xlu0 0
        %1877 = vperm.xlu0 %1876, %v1820
        %v1878 = vpop.permute.xlu0 %1877
        %1879 = vset.pattern.permute.xlu0 0
        %1880 = vperm.xlu0 %1879, %v1821
        %v1881 = vpop.permute.xlu0 %1880
        %1882 = vset.pattern.permute.xlu0 0
        %1883 = vperm.xlu0 %1882, %v1822
        %v1884 = vpop.permute.xlu0 %1883
        %1885 = vset.pattern.permute.xlu0 0
        %1886 = vperm.xlu0 %1885, %v1823
        %v1887 = vpop.permute.xlu0 %1886
        %1888 = vset.pattern.permute.xlu0 0
        %1889 = vperm.xlu0 %1888, %v1824
        %v1890 = vpop.permute.xlu0 %1889
        %1891 = vset.pattern.permute.xlu0 0
        %1892 = vperm.xlu0 %1891, %v1825
        %v1893 = vpop.permute.xlu0 %1892
        %1894 = vset.pattern.permute.xlu0 0
        %1895 = vperm.xlu0 %1894, %v1826
        %v1896 = vpop.permute.xlu0 %1895
        %1897 = vset.pattern.permute.xlu0 0
        %1898 = vperm.xlu0 %1897, %v1827
        %v1899 = vpop.permute.xlu0 %1898
        %v1900 = vlaneseq
        %v1901 = vshrl.u32 %v1900, 7
        %v1902 = vsub.s32 %v1283, %v1901
        %v1903 = vrot.slane %v1830, %v1902
        %v1904 = vlaneseq
        %v1905 = vshrl.u32 %v1904, 7
        %v1906 = vsub.s32 %v1288, %v1905
        %v1907 = vrot.slane %v1833, %v1906
        %v1908 = vsel %vm1293, %v1907, %v1903
        %v1909 = vlaneseq
        %v1910 = vshrl.u32 %v1909, 7
        %v1911 = vsub.s32 %v1295, %v1910
        %v1912 = vrot.slane %v1836, %v1911
        %v1913 = vsel %vm1300, %v1912, %v1908
        %v1914 = vlaneseq
        %v1915 = vshrl.u32 %v1914, 7
        %v1916 = vsub.s32 %v1283, %v1915
        %v1917 = vrot.slane %v1839, %v1916
        %v1918 = vlaneseq
        %v1919 = vshrl.u32 %v1918, 7
        %v1920 = vsub.s32 %v1288, %v1919
        %v1921 = vrot.slane %v1842, %v1920
        %v1922 = vsel %vm1293, %v1921, %v1917
        %v1923 = vlaneseq
        %v1924 = vshrl.u32 %v1923, 7
        %v1925 = vsub.s32 %v1295, %v1924
        %v1926 = vrot.slane %v1845, %v1925
        %v1927 = vsel %vm1300, %v1926, %v1922
        %v1928 = vlaneseq
        %v1929 = vshrl.u32 %v1928, 7
        %v1930 = vsub.s32 %v1283, %v1929
        %v1931 = vrot.slane %v1848, %v1930
        %v1932 = vlaneseq
        %v1933 = vshrl.u32 %v1932, 7
        %v1934 = vsub.s32 %v1288, %v1933
        %v1935 = vrot.slane %v1851, %v1934
        %v1936 = vsel %vm1293, %v1935, %v1931
        %v1937 = vlaneseq
        %v1938 = vshrl.u32 %v1937, 7
        %v1939 = vsub.s32 %v1295, %v1938
        %v1940 = vrot.slane %v1854, %v1939
        %v1941 = vsel %vm1300, %v1940, %v1936
        %v1942 = vlaneseq
        %v1943 = vshrl.u32 %v1942, 7
        %v1944 = vsub.s32 %v1283, %v1943
        %v1945 = vrot.slane %v1857, %v1944
        %v1946 = vlaneseq
        %v1947 = vshrl.u32 %v1946, 7
        %v1948 = vsub.s32 %v1288, %v1947
        %v1949 = vrot.slane %v1860, %v1948
        %v1950 = vsel %vm1293, %v1949, %v1945
        %v1951 = vlaneseq
        %v1952 = vshrl.u32 %v1951, 7
        %v1953 = vsub.s32 %v1295, %v1952
        %v1954 = vrot.slane %v1863, %v1953
        %v1955 = vsel %vm1300, %v1954, %v1950
        %v1956 = vlaneseq
        %v1957 = vshrl.u32 %v1956, 7
        %v1958 = vsub.s32 %v1283, %v1957
        %v1959 = vrot.slane %v1866, %v1958
        %v1960 = vlaneseq
        %v1961 = vshrl.u32 %v1960, 7
        %v1962 = vsub.s32 %v1288, %v1961
        %v1963 = vrot.slane %v1869, %v1962
        %v1964 = vsel %vm1293, %v1963, %v1959
        %v1965 = vlaneseq
        %v1966 = vshrl.u32 %v1965, 7
        %v1967 = vsub.s32 %v1295, %v1966
        %v1968 = vrot.slane %v1872, %v1967
        %v1969 = vsel %vm1300, %v1968, %v1964
        %v1970 = vlaneseq
        %v1971 = vshrl.u32 %v1970, 7
        %v1972 = vsub.s32 %v1283, %v1971
        %v1973 = vrot.slane %v1875, %v1972
        %v1974 = vlaneseq
        %v1975 = vshrl.u32 %v1974, 7
        %v1976 = vsub.s32 %v1288, %v1975
        %v1977 = vrot.slane %v1878, %v1976
        %v1978 = vsel %vm1293, %v1977, %v1973
        %v1979 = vlaneseq
        %v1980 = vshrl.u32 %v1979, 7
        %v1981 = vsub.s32 %v1295, %v1980
        %v1982 = vrot.slane %v1881, %v1981
        %v1983 = vsel %vm1300, %v1982, %v1978
        %v1984 = vlaneseq
        %v1985 = vshrl.u32 %v1984, 7
        %v1986 = vsub.s32 %v1283, %v1985
        %v1987 = vrot.slane %v1884, %v1986
        %v1988 = vlaneseq
        %v1989 = vshrl.u32 %v1988, 7
        %v1990 = vsub.s32 %v1288, %v1989
        %v1991 = vrot.slane %v1887, %v1990
        %v1992 = vsel %vm1293, %v1991, %v1987
        %v1993 = vlaneseq
        %v1994 = vshrl.u32 %v1993, 7
        %v1995 = vsub.s32 %v1295, %v1994
        %v1996 = vrot.slane %v1890, %v1995
        %v1997 = vsel %vm1300, %v1996, %v1992
        %v1998 = vlaneseq
        %v1999 = vshrl.u32 %v1998, 7
        %v2000 = vsub.s32 %v1283, %v1999
        %v2001 = vrot.slane %v1893, %v2000
        %v2002 = vlaneseq
        %v2003 = vshrl.u32 %v2002, 7
        %v2004 = vsub.s32 %v1288, %v2003
        %v2005 = vrot.slane %v1896, %v2004
        %v2006 = vsel %vm1293, %v2005, %v2001
        %v2007 = vlaneseq
        %v2008 = vshrl.u32 %v2007, 7
        %v2009 = vsub.s32 %v1295, %v2008
        %v2010 = vrot.slane %v1899, %v2009
        %v2011 = vsel %vm1300, %v2010, %v2006
        %v2012 = vsel %vm1400, %v1927, %v1913
        %v2013 = vsel %vm1402, %v1941, %v2012
        %v2014 = vsel %vm1404, %v1955, %v2013
        %v2015 = vsel %vm1406, %v1969, %v2014
        %v2016 = vsel %vm1408, %v1983, %v2015
        %v2017 = vsel %vm1410, %v1997, %v2016
        %v2018 = vsel %vm1412, %v2011, %v2017
        %v2019 = vpack.c.b16 %v2018, %v2018
        %v2021 = vsel %vm1415, %v2019, 0
        %vm2023 = vcmask 1043456
        %v2025 = vsel %vm2023, %v1787, 0
        %2027 = vmatprep.subr.bf16.mxu0 0
        %2028 = vmatpush1.bf16.msra.mxu0 %v1786
        %2029 = vmatprep.subr.bf16.mxu0 0
        %2030 = vmatpush1.bf16.msra.mxu0 %v2025
        %2031 = vmatprep.subr.bf16.mxu0 0
        %2032 = vmatpush1.bf16.msra.mxu0 0
        %2033 = vmatprep.subr.bf16.mxu0 0
        %2034 = vmatpush1.bf16.msra.mxu0 0
        %2035 = vmatprep.subr.bf16.mxu0 0
        %2036 = vmatpush1.bf16.msra.mxu0 0
        %2037 = vmatprep.subr.bf16.mxu0 0
        %2038 = vmatpush1.bf16.msra.mxu0 0
        %2039 = vmatprep.subr.bf16.mxu0 0
        %2040 = vmatpush1.bf16.msra.mxu0 0
        %2041 = vmatprep.subr.bf16.mxu0 0
        %2042 = vmatpush1.bf16.msra.mxu0 0
        %2043 = vmatprep.subr.bf16.mxu0 0
        %2044 = vmatpush1.bf16.msra.mxu0 0
        %2045 = vmatprep.subr.bf16.mxu0 0
        %2046 = vmatpush1.bf16.msra.mxu0 0
        %2047 = vmatprep.subr.bf16.mxu0 0
        %2048 = vmatpush1.bf16.msra.mxu0 0
        %2049 = vmatprep.subr.bf16.mxu0 0
        %2050 = vmatpush1.bf16.msra.mxu0 0
        %2051 = vmatprep.subr.bf16.mxu0 0
        %2052 = vmatpush1.bf16.msra.mxu0 0
        %2053 = vmatprep.subr.bf16.mxu0 0
        %2054 = vmatpush1.bf16.msra.mxu0 0
        %2055 = vmatprep.subr.bf16.mxu0 0
        %2056 = vmatpush1.bf16.msra.mxu0 0
        %2057 = vmatprep.subr.bf16.mxu0 0
        %2058 = vmatpush1.bf16.msra.mxu0 0
        %2059 = vmatprep.mubr.bf16.mxu0 0
        %2060 = vmatmul.mubr.bf16.gmra.mrb[0].mxu0 %v2021
        %v2061 = vpop.f32.mrb[0].mxu0
        %v2062 = vadd.f32 0.0, %v2061
        %v2063 = vpop.f32.mrb[0].mxu0
        %v2064 = vpop.f32.mrb[0].mxu0
        %v2065 = vpop.f32.mrb[0].mxu0
        %2066 = vdwg.mxu0
        %v2067 = vadd.f32 %v1769, %v2062
        %2068 = vst [vmem:[#allocation6] sm:$0xff] %v2067
        %2069 = vst.msk [vmem:[#allocation4] sm:$0xff] %vm1761, %v1419
        // Predicated region
        $region53: #{gat_forward.3} parent=47 // pred_check
          %p2070 = pneg %p354
        $region54: #{gat_forward.3} parent=47 // pred_check_branch
          %2072 = sbr.rel (%p2070) target = $region56
        $region55: #{gat_forward.3} parent=47 // pred_region
          %v2073 = vld [vmem:[#allocation5] sm:$0xff]
          %v2074 = vmax.f32 %v2073, 1e-20
          %v2075 = vrcp.pop %v2074
          %v2076 = vld [vmem:[#allocation6] sm:$0xff]
          %2078 = vset.pattern.permute.xlu0 0
          %2079 = vperm.xlu0 %2078, %v2075
          %v2080 = vpop.permute.xlu0 %2079
          %v2082 = vmul.f32 %v2076, %v2080
          %v2083 = vld [vmem:[%s352] sm:$0xff]
          %2085 = vset.pattern.permute.xlu0 0
          %2086 = vperm.xlu0 %2085, %v2083
          %v2087 = vpop.permute.xlu0 %2086
          %v2089 = vmul.f32 %v2082, %v2087
          %v2090 = vld [vmem:[#allocation3] sm:$0xff]
          %v2091 = vadd.f32 %v2089, %v2090
          %2092 = vst [vmem:[%s331] sm:$0xff] %v2091
        $region56: #{gat_forward.3} parent=47 // pred_fallthru
          _
        %s2093 = sand.u32 %s210, 1
        %s2094 = scalar_lea.sflag [#allocation8], %s2093
        %s2095 = sand.u32 %s210, 1
        %s2096 = smul.addr %s2095, 8
        %s2097 = scalar_lea.vmem [#allocation7], %s2096
        // Predicated region
        $region57: #{gat_forward.3} parent=47 // pred_check
          %p2098 = pneg %p220
        $region58: #{gat_forward.3} parent=47 // pred_check_branch
          %2100 = sbr.rel (%p2098) target = $region60
        $region59: #{gat_forward.3} parent=47 // pred_region
          %s2102 = ssub.s32 128, 128
          %2103 = vsyncadd %s2094, %s2102
          %s2104 = smul.addr %s25, 128
          %s2105 = scalar_lea.hbm %s7, %s2104
          %s2107 = sshll.u32 %s2097, 4
          %s2108 = int_to_ptr.vmem [resolvable:$true] %s2107
          %2110 = dma.vmem_to_hbm [thread:$0]  %s2108, 128, %s2105, %s2094
        $region60: #{gat_forward.3} parent=47 // pred_fallthru
          _
      $region48: #{gat_forward.3} parent=5 // pred_fallthru
        _
      %p2111 = scmp.le.s32.totalorder 2, %s16
      // Predicated region
      $region61: #{gat_forward.3} parent=5 // pred_check
        %p2112 = pneg %p2111
      $region62: #{gat_forward.3} parent=5 // pred_check_branch
        %2114 = sbr.rel (%p2112) target = $region64
      $region63: #{gat_forward.3} parent=5 // pred_region
        %s2115 = ssub.s32 %s16, 2
        // Predicated region
        $region65: #{gat_forward.3} parent=63 // pred_check
          %p2116 = pneg %p226
        $region66: #{gat_forward.3} parent=63 // pred_check_branch
          %2118 = sbr.rel (%p2116) target = $region68
        $region67: #{gat_forward.3} parent=63 // pred_region
          %s2119 = sand.u32 %s211, 1
          %s2120 = scalar_lea.sflag [#allocation8], %s2119
          %s2121 = sand.u32 %s211, 1
          %s2122 = smul.addr %s2121, 8
          %s2123 = scalar_lea.vmem [#allocation7], %s2122
          %2124 = dma.done %s2120, 128
        $region68: #{gat_forward.3} parent=63 // pred_fallthru
          _
      $region64: #{gat_forward.3} parent=5 // pred_fallthru
        _
    $region6: #{gat_forward.3} parent=1 // loop_footer
      %s20 = sadd.s32 1, %s16
    $region7: #{gat_forward.3} parent=1 // loop_footer_branch
      %15 = sbr.rel target = $region3
    $region8: #{gat_forward.3} parent=1 // loop_exit
      _
    %2125 = vsyncpa [#allocation8], 1
    %s2126 = scalar_lea.sflag [#allocation8], 1
    %2127 = vsyncpa %s2126, 1

</llo_original>
